<compile_context>
chip_gen: v5e
topology: v5e:2x2
jax: 0.10.0
libtpu: 0.0.40
codegen_flags: <defaults>
</compile_context>

<pallas_src>
import functools

import jax
import jax.numpy as jnp
from jax.experimental import pallas as pl
from jax.experimental.pallas import tpu as pltpu


# ----------------------------- Pallas kernel --------------------------------

def _disc_conv_sigmoid_kernel(x_ref, w_ref, b_ref, o_ref, *, kh, kw, img_w):
    """Fused 4x4 / stride-1 / VALID conv (C_out=1) + bias + sigmoid, batch block.

    x_ref: (Bb, H*W, C)   channels lane-dense, spatial flattened        (VMEM)
    w_ref: (kh*kw, C)     weight; row t = i*kw + j holds tap (i, j)     (VMEM)
    b_ref: (1,)           conv bias                                     (SMEM)
    o_ref: (Bb, Ho, Wo)   sigmoid(conv(x) + bias)                       (VMEM)
    """
    bb, _, c = x_ref.shape
    _, ho, wo = o_ref.shape
    n_taps = kh * kw

    # Feed the MXU at native dtype (bf16 path stays bf16; accumulation is f32).
    x = x_ref[...]                                        # (Bb, H*W, C)
    wmat = jnp.broadcast_to(w_ref[...].reshape(1, n_taps, c), (bb, n_taps, c))

    # Channel reduction on the MXU (otherwise-idle vector-extended slot):
    #   pt[b, t, s] = sum_c w[t, c] * x[b, s, c]
    pt = jnp.einsum("btc,bsc->bts", wmat, x,
                    preferred_element_type=jnp.float32)   # (Bb, n_taps, H*W) f32

    # Tiny shift-and-add tap gather (VPU/XLU, a few KB):
    #   y[b, r, q] = sum_{i,j} pt[b, i*kw + j, (r + i)*img_w + (q + j)]
    rows = []
    for r in range(ho):
        row = jnp.zeros((bb, 1, wo), jnp.float32)
        for i in range(kh):
            for j in range(kw):
                t = i * kw + j
                s0 = (r + i) * img_w + j
                row = row + pt[:, t:t + 1, s0:s0 + wo]
        rows.append(row)
    y = jnp.concatenate(rows, axis=1) + b_ref[0]          # (Bb, Ho, Wo)

    o_ref[...] = jax.nn.sigmoid(y).astype(o_ref.dtype)


# ------------------------------ JAX wrapper ----------------------------------

@functools.partial(jax.jit, static_argnames=("batch_block", "compute_dtype"))
def discriminator_forward(x, weight, bias, *, batch_block=8,
                          compute_dtype=jnp.float32):
    """x: (N, 1024, H, W) NCHW; weight: (1, 1024, 4, 4) OIHW; bias: (1,).

    Returns sigmoid(conv5(x)) with shape (N, 1, H-3, W-3), float32.
    """
    n, c, h, w_img = x.shape
    _, _, kh, kw = weight.shape
    ho, wo = h - kh + 1, w_img - kw + 1
    n_taps = kh * kw

    # Largest batch block <= batch_block that divides N (keeps BlockSpecs exact).
    bb = max(1, min(batch_block, n))
    while n % bb:
        bb -= 1

    # Layout pass: NCHW -> (N, H*W, C), channels on the lane axis.
    # allow_input_fusion below lets XLA fold this transpose/cast into the
    # Pallas input DMA rather than doing a separate HBM read+write of x.
    x_l = jnp.transpose(x, (0, 2, 3, 1)).reshape(n, h * w_img, c)
    x_l = x_l.astype(compute_dtype)
    # OIHW -> (kh*kw, C); row i*kw + j corresponds to tap (i, j).
    w2d = jnp.transpose(weight[0], (1, 2, 0)).reshape(n_taps, c)
    w2d = w2d.astype(compute_dtype)
    b = bias.astype(jnp.float32)

    kernel = functools.partial(_disc_conv_sigmoid_kernel,
                               kh=kh, kw=kw, img_w=w_img)

    out = pl.pallas_call(
        kernel,
        out_shape=jax.ShapeDtypeStruct((n, ho, wo), jnp.float32),
        grid_spec=pltpu.PrefetchScalarGridSpec(
            num_scalar_prefetch=0,
            grid=(n // bb,),
            in_specs=[
                pl.BlockSpec((bb, h * w_img, c), lambda g: (g, 0, 0)),
                pl.BlockSpec((n_taps, c), lambda g: (0, 0)),   # fetched once
                pl.BlockSpec(memory_space=pltpu.SMEM),         # bias scalar
            ],
            out_specs=pl.BlockSpec((bb, ho, wo), lambda g: (g, 0, 0)),
        ),
        compiler_params=pltpu.CompilerParams(
            dimension_semantics=("parallel",),
            allow_input_fusion=[True, False, False],
        ),
    )(x_l, w2d, b)

    return out[:, None, :, :]                                   # (N, 1, Ho, Wo)


# --------------------------------- main --------------------------------------

if __name__ == "__main__":
    key = jax.random.PRNGKey(0)
    k_x, k_w, k_b = jax.random.split(key, 3)

    # Module implies in_channels = d*8 = 1024, kernel 4x4, stride 1, pad 0.
    # N=16 with batch_block=8 -> 2 grid blocks (both v7x TensorCores busy).
    N, C, H, W = 16, 1024, 7, 7          # output spatial: 4x4
    x = jax.random.normal(k_x, (N, C, H, W), dtype=jnp.float32)
    fan_in = C * 4 * 4
    bound = 1.0 / (fan_in ** 0.5)
    weight = jax.random.uniform(k_w, (1, C, 4, 4), jnp.float32, -bound, bound)
    bias = jax.random.uniform(k_b, (1,), jnp.float32, -bound, bound)

    # Pure-JAX reference (NCHW conv + sigmoid).
    ref = jax.lax.conv_general_dilated(
        x, weight, window_strides=(1, 1), padding="VALID",
        dimension_numbers=("NCHW", "OIHW", "NCHW"),
        precision=jax.lax.Precision.HIGHEST,
    ) + bias.reshape(1, 1, 1, 1)
    ref = jax.nn.sigmoid(ref)

    # float32 path (default; the right choice on v5e).
    out = jax.block_until_ready(discriminator_forward(x, weight, bias))
    assert out.shape == (N, 1, H - 3, W - 3), out.shape
    err_f32 = float(jnp.max(jnp.abs(out - ref)))
    assert err_f32 < 5e-3, err_f32

    # bf16 path (halves HBM traffic, native bf16 MXU on v6e/v7x; f32 accum).
    out_bf16 = jax.block_until_ready(
        discriminator_forward(x, weight, bias, compute_dtype=jnp.bfloat16)
    )
    err_bf16 = float(jnp.max(jnp.abs(out_bf16 - ref)))
    assert err_bf16 < 3e-2, err_bf16

    print("KERNEL_OK")
</pallas_src>

<mosaic_0001>
module attributes {stable_mosaic.version = 11 : i64} {
  func.func @_disc_conv_sigmoid_kernel(%arg0: i32, %arg1: memref<8x49x1024xf32, #tpu.memory_space<vmem>>, %arg2: memref<16x1024xf32, #tpu.memory_space<vmem>>, %arg3: memref<1xf32, #tpu.memory_space<smem>>, %arg4: memref<8x4x4xf32, #tpu.memory_space<vmem>>) attributes {dimension_semantics = [#tpu.dimension_semantics<parallel>], iteration_bounds = array<i64: 2>, scalar_prefetch = 0 : i64, scratch_operands = 0 : i64, tpu.core_type = #tpu.core_type<tc>, window_params = [{transform_indices = @transform_0, window_bounds = array<i64: 8, 49, 1024>}, {pipeline_mode = #tpu.pipeline_mode<synchronous>, transform_indices = @transform_1, window_bounds = array<i64: 16, 1024>}, {transform_indices = @transform_2, window_bounds = array<i64: 1>}, {transform_indices = @transform_3, window_bounds = array<i64: 8, 4, 4>}]} {
    %c0 = arith.constant 0 : index
    %c0_0 = arith.constant 0 : index
    %c0_1 = arith.constant 0 : index
    %0 = vector.load %arg1[%c0, %c0_0, %c0_1] : memref<8x49x1024xf32, #tpu.memory_space<vmem>>, vector<8x49x1024xf32>
    %c0_2 = arith.constant 0 : index
    %c0_3 = arith.constant 0 : index
    %1 = vector.load %arg2[%c0_2, %c0_3] : memref<16x1024xf32, #tpu.memory_space<vmem>>, vector<16x1024xf32>
    %2 = vector.shape_cast %1 : vector<16x1024xf32> to vector<1x16x1024xf32>
    %3 = vector.shape_cast %2 : vector<1x16x1024xf32> to vector<1x16x1024xf32>
    %4 = vector.broadcast %3 : vector<1x16x1024xf32> to vector<8x16x1024xf32>
    "tpu.trace_start"() <{level = 10 : i32, message = "btc,bsc->bts"}> : () -> ()
    %cst = arith.constant dense<0.000000e+00> : vector<8x16x49xf32>
    %5 = tpu.matmul %4, %0, %cst {dimension_numbers = #tpu.dot_dimension_numbers<[2], [2], [1], [1], [0, 0, 0, 1, 1, 1], [0], [0]>} : vector<8x16x1024xf32>, vector<8x49x1024xf32>, vector<8x16x49xf32> -> vector<8x16x49xf32>
    %cst_4 = arith.constant 0.000000e+00 : f32
    "tpu.trace_stop"() : () -> ()
    %6 = vector.broadcast %cst_4 : f32 to vector<8x1x4xf32>
    %7 = vector.extract_strided_slice %5 {offsets = [0, 0, 0], sizes = [8, 1, 4], strides = [1, 1, 1]} : vector<8x16x49xf32> to vector<8x1x4xf32>
    %8 = arith.addf %6, %7 : vector<8x1x4xf32>
    %9 = vector.extract_strided_slice %5 {offsets = [0, 1, 1], sizes = [8, 1, 4], strides = [1, 1, 1]} : vector<8x16x49xf32> to vector<8x1x4xf32>
    %10 = arith.addf %8, %9 : vector<8x1x4xf32>
    %11 = vector.extract_strided_slice %5 {offsets = [0, 2, 2], sizes = [8, 1, 4], strides = [1, 1, 1]} : vector<8x16x49xf32> to vector<8x1x4xf32>
    %12 = arith.addf %10, %11 : vector<8x1x4xf32>
    %13 = vector.extract_strided_slice %5 {offsets = [0, 3, 3], sizes = [8, 1, 4], strides = [1, 1, 1]} : vector<8x16x49xf32> to vector<8x1x4xf32>
    %14 = arith.addf %12, %13 : vector<8x1x4xf32>
    %15 = vector.extract_strided_slice %5 {offsets = [0, 4, 7], sizes = [8, 1, 4], strides = [1, 1, 1]} : vector<8x16x49xf32> to vector<8x1x4xf32>
    %16 = arith.addf %14, %15 : vector<8x1x4xf32>
    %17 = vector.extract_strided_slice %5 {offsets = [0, 5, 8], sizes = [8, 1, 4], strides = [1, 1, 1]} : vector<8x16x49xf32> to vector<8x1x4xf32>
    %18 = arith.addf %16, %17 : vector<8x1x4xf32>
    %19 = vector.extract_strided_slice %5 {offsets = [0, 6, 9], sizes = [8, 1, 4], strides = [1, 1, 1]} : vector<8x16x49xf32> to vector<8x1x4xf32>
    %20 = arith.addf %18, %19 : vector<8x1x4xf32>
    %21 = vector.extract_strided_slice %5 {offsets = [0, 7, 10], sizes = [8, 1, 4], strides = [1, 1, 1]} : vector<8x16x49xf32> to vector<8x1x4xf32>
    %22 = arith.addf %20, %21 : vector<8x1x4xf32>
    %23 = vector.extract_strided_slice %5 {offsets = [0, 8, 14], sizes = [8, 1, 4], strides = [1, 1, 1]} : vector<8x16x49xf32> to vector<8x1x4xf32>
    %24 = arith.addf %22, %23 : vector<8x1x4xf32>
    %25 = vector.extract_strided_slice %5 {offsets = [0, 9, 15], sizes = [8, 1, 4], strides = [1, 1, 1]} : vector<8x16x49xf32> to vector<8x1x4xf32>
    %26 = arith.addf %24, %25 : vector<8x1x4xf32>
    %27 = vector.extract_strided_slice %5 {offsets = [0, 10, 16], sizes = [8, 1, 4], strides = [1, 1, 1]} : vector<8x16x49xf32> to vector<8x1x4xf32>
    %28 = arith.addf %26, %27 : vector<8x1x4xf32>
    %29 = vector.extract_strided_slice %5 {offsets = [0, 11, 17], sizes = [8, 1, 4], strides = [1, 1, 1]} : vector<8x16x49xf32> to vector<8x1x4xf32>
    %30 = arith.addf %28, %29 : vector<8x1x4xf32>
    %31 = vector.extract_strided_slice %5 {offsets = [0, 12, 21], sizes = [8, 1, 4], strides = [1, 1, 1]} : vector<8x16x49xf32> to vector<8x1x4xf32>
    %32 = arith.addf %30, %31 : vector<8x1x4xf32>
    %33 = vector.extract_strided_slice %5 {offsets = [0, 13, 22], sizes = [8, 1, 4], strides = [1, 1, 1]} : vector<8x16x49xf32> to vector<8x1x4xf32>
    %34 = arith.addf %32, %33 : vector<8x1x4xf32>
    %35 = vector.extract_strided_slice %5 {offsets = [0, 14, 23], sizes = [8, 1, 4], strides = [1, 1, 1]} : vector<8x16x49xf32> to vector<8x1x4xf32>
    %36 = arith.addf %34, %35 : vector<8x1x4xf32>
    %37 = vector.extract_strided_slice %5 {offsets = [0, 15, 24], sizes = [8, 1, 4], strides = [1, 1, 1]} : vector<8x16x49xf32> to vector<8x1x4xf32>
    %38 = arith.addf %36, %37 : vector<8x1x4xf32>
    %cst_5 = arith.constant 0.000000e+00 : f32
    %39 = vector.broadcast %cst_5 : f32 to vector<8x1x4xf32>
    %40 = vector.extract_strided_slice %5 {offsets = [0, 0, 7], sizes = [8, 1, 4], strides = [1, 1, 1]} : vector<8x16x49xf32> to vector<8x1x4xf32>
    %41 = arith.addf %39, %40 : vector<8x1x4xf32>
    %42 = vector.extract_strided_slice %5 {offsets = [0, 1, 8], sizes = [8, 1, 4], strides = [1, 1, 1]} : vector<8x16x49xf32> to vector<8x1x4xf32>
    %43 = arith.addf %41, %42 : vector<8x1x4xf32>
    %44 = vector.extract_strided_slice %5 {offsets = [0, 2, 9], sizes = [8, 1, 4], strides = [1, 1, 1]} : vector<8x16x49xf32> to vector<8x1x4xf32>
    %45 = arith.addf %43, %44 : vector<8x1x4xf32>
    %46 = vector.extract_strided_slice %5 {offsets = [0, 3, 10], sizes = [8, 1, 4], strides = [1, 1, 1]} : vector<8x16x49xf32> to vector<8x1x4xf32>
    %47 = arith.addf %45, %46 : vector<8x1x4xf32>
    %48 = vector.extract_strided_slice %5 {offsets = [0, 4, 14], sizes = [8, 1, 4], strides = [1, 1, 1]} : vector<8x16x49xf32> to vector<8x1x4xf32>
    %49 = arith.addf %47, %48 : vector<8x1x4xf32>
    %50 = vector.extract_strided_slice %5 {offsets = [0, 5, 15], sizes = [8, 1, 4], strides = [1, 1, 1]} : vector<8x16x49xf32> to vector<8x1x4xf32>
    %51 = arith.addf %49, %50 : vector<8x1x4xf32>
    %52 = vector.extract_strided_slice %5 {offsets = [0, 6, 16], sizes = [8, 1, 4], strides = [1, 1, 1]} : vector<8x16x49xf32> to vector<8x1x4xf32>
    %53 = arith.addf %51, %52 : vector<8x1x4xf32>
    %54 = vector.extract_strided_slice %5 {offsets = [0, 7, 17], sizes = [8, 1, 4], strides = [1, 1, 1]} : vector<8x16x49xf32> to vector<8x1x4xf32>
    %55 = arith.addf %53, %54 : vector<8x1x4xf32>
    %56 = vector.extract_strided_slice %5 {offsets = [0, 8, 21], sizes = [8, 1, 4], strides = [1, 1, 1]} : vector<8x16x49xf32> to vector<8x1x4xf32>
    %57 = arith.addf %55, %56 : vector<8x1x4xf32>
    %58 = vector.extract_strided_slice %5 {offsets = [0, 9, 22], sizes = [8, 1, 4], strides = [1, 1, 1]} : vector<8x16x49xf32> to vector<8x1x4xf32>
    %59 = arith.addf %57, %58 : vector<8x1x4xf32>
    %60 = vector.extract_strided_slice %5 {offsets = [0, 10, 23], sizes = [8, 1, 4], strides = [1, 1, 1]} : vector<8x16x49xf32> to vector<8x1x4xf32>
    %61 = arith.addf %59, %60 : vector<8x1x4xf32>
    %62 = vector.extract_strided_slice %5 {offsets = [0, 11, 24], sizes = [8, 1, 4], strides = [1, 1, 1]} : vector<8x16x49xf32> to vector<8x1x4xf32>
    %63 = arith.addf %61, %62 : vector<8x1x4xf32>
    %64 = vector.extract_strided_slice %5 {offsets = [0, 12, 28], sizes = [8, 1, 4], strides = [1, 1, 1]} : vector<8x16x49xf32> to vector<8x1x4xf32>
    %65 = arith.addf %63, %64 : vector<8x1x4xf32>
    %66 = vector.extract_strided_slice %5 {offsets = [0, 13, 29], sizes = [8, 1, 4], strides = [1, 1, 1]} : vector<8x16x49xf32> to vector<8x1x4xf32>
    %67 = arith.addf %65, %66 : vector<8x1x4xf32>
    %68 = vector.extract_strided_slice %5 {offsets = [0, 14, 30], sizes = [8, 1, 4], strides = [1, 1, 1]} : vector<8x16x49xf32> to vector<8x1x4xf32>
    %69 = arith.addf %67, %68 : vector<8x1x4xf32>
    %70 = vector.extract_strided_slice %5 {offsets = [0, 15, 31], sizes = [8, 1, 4], strides = [1, 1, 1]} : vector<8x16x49xf32> to vector<8x1x4xf32>
    %71 = arith.addf %69, %70 : vector<8x1x4xf32>
    %cst_6 = arith.constant 0.000000e+00 : f32
    %72 = vector.broadcast %cst_6 : f32 to vector<8x1x4xf32>
    %73 = vector.extract_strided_slice %5 {offsets = [0, 0, 14], sizes = [8, 1, 4], strides = [1, 1, 1]} : vector<8x16x49xf32> to vector<8x1x4xf32>
    %74 = arith.addf %72, %73 : vector<8x1x4xf32>
    %75 = vector.extract_strided_slice %5 {offsets = [0, 1, 15], sizes = [8, 1, 4], strides = [1, 1, 1]} : vector<8x16x49xf32> to vector<8x1x4xf32>
    %76 = arith.addf %74, %75 : vector<8x1x4xf32>
    %77 = vector.extract_strided_slice %5 {offsets = [0, 2, 16], sizes = [8, 1, 4], strides = [1, 1, 1]} : vector<8x16x49xf32> to vector<8x1x4xf32>
    %78 = arith.addf %76, %77 : vector<8x1x4xf32>
    %79 = vector.extract_strided_slice %5 {offsets = [0, 3, 17], sizes = [8, 1, 4], strides = [1, 1, 1]} : vector<8x16x49xf32> to vector<8x1x4xf32>
    %80 = arith.addf %78, %79 : vector<8x1x4xf32>
    %81 = vector.extract_strided_slice %5 {offsets = [0, 4, 21], sizes = [8, 1, 4], strides = [1, 1, 1]} : vector<8x16x49xf32> to vector<8x1x4xf32>
    %82 = arith.addf %80, %81 : vector<8x1x4xf32>
    %83 = vector.extract_strided_slice %5 {offsets = [0, 5, 22], sizes = [8, 1, 4], strides = [1, 1, 1]} : vector<8x16x49xf32> to vector<8x1x4xf32>
    %84 = arith.addf %82, %83 : vector<8x1x4xf32>
    %85 = vector.extract_strided_slice %5 {offsets = [0, 6, 23], sizes = [8, 1, 4], strides = [1, 1, 1]} : vector<8x16x49xf32> to vector<8x1x4xf32>
    %86 = arith.addf %84, %85 : vector<8x1x4xf32>
    %87 = vector.extract_strided_slice %5 {offsets = [0, 7, 24], sizes = [8, 1, 4], strides = [1, 1, 1]} : vector<8x16x49xf32> to vector<8x1x4xf32>
    %88 = arith.addf %86, %87 : vector<8x1x4xf32>
    %89 = vector.extract_strided_slice %5 {offsets = [0, 8, 28], sizes = [8, 1, 4], strides = [1, 1, 1]} : vector<8x16x49xf32> to vector<8x1x4xf32>
    %90 = arith.addf %88, %89 : vector<8x1x4xf32>
    %91 = vector.extract_strided_slice %5 {offsets = [0, 9, 29], sizes = [8, 1, 4], strides = [1, 1, 1]} : vector<8x16x49xf32> to vector<8x1x4xf32>
    %92 = arith.addf %90, %91 : vector<8x1x4xf32>
    %93 = vector.extract_strided_slice %5 {offsets = [0, 10, 30], sizes = [8, 1, 4], strides = [1, 1, 1]} : vector<8x16x49xf32> to vector<8x1x4xf32>
    %94 = arith.addf %92, %93 : vector<8x1x4xf32>
    %95 = vector.extract_strided_slice %5 {offsets = [0, 11, 31], sizes = [8, 1, 4], strides = [1, 1, 1]} : vector<8x16x49xf32> to vector<8x1x4xf32>
    %96 = arith.addf %94, %95 : vector<8x1x4xf32>
    %97 = vector.extract_strided_slice %5 {offsets = [0, 12, 35], sizes = [8, 1, 4], strides = [1, 1, 1]} : vector<8x16x49xf32> to vector<8x1x4xf32>
    %98 = arith.addf %96, %97 : vector<8x1x4xf32>
    %99 = vector.extract_strided_slice %5 {offsets = [0, 13, 36], sizes = [8, 1, 4], strides = [1, 1, 1]} : vector<8x16x49xf32> to vector<8x1x4xf32>
    %100 = arith.addf %98, %99 : vector<8x1x4xf32>
    %101 = vector.extract_strided_slice %5 {offsets = [0, 14, 37], sizes = [8, 1, 4], strides = [1, 1, 1]} : vector<8x16x49xf32> to vector<8x1x4xf32>
    %102 = arith.addf %100, %101 : vector<8x1x4xf32>
    %103 = vector.extract_strided_slice %5 {offsets = [0, 15, 38], sizes = [8, 1, 4], strides = [1, 1, 1]} : vector<8x16x49xf32> to vector<8x1x4xf32>
    %104 = arith.addf %102, %103 : vector<8x1x4xf32>
    %cst_7 = arith.constant 0.000000e+00 : f32
    %105 = vector.broadcast %cst_7 : f32 to vector<8x1x4xf32>
    %106 = vector.extract_strided_slice %5 {offsets = [0, 0, 21], sizes = [8, 1, 4], strides = [1, 1, 1]} : vector<8x16x49xf32> to vector<8x1x4xf32>
    %107 = arith.addf %105, %106 : vector<8x1x4xf32>
    %108 = vector.extract_strided_slice %5 {offsets = [0, 1, 22], sizes = [8, 1, 4], strides = [1, 1, 1]} : vector<8x16x49xf32> to vector<8x1x4xf32>
    %109 = arith.addf %107, %108 : vector<8x1x4xf32>
    %110 = vector.extract_strided_slice %5 {offsets = [0, 2, 23], sizes = [8, 1, 4], strides = [1, 1, 1]} : vector<8x16x49xf32> to vector<8x1x4xf32>
    %111 = arith.addf %109, %110 : vector<8x1x4xf32>
    %112 = vector.extract_strided_slice %5 {offsets = [0, 3, 24], sizes = [8, 1, 4], strides = [1, 1, 1]} : vector<8x16x49xf32> to vector<8x1x4xf32>
    %113 = arith.addf %111, %112 : vector<8x1x4xf32>
    %114 = vector.extract_strided_slice %5 {offsets = [0, 4, 28], sizes = [8, 1, 4], strides = [1, 1, 1]} : vector<8x16x49xf32> to vector<8x1x4xf32>
    %115 = arith.addf %113, %114 : vector<8x1x4xf32>
    %116 = vector.extract_strided_slice %5 {offsets = [0, 5, 29], sizes = [8, 1, 4], strides = [1, 1, 1]} : vector<8x16x49xf32> to vector<8x1x4xf32>
    %117 = arith.addf %115, %116 : vector<8x1x4xf32>
    %118 = vector.extract_strided_slice %5 {offsets = [0, 6, 30], sizes = [8, 1, 4], strides = [1, 1, 1]} : vector<8x16x49xf32> to vector<8x1x4xf32>
    %119 = arith.addf %117, %118 : vector<8x1x4xf32>
    %120 = vector.extract_strided_slice %5 {offsets = [0, 7, 31], sizes = [8, 1, 4], strides = [1, 1, 1]} : vector<8x16x49xf32> to vector<8x1x4xf32>
    %121 = arith.addf %119, %120 : vector<8x1x4xf32>
    %122 = vector.extract_strided_slice %5 {offsets = [0, 8, 35], sizes = [8, 1, 4], strides = [1, 1, 1]} : vector<8x16x49xf32> to vector<8x1x4xf32>
    %123 = arith.addf %121, %122 : vector<8x1x4xf32>
    %124 = vector.extract_strided_slice %5 {offsets = [0, 9, 36], sizes = [8, 1, 4], strides = [1, 1, 1]} : vector<8x16x49xf32> to vector<8x1x4xf32>
    %125 = arith.addf %123, %124 : vector<8x1x4xf32>
    %126 = vector.extract_strided_slice %5 {offsets = [0, 10, 37], sizes = [8, 1, 4], strides = [1, 1, 1]} : vector<8x16x49xf32> to vector<8x1x4xf32>
    %127 = arith.addf %125, %126 : vector<8x1x4xf32>
    %128 = vector.extract_strided_slice %5 {offsets = [0, 11, 38], sizes = [8, 1, 4], strides = [1, 1, 1]} : vector<8x16x49xf32> to vector<8x1x4xf32>
    %129 = arith.addf %127, %128 : vector<8x1x4xf32>
    %130 = vector.extract_strided_slice %5 {offsets = [0, 12, 42], sizes = [8, 1, 4], strides = [1, 1, 1]} : vector<8x16x49xf32> to vector<8x1x4xf32>
    %131 = arith.addf %129, %130 : vector<8x1x4xf32>
    %132 = vector.extract_strided_slice %5 {offsets = [0, 13, 43], sizes = [8, 1, 4], strides = [1, 1, 1]} : vector<8x16x49xf32> to vector<8x1x4xf32>
    %133 = arith.addf %131, %132 : vector<8x1x4xf32>
    %134 = vector.extract_strided_slice %5 {offsets = [0, 14, 44], sizes = [8, 1, 4], strides = [1, 1, 1]} : vector<8x16x49xf32> to vector<8x1x4xf32>
    %135 = arith.addf %133, %134 : vector<8x1x4xf32>
    %136 = vector.extract_strided_slice %5 {offsets = [0, 15, 45], sizes = [8, 1, 4], strides = [1, 1, 1]} : vector<8x16x49xf32> to vector<8x1x4xf32>
    %137 = arith.addf %135, %136 : vector<8x1x4xf32>
    %138 = tpu.concatenate %38, %71, %104, %137 in 1 : vector<8x1x4xf32>, vector<8x1x4xf32>, vector<8x1x4xf32>, vector<8x1x4xf32> -> vector<8x4x4xf32>
    %c0_8 = arith.constant 0 : index
    %139 = memref.load %arg3[%c0_8] : memref<1xf32, #tpu.memory_space<smem>>
    %140 = vector.broadcast %139 : f32 to vector<8x4x4xf32>
    %141 = arith.addf %138, %140 : vector<8x4x4xf32>
    %142 = arith.negf %141 : vector<8x4x4xf32>
    %143 = math.exp %142 : vector<8x4x4xf32>
    %cst_9 = arith.constant 1.000000e+00 : f32
    %144 = vector.broadcast %cst_9 : f32 to vector<8x4x4xf32>
    %145 = arith.addf %144, %143 : vector<8x4x4xf32>
    %146 = arith.divf %144, %145 : vector<8x4x4xf32>
    %c0_10 = arith.constant 0 : index
    %c0_11 = arith.constant 0 : index
    %c0_12 = arith.constant 0 : index
    %147 = vector.load %arg4[%c0_10, %c0_11, %c0_12] : memref<8x4x4xf32, #tpu.memory_space<vmem>>, vector<8x4x4xf32>
    tpu.vector_store %arg4[%c0_10, %c0_11, %c0_12], %146 {strides = array<i32>} : memref<8x4x4xf32, #tpu.memory_space<vmem>>, vector<8x4x4xf32>,
    return
  }
  func.func @transform_0(%arg0: i32) -> (i32, i32, i32) {
    %c0_i32 = arith.constant 0 : i32
    %c0_i32_0 = arith.constant 0 : i32
    %c0_i32_1 = arith.constant 0 : i32
    return %arg0, %c0_i32, %c0_i32_0 : i32, i32, i32
  }
  func.func @transform_1(%arg0: i32) -> (i32, i32) {
    %c0_i32 = arith.constant 0 : i32
    %c0_i32_0 = arith.constant 0 : i32
    %c0_i32_1 = arith.constant 0 : i32
    return %c0_i32, %c0_i32_0 : i32, i32
  }
  func.func @transform_2(%arg0: i32) -> i32 {
    %c0_i32 = arith.constant 0 : i32
    %c0_i32_0 = arith.constant 0 : i32
    return %c0_i32 : i32
  }
  func.func @transform_3(%arg0: i32) -> (i32, i32, i32) {
    %c0_i32 = arith.constant 0 : i32
    %c0_i32_0 = arith.constant 0 : i32
    %c0_i32_1 = arith.constant 0 : i32
    return %arg0, %c0_i32, %c0_i32_0 : i32, i32, i32
  }
}

</mosaic_0001>

<llo_original>
// kernel: discriminator_forward.1
$region0: #{discriminator_forward.1}
  #allocation0 [shape = 'u32[]', space=smem, size = 0x4, offset = 0x4, fixed_abs, tag = 'smem constant byte address 0x4 - core index']
  #allocation1 [shape = 'u32[72,128]{1,0:T(1,128)}', space=vmem, size = 0x9000, scoped, tag = 'internal scratch']
  #allocation2 [shape = 'f32[1]{0:T(128)S(6)}', space=smem, size = 0x200, scoped, tag = 'scoped memory for discriminator_forward.1']
  %s0 = inlined_call_operand.vmem [shape: f32[16,49,1024], index: 0, kind: input, shape index: {}]
  %s1 = inlined_call_operand.vmem [shape: f32[16,1024], index: 1, kind: input, shape index: {}]
  %s2 = inlined_call_operand.<no memory space> [shape: f32[1], index: 2, kind: input, shape index: {}]
  %s3 = inlined_call_operand.vmem [shape: f32[16,4,4], index: 3, kind: output, shape index: {}]
  %s4 = sld [smem:[#allocation0]]
  $region45: #{discriminator_forward.1} parent=0
    _
  %s6 = ssub.s32 1, %s4
  %s7 = scalar_select 0, %s6, %s4
  %8 = sst [smem:[#allocation2]] %s2
  loop: start=0, step=1, limit=4
  $region2: #{discriminator_forward.1} parent=0 // loop_pre_header
    _
  $region3: #{discriminator_forward.1} parent=0 // loop_header
    %s10 = sphi 0, %s14
    %p11 = scmp.ge.s32.totalorder %s10, 4
    %s20 = sphi 0, %s22
    %s23 = sphi 0, %s20
    %s24 = sphi 0, %s23
    %s40 = sphi 0, %s24
    %s44 = sphi 0, %s44
    %s46 = sphi 0, %s44
    %s47 = sphi 0, %s46
    %s61 = sphi 0, %s47
    %s65 = sphi 0, %s65
    %s67 = sphi 0, %s65
    %s68 = sphi 0, %s67
    %s82 = sphi 0, %s68
    %s88 = sphi 0, %s90
    %s91 = sphi 0, %s88
    %s92 = sphi 0, %s91
    %s108 = sphi 0, %s92
  $region4: #{discriminator_forward.1} parent=0 // loop_header_branch
    %13 = sbr.rel (%p11) target = $region8
  $region5: #{discriminator_forward.1} parent=0 // loop_body
    %s15 = ssub.s32 %s10, 1
    %s16 = ssub.s32 %s10, 2
    %s17 = sadd.s32 %s10, 1
    %s18 = ssub.s32 %s10, %s17
    %p19 = scmp.eq.s32.totalorder %s18, 0
    %s21 = sadd.s32 %s20, 1
    %s22 = scalar_select %p19, %s20, %s21
    %p25 = pneg %p19
    %p26 = scmp.eq.s32.totalorder %s10, 1
    %p27 = por %p25, %p26
    %p28 = scmp.ne.s32.totalorder %s20, %s23
    %p29 = scmp.eq.s32.totalorder %s10, 0
    %p30 = por %p28, %p29
    %p31 = scmp.ne.s32.totalorder %s20, %s23
    %p32 = scmp.eq.s32.totalorder %s15, 1
    %p33 = por %p31, %p32
    %p34 = scmp.ne.s32.totalorder %s23, %s24
    %p35 = scmp.eq.s32.totalorder %s15, 0
    %p36 = por %p34, %p35
    %p37 = scmp.ne.s32.totalorder %s23, %s24
    %p38 = scmp.eq.s32.totalorder %s16, 1
    %p39 = por %p37, %p38
    %p41 = scmp.ne.s32.totalorder %s24, %s40
    %p42 = scmp.eq.s32.totalorder %s16, 0
    %p43 = por %p41, %p42
    %s45 = sadd.s32 %s44, 1
    %p48 = scmp.eq.s32.totalorder %s10, 1
    %p49 = scmp.ne.s32.totalorder %s44, %s46
    %p50 = scmp.eq.s32.totalorder %s10, 0
    %p51 = por %p49, %p50
    %p52 = scmp.ne.s32.totalorder %s44, %s46
    %p53 = scmp.eq.s32.totalorder %s15, 1
    %p54 = por %p52, %p53
    %p55 = scmp.ne.s32.totalorder %s46, %s47
    %p56 = scmp.eq.s32.totalorder %s15, 0
    %p57 = por %p55, %p56
    %p58 = scmp.ne.s32.totalorder %s46, %s47
    %p59 = scmp.eq.s32.totalorder %s16, 1
    %p60 = por %p58, %p59
    %p62 = scmp.ne.s32.totalorder %s47, %s61
    %p63 = scmp.eq.s32.totalorder %s16, 0
    %p64 = por %p62, %p63
    %s66 = sadd.s32 %s65, 1
    %p69 = scmp.eq.s32.totalorder %s10, 1
    %p70 = scmp.ne.s32.totalorder %s65, %s67
    %p71 = scmp.eq.s32.totalorder %s10, 0
    %p72 = por %p70, %p71
    %p73 = scmp.ne.s32.totalorder %s65, %s67
    %p74 = scmp.eq.s32.totalorder %s15, 1
    %p75 = por %p73, %p74
    %p76 = scmp.ne.s32.totalorder %s67, %s68
    %p77 = scmp.eq.s32.totalorder %s15, 0
    %p78 = por %p76, %p77
    %p79 = scmp.ne.s32.totalorder %s67, %s68
    %p80 = scmp.eq.s32.totalorder %s16, 1
    %p81 = por %p79, %p80
    %p83 = scmp.ne.s32.totalorder %s68, %s82
    %p84 = scmp.eq.s32.totalorder %s16, 0
    %p85 = por %p83, %p84
    %s86 = ssub.s32 %s10, %s17
    %p87 = scmp.eq.s32.totalorder %s86, 0
    %s89 = sadd.s32 %s88, 1
    %s90 = scalar_select %p87, %s88, %s89
    %p93 = pneg %p87
    %p94 = scmp.eq.s32.totalorder %s10, 1
    %p95 = por %p93, %p94
    %p96 = scmp.ne.s32.totalorder %s88, %s91
    %p97 = scmp.eq.s32.totalorder %s10, 0
    %p98 = por %p96, %p97
    %p99 = scmp.ne.s32.totalorder %s88, %s91
    %p100 = scmp.eq.s32.totalorder %s15, 1
    %p101 = por %p99, %p100
    %p102 = scmp.ne.s32.totalorder %s91, %s92
    %p103 = scmp.eq.s32.totalorder %s15, 0
    %p104 = por %p102, %p103
    %p105 = scmp.ne.s32.totalorder %s91, %s92
    %p106 = scmp.eq.s32.totalorder %s16, 1
    %p107 = por %p105, %p106
    %p109 = scmp.ne.s32.totalorder %s92, %s108
    %p110 = scmp.eq.s32.totalorder %s16, 0
    %p111 = por %p109, %p110
    %p112 = scmp.le.s32.totalorder 1, %s10
    %p113 = scmp.lt.s32.totalorder %s10, 3
    %p114 = pnand %p112, %p113
    %p115 = pneg %p114
    // Predicated region
    $region9: #{discriminator_forward.1} parent=5 // pred_check
      _
    $region10: #{discriminator_forward.1} parent=5 // pred_check_branch
      %117 = sbr.rel (%p114) target = $region12
    $region11: #{discriminator_forward.1} parent=5 // pred_region
      %s118 = ssub.s32 %s10, 1
      // Predicated region
      $region13: #{discriminator_forward.1} parent=11 // pred_check
        %p119 = pneg %p57
      $region14: #{discriminator_forward.1} parent=11 // pred_check_branch
        %121 = sbr.rel (%p119) target = $region16
      $region15: #{discriminator_forward.1} parent=11 // pred_region
        _
      $region16: #{discriminator_forward.1} parent=11 // pred_fallthru
        _
      // Predicated region
      $region17: #{discriminator_forward.1} parent=11 // pred_check
        %p122 = pneg %p78
      $region18: #{discriminator_forward.1} parent=11 // pred_check_branch
        %124 = sbr.rel (%p122) target = $region20
      $region19: #{discriminator_forward.1} parent=11 // pred_region
        _
      $region20: #{discriminator_forward.1} parent=11 // pred_fallthru
        _
    $region12: #{discriminator_forward.1} parent=5 // pred_fallthru
      _
    %p125 = scmp.lt.s32.totalorder %s10, 2
    // Predicated region
    $region21: #{discriminator_forward.1} parent=5 // pred_check
      %p126 = pneg %p125
    $region22: #{discriminator_forward.1} parent=5 // pred_check_branch
      %128 = sbr.rel (%p126) target = $region24
    $region23: #{discriminator_forward.1} parent=5 // pred_region
      // Predicated region
      $region25: #{discriminator_forward.1} parent=23 // pred_check
        %p129 = pneg %p30
      $region26: #{discriminator_forward.1} parent=23 // pred_check_branch
        %131 = sbr.rel (%p129) target = $region28
      $region27: #{discriminator_forward.1} parent=23 // pred_region
        %s132 = smul.u32 8, %s10
        %p133 = scmp.lt.s32.totalorder %s132, 15
        %s134 = scalar_select %p133, %s132, 15
        %s135 = smul.addr %s134, 56
        %s136 = smul.addr %s135, 8
        %s137 = scalar_lea.vmem %s0, %s136
        %s138 = smul.u32 8, %s10
      $region28: #{discriminator_forward.1} parent=23 // pred_fallthru
        _
    $region24: #{discriminator_forward.1} parent=5 // pred_fallthru
      _
    %p139 = scmp.le.s32.totalorder 1, %s10
    %p140 = scmp.lt.s32.totalorder %s10, 3
    %p141 = pnand %p139, %p140
    %p142 = pneg %p141
    // Predicated region
    $region29: #{discriminator_forward.1} parent=5 // pred_check
      _
    $region30: #{discriminator_forward.1} parent=5 // pred_check_branch
      %144 = sbr.rel (%p141) target = $region32
    $region31: #{discriminator_forward.1} parent=5 // pred_region
      %s145 = ssub.s32 %s10, 1
      %s146 = smul.u32 8, %s15
      %p147 = scmp.lt.s32.totalorder %s146, 15
      %s148 = scalar_select %p147, %s146, 15
      %s149 = smul.addr %s148, 56
      %s150 = smul.addr %s149, 8
      %s151 = scalar_lea.vmem %s0, %s150
      %p152 = pneg %p36
      %p153 = pneg %p33
      %p154 = pneg %p57
      %p155 = pneg %p54
      %p156 = pneg %p78
      %p157 = pneg %p75
      %p158 = pneg %p104
      %p159 = pneg %p101
      %s160 = smul.u32 8, %s15
      %p161 = scmp.lt.s32.totalorder %s160, 15
      %s162 = scalar_select %p161, %s160, 15
      %s163 = smul.addr %s162, 4
      %s164 = scalar_lea.vmem %s3, %s163
      %s165 = smul.u32 8, %s15
      %p166 = scmp.lt.s32.totalorder %s165, 15
      %s167 = scalar_select %p166, %s165, 15
      %s168 = smul.addr %s167, 56
      %s169 = smul.addr %s168, 8
      %s170 = scalar_lea.vmem %s0, %s169
      %s171 = smul.u32 8, %s15
      %s172 = smul.u32 8, %s15
      %p173 = scmp.lt.s32.totalorder %s172, 15
      %s174 = scalar_select %p173, %s172, 15
      %s175 = smul.addr %s174, 4
      %s176 = scalar_lea.vmem %s3, %s175
      %s177 = smul.u32 8, %s15
      %v178 = vld [vmem:[%s170] sm:$0xff]
      %v179 = vld [vmem:[%s170 + $0x8] sm:$0xff]
      %v180 = vld [vmem:[%s170 + $0x10] sm:$0xff]
      %v181 = vld [vmem:[%s170 + $0x18] sm:$0xff]
      %v182 = vld [vmem:[%s170 + $0x20] sm:$0xff]
      %v183 = vld [vmem:[%s170 + $0x28] sm:$0xff]
      %v184 = vld [vmem:[%s170 + $0x30] sm:$0xff]
      %v185 = vld [vmem:[%s170 + $0x38] sm:$0xff]
      %v186 = vld [vmem:[%s170 + $0x40] sm:$0xff]
      %v187 = vld [vmem:[%s170 + $0x48] sm:$0xff]
      %v188 = vld [vmem:[%s170 + $0x50] sm:$0xff]
      %v189 = vld [vmem:[%s170 + $0x58] sm:$0xff]
      %v190 = vld [vmem:[%s170 + $0x60] sm:$0xff]
      %v191 = vld [vmem:[%s170 + $0x68] sm:$0xff]
      %v192 = vld [vmem:[%s170 + $0x70] sm:$0xff]
      %v193 = vld [vmem:[%s170 + $0x78] sm:$0xff]
      %v194 = vld [vmem:[%s170 + $0x80] sm:$0xff]
      %v195 = vld [vmem:[%s170 + $0x88] sm:$0xff]
      %v196 = vld [vmem:[%s170 + $0x90] sm:$0xff]
      %v197 = vld [vmem:[%s170 + $0x98] sm:$0xff]
      %v198 = vld [vmem:[%s170 + $0xa0] sm:$0xff]
      %v199 = vld [vmem:[%s170 + $0xa8] sm:$0xff]
      %v200 = vld [vmem:[%s170 + $0xb0] sm:$0xff]
      %v201 = vld [vmem:[%s170 + $0xb8] sm:$0xff]
      %v202 = vld [vmem:[%s170 + $0xc0] sm:$0xff]
      %v203 = vld [vmem:[%s170 + $0xc8] sm:$0xff]
      %v204 = vld [vmem:[%s170 + $0xd0] sm:$0xff]
      %v205 = vld [vmem:[%s170 + $0xd8] sm:$0xff]
      %v206 = vld [vmem:[%s170 + $0xe0] sm:$0xff]
      %v207 = vld [vmem:[%s170 + $0xe8] sm:$0xff]
      %v208 = vld [vmem:[%s170 + $0xf0] sm:$0xff]
      %v209 = vld [vmem:[%s170 + $0xf8] sm:$0xff]
      %v210 = vld [vmem:[%s170 + $0x100] sm:$0xff]
      %v211 = vld [vmem:[%s170 + $0x108] sm:$0xff]
      %v212 = vld [vmem:[%s170 + $0x110] sm:$0xff]
      %v213 = vld [vmem:[%s170 + $0x118] sm:$0xff]
      %v214 = vld [vmem:[%s170 + $0x120] sm:$0xff]
      %v215 = vld [vmem:[%s170 + $0x128] sm:$0xff]
      %v216 = vld [vmem:[%s170 + $0x130] sm:$0xff]
      %v217 = vld [vmem:[%s170 + $0x138] sm:$0xff]
      %v218 = vld [vmem:[%s170 + $0x140] sm:$0xff]
      %v219 = vld [vmem:[%s170 + $0x148] sm:$0xff]
      %v220 = vld [vmem:[%s170 + $0x150] sm:$0xff]
      %v221 = vld [vmem:[%s170 + $0x158] sm:$0xff]
      %v222 = vld [vmem:[%s170 + $0x160] sm:$0xff]
      %v223 = vld [vmem:[%s170 + $0x168] sm:$0xff]
      %v224 = vld [vmem:[%s170 + $0x170] sm:$0xff]
      %v225 = vld [vmem:[%s170 + $0x178] sm:$0xff]
      %v226 = vld [vmem:[%s170 + $0x180] sm:$0x1]
      %v227 = vld [vmem:[%s170 + $0x188] sm:$0x1]
      %v228 = vld [vmem:[%s170 + $0x190] sm:$0x1]
      %v229 = vld [vmem:[%s170 + $0x198] sm:$0x1]
      %v230 = vld [vmem:[%s170 + $0x1a0] sm:$0x1]
      %v231 = vld [vmem:[%s170 + $0x1a8] sm:$0x1]
      %v232 = vld [vmem:[%s170 + $0x1b0] sm:$0x1]
      %v233 = vld [vmem:[%s170 + $0x1b8] sm:$0x1]
      %v234 = vld [vmem:[%s170 + $0x1c0] sm:$0xff]
      %v235 = vld [vmem:[%s170 + $0x1c8] sm:$0xff]
      %v236 = vld [vmem:[%s170 + $0x1d0] sm:$0xff]
      %v237 = vld [vmem:[%s170 + $0x1d8] sm:$0xff]
      %v238 = vld [vmem:[%s170 + $0x1e0] sm:$0xff]
      %v239 = vld [vmem:[%s170 + $0x1e8] sm:$0xff]
      %v240 = vld [vmem:[%s170 + $0x1f0] sm:$0xff]
      %v241 = vld [vmem:[%s170 + $0x1f8] sm:$0xff]
      %v242 = vld [vmem:[%s170 + $0x200] sm:$0xff]
      %v243 = vld [vmem:[%s170 + $0x208] sm:$0xff]
      %v244 = vld [vmem:[%s170 + $0x210] sm:$0xff]
      %v245 = vld [vmem:[%s170 + $0x218] sm:$0xff]
      %v246 = vld [vmem:[%s170 + $0x220] sm:$0xff]
      %v247 = vld [vmem:[%s170 + $0x228] sm:$0xff]
      %v248 = vld [vmem:[%s170 + $0x230] sm:$0xff]
      %v249 = vld [vmem:[%s170 + $0x238] sm:$0xff]
      %v250 = vld [vmem:[%s170 + $0x240] sm:$0xff]
      %v251 = vld [vmem:[%s170 + $0x248] sm:$0xff]
      %v252 = vld [vmem:[%s170 + $0x250] sm:$0xff]
      %v253 = vld [vmem:[%s170 + $0x258] sm:$0xff]
      %v254 = vld [vmem:[%s170 + $0x260] sm:$0xff]
      %v255 = vld [vmem:[%s170 + $0x268] sm:$0xff]
      %v256 = vld [vmem:[%s170 + $0x270] sm:$0xff]
      %v257 = vld [vmem:[%s170 + $0x278] sm:$0xff]
      %v258 = vld [vmem:[%s170 + $0x280] sm:$0xff]
      %v259 = vld [vmem:[%s170 + $0x288] sm:$0xff]
      %v260 = vld [vmem:[%s170 + $0x290] sm:$0xff]
      %v261 = vld [vmem:[%s170 + $0x298] sm:$0xff]
      %v262 = vld [vmem:[%s170 + $0x2a0] sm:$0xff]
      %v263 = vld [vmem:[%s170 + $0x2a8] sm:$0xff]
      %v264 = vld [vmem:[%s170 + $0x2b0] sm:$0xff]
      %v265 = vld [vmem:[%s170 + $0x2b8] sm:$0xff]
      %v266 = vld [vmem:[%s170 + $0x2c0] sm:$0xff]
      %v267 = vld [vmem:[%s170 + $0x2c8] sm:$0xff]
      %v268 = vld [vmem:[%s170 + $0x2d0] sm:$0xff]
      %v269 = vld [vmem:[%s170 + $0x2d8] sm:$0xff]
      %v270 = vld [vmem:[%s170 + $0x2e0] sm:$0xff]
      %v271 = vld [vmem:[%s170 + $0x2e8] sm:$0xff]
      %v272 = vld [vmem:[%s170 + $0x2f0] sm:$0xff]
      %v273 = vld [vmem:[%s170 + $0x2f8] sm:$0xff]
      %v274 = vld [vmem:[%s170 + $0x300] sm:$0xff]
      %v275 = vld [vmem:[%s170 + $0x308] sm:$0xff]
      %v276 = vld [vmem:[%s170 + $0x310] sm:$0xff]
      %v277 = vld [vmem:[%s170 + $0x318] sm:$0xff]
      %v278 = vld [vmem:[%s170 + $0x320] sm:$0xff]
      %v279 = vld [vmem:[%s170 + $0x328] sm:$0xff]
      %v280 = vld [vmem:[%s170 + $0x330] sm:$0xff]
      %v281 = vld [vmem:[%s170 + $0x338] sm:$0xff]
      %v282 = vld [vmem:[%s170 + $0x340] sm:$0x1]
      %v283 = vld [vmem:[%s170 + $0x348] sm:$0x1]
      %v284 = vld [vmem:[%s170 + $0x350] sm:$0x1]
      %v285 = vld [vmem:[%s170 + $0x358] sm:$0x1]
      %v286 = vld [vmem:[%s170 + $0x360] sm:$0x1]
      %v287 = vld [vmem:[%s170 + $0x368] sm:$0x1]
      %v288 = vld [vmem:[%s170 + $0x370] sm:$0x1]
      %v289 = vld [vmem:[%s170 + $0x378] sm:$0x1]
      %v290 = vld [vmem:[%s170 + $0x380] sm:$0xff]
      %v291 = vld [vmem:[%s170 + $0x388] sm:$0xff]
      %v292 = vld [vmem:[%s170 + $0x390] sm:$0xff]
      %v293 = vld [vmem:[%s170 + $0x398] sm:$0xff]
      %v294 = vld [vmem:[%s170 + $0x3a0] sm:$0xff]
      %v295 = vld [vmem:[%s170 + $0x3a8] sm:$0xff]
      %v296 = vld [vmem:[%s170 + $0x3b0] sm:$0xff]
      %v297 = vld [vmem:[%s170 + $0x3b8] sm:$0xff]
      %v298 = vld [vmem:[%s170 + $0x3c0] sm:$0xff]
      %v299 = vld [vmem:[%s170 + $0x3c8] sm:$0xff]
      %v300 = vld [vmem:[%s170 + $0x3d0] sm:$0xff]
      %v301 = vld [vmem:[%s170 + $0x3d8] sm:$0xff]
      %v302 = vld [vmem:[%s170 + $0x3e0] sm:$0xff]
      %v303 = vld [vmem:[%s170 + $0x3e8] sm:$0xff]
      %v304 = vld [vmem:[%s170 + $0x3f0] sm:$0xff]
      %v305 = vld [vmem:[%s170 + $0x3f8] sm:$0xff]
      %v306 = vld [vmem:[%s170 + $0x400] sm:$0xff]
      %v307 = vld [vmem:[%s170 + $0x408] sm:$0xff]
      %v308 = vld [vmem:[%s170 + $0x410] sm:$0xff]
      %v309 = vld [vmem:[%s170 + $0x418] sm:$0xff]
      %v310 = vld [vmem:[%s170 + $0x420] sm:$0xff]
      %v311 = vld [vmem:[%s170 + $0x428] sm:$0xff]
      %v312 = vld [vmem:[%s170 + $0x430] sm:$0xff]
      %v313 = vld [vmem:[%s170 + $0x438] sm:$0xff]
      %v314 = vld [vmem:[%s170 + $0x440] sm:$0xff]
      %v315 = vld [vmem:[%s170 + $0x448] sm:$0xff]
      %v316 = vld [vmem:[%s170 + $0x450] sm:$0xff]
      %v317 = vld [vmem:[%s170 + $0x458] sm:$0xff]
      %v318 = vld [vmem:[%s170 + $0x460] sm:$0xff]
      %v319 = vld [vmem:[%s170 + $0x468] sm:$0xff]
      %v320 = vld [vmem:[%s170 + $0x470] sm:$0xff]
      %v321 = vld [vmem:[%s170 + $0x478] sm:$0xff]
      %v322 = vld [vmem:[%s170 + $0x480] sm:$0xff]
      %v323 = vld [vmem:[%s170 + $0x488] sm:$0xff]
      %v324 = vld [vmem:[%s170 + $0x490] sm:$0xff]
      %v325 = vld [vmem:[%s170 + $0x498] sm:$0xff]
      %v326 = vld [vmem:[%s170 + $0x4a0] sm:$0xff]
      %v327 = vld [vmem:[%s170 + $0x4a8] sm:$0xff]
      %v328 = vld [vmem:[%s170 + $0x4b0] sm:$0xff]
      %v329 = vld [vmem:[%s170 + $0x4b8] sm:$0xff]
      %v330 = vld [vmem:[%s170 + $0x4c0] sm:$0xff]
      %v331 = vld [vmem:[%s170 + $0x4c8] sm:$0xff]
      %v332 = vld [vmem:[%s170 + $0x4d0] sm:$0xff]
      %v333 = vld [vmem:[%s170 + $0x4d8] sm:$0xff]
      %v334 = vld [vmem:[%s170 + $0x4e0] sm:$0xff]
      %v335 = vld [vmem:[%s170 + $0x4e8] sm:$0xff]
      %v336 = vld [vmem:[%s170 + $0x4f0] sm:$0xff]
      %v337 = vld [vmem:[%s170 + $0x4f8] sm:$0xff]
      %v338 = vld [vmem:[%s170 + $0x500] sm:$0x1]
      %v339 = vld [vmem:[%s170 + $0x508] sm:$0x1]
      %v340 = vld [vmem:[%s170 + $0x510] sm:$0x1]
      %v341 = vld [vmem:[%s170 + $0x518] sm:$0x1]
      %v342 = vld [vmem:[%s170 + $0x520] sm:$0x1]
      %v343 = vld [vmem:[%s170 + $0x528] sm:$0x1]
      %v344 = vld [vmem:[%s170 + $0x530] sm:$0x1]
      %v345 = vld [vmem:[%s170 + $0x538] sm:$0x1]
      %v346 = vld [vmem:[%s170 + $0x540] sm:$0xff]
      %v347 = vld [vmem:[%s170 + $0x548] sm:$0xff]
      %v348 = vld [vmem:[%s170 + $0x550] sm:$0xff]
      %v349 = vld [vmem:[%s170 + $0x558] sm:$0xff]
      %v350 = vld [vmem:[%s170 + $0x560] sm:$0xff]
      %v351 = vld [vmem:[%s170 + $0x568] sm:$0xff]
      %v352 = vld [vmem:[%s170 + $0x570] sm:$0xff]
      %v353 = vld [vmem:[%s170 + $0x578] sm:$0xff]
      %v354 = vld [vmem:[%s170 + $0x580] sm:$0xff]
      %v355 = vld [vmem:[%s170 + $0x588] sm:$0xff]
      %v356 = vld [vmem:[%s170 + $0x590] sm:$0xff]
      %v357 = vld [vmem:[%s170 + $0x598] sm:$0xff]
      %v358 = vld [vmem:[%s170 + $0x5a0] sm:$0xff]
      %v359 = vld [vmem:[%s170 + $0x5a8] sm:$0xff]
      %v360 = vld [vmem:[%s170 + $0x5b0] sm:$0xff]
      %v361 = vld [vmem:[%s170 + $0x5b8] sm:$0xff]
      %v362 = vld [vmem:[%s170 + $0x5c0] sm:$0xff]
      %v363 = vld [vmem:[%s170 + $0x5c8] sm:$0xff]
      %v364 = vld [vmem:[%s170 + $0x5d0] sm:$0xff]
      %v365 = vld [vmem:[%s170 + $0x5d8] sm:$0xff]
      %v366 = vld [vmem:[%s170 + $0x5e0] sm:$0xff]
      %v367 = vld [vmem:[%s170 + $0x5e8] sm:$0xff]
      %v368 = vld [vmem:[%s170 + $0x5f0] sm:$0xff]
      %v369 = vld [vmem:[%s170 + $0x5f8] sm:$0xff]
      %v370 = vld [vmem:[%s170 + $0x600] sm:$0xff]
      %v371 = vld [vmem:[%s170 + $0x608] sm:$0xff]
      %v372 = vld [vmem:[%s170 + $0x610] sm:$0xff]
      %v373 = vld [vmem:[%s170 + $0x618] sm:$0xff]
      %v374 = vld [vmem:[%s170 + $0x620] sm:$0xff]
      %v375 = vld [vmem:[%s170 + $0x628] sm:$0xff]
      %v376 = vld [vmem:[%s170 + $0x630] sm:$0xff]
      %v377 = vld [vmem:[%s170 + $0x638] sm:$0xff]
      %v378 = vld [vmem:[%s170 + $0x640] sm:$0xff]
      %v379 = vld [vmem:[%s170 + $0x648] sm:$0xff]
      %v380 = vld [vmem:[%s170 + $0x650] sm:$0xff]
      %v381 = vld [vmem:[%s170 + $0x658] sm:$0xff]
      %v382 = vld [vmem:[%s170 + $0x660] sm:$0xff]
      %v383 = vld [vmem:[%s170 + $0x668] sm:$0xff]
      %v384 = vld [vmem:[%s170 + $0x670] sm:$0xff]
      %v385 = vld [vmem:[%s170 + $0x678] sm:$0xff]
      %v386 = vld [vmem:[%s170 + $0x680] sm:$0xff]
      %v387 = vld [vmem:[%s170 + $0x688] sm:$0xff]
      %v388 = vld [vmem:[%s170 + $0x690] sm:$0xff]
      %v389 = vld [vmem:[%s170 + $0x698] sm:$0xff]
      %v390 = vld [vmem:[%s170 + $0x6a0] sm:$0xff]
      %v391 = vld [vmem:[%s170 + $0x6a8] sm:$0xff]
      %v392 = vld [vmem:[%s170 + $0x6b0] sm:$0xff]
      %v393 = vld [vmem:[%s170 + $0x6b8] sm:$0xff]
      %v394 = vld [vmem:[%s170 + $0x6c0] sm:$0x1]
      %v395 = vld [vmem:[%s170 + $0x6c8] sm:$0x1]
      %v396 = vld [vmem:[%s170 + $0x6d0] sm:$0x1]
      %v397 = vld [vmem:[%s170 + $0x6d8] sm:$0x1]
      %v398 = vld [vmem:[%s170 + $0x6e0] sm:$0x1]
      %v399 = vld [vmem:[%s170 + $0x6e8] sm:$0x1]
      %v400 = vld [vmem:[%s170 + $0x6f0] sm:$0x1]
      %v401 = vld [vmem:[%s170 + $0x6f8] sm:$0x1]
      %v402 = vld [vmem:[%s170 + $0x700] sm:$0xff]
      %v403 = vld [vmem:[%s170 + $0x708] sm:$0xff]
      %v404 = vld [vmem:[%s170 + $0x710] sm:$0xff]
      %v405 = vld [vmem:[%s170 + $0x718] sm:$0xff]
      %v406 = vld [vmem:[%s170 + $0x720] sm:$0xff]
      %v407 = vld [vmem:[%s170 + $0x728] sm:$0xff]
      %v408 = vld [vmem:[%s170 + $0x730] sm:$0xff]
      %v409 = vld [vmem:[%s170 + $0x738] sm:$0xff]
      %v410 = vld [vmem:[%s170 + $0x740] sm:$0xff]
      %v411 = vld [vmem:[%s170 + $0x748] sm:$0xff]
      %v412 = vld [vmem:[%s170 + $0x750] sm:$0xff]
      %v413 = vld [vmem:[%s170 + $0x758] sm:$0xff]
      %v414 = vld [vmem:[%s170 + $0x760] sm:$0xff]
      %v415 = vld [vmem:[%s170 + $0x768] sm:$0xff]
      %v416 = vld [vmem:[%s170 + $0x770] sm:$0xff]
      %v417 = vld [vmem:[%s170 + $0x778] sm:$0xff]
      %v418 = vld [vmem:[%s170 + $0x780] sm:$0xff]
      %v419 = vld [vmem:[%s170 + $0x788] sm:$0xff]
      %v420 = vld [vmem:[%s170 + $0x790] sm:$0xff]
      %v421 = vld [vmem:[%s170 + $0x798] sm:$0xff]
      %v422 = vld [vmem:[%s170 + $0x7a0] sm:$0xff]
      %v423 = vld [vmem:[%s170 + $0x7a8] sm:$0xff]
      %v424 = vld [vmem:[%s170 + $0x7b0] sm:$0xff]
      %v425 = vld [vmem:[%s170 + $0x7b8] sm:$0xff]
      %v426 = vld [vmem:[%s170 + $0x7c0] sm:$0xff]
      %v427 = vld [vmem:[%s170 + $0x7c8] sm:$0xff]
      %v428 = vld [vmem:[%s170 + $0x7d0] sm:$0xff]
      %v429 = vld [vmem:[%s170 + $0x7d8] sm:$0xff]
      %v430 = vld [vmem:[%s170 + $0x7e0] sm:$0xff]
      %v431 = vld [vmem:[%s170 + $0x7e8] sm:$0xff]
      %v432 = vld [vmem:[%s170 + $0x7f0] sm:$0xff]
      %v433 = vld [vmem:[%s170 + $0x7f8] sm:$0xff]
      %v434 = vld [vmem:[%s170 + $0x800] sm:$0xff]
      %v435 = vld [vmem:[%s170 + $0x808] sm:$0xff]
      %v436 = vld [vmem:[%s170 + $0x810] sm:$0xff]
      %v437 = vld [vmem:[%s170 + $0x818] sm:$0xff]
      %v438 = vld [vmem:[%s170 + $0x820] sm:$0xff]
      %v439 = vld [vmem:[%s170 + $0x828] sm:$0xff]
      %v440 = vld [vmem:[%s170 + $0x830] sm:$0xff]
      %v441 = vld [vmem:[%s170 + $0x838] sm:$0xff]
      %v442 = vld [vmem:[%s170 + $0x840] sm:$0xff]
      %v443 = vld [vmem:[%s170 + $0x848] sm:$0xff]
      %v444 = vld [vmem:[%s170 + $0x850] sm:$0xff]
      %v445 = vld [vmem:[%s170 + $0x858] sm:$0xff]
      %v446 = vld [vmem:[%s170 + $0x860] sm:$0xff]
      %v447 = vld [vmem:[%s170 + $0x868] sm:$0xff]
      %v448 = vld [vmem:[%s170 + $0x870] sm:$0xff]
      %v449 = vld [vmem:[%s170 + $0x878] sm:$0xff]
      %v450 = vld [vmem:[%s170 + $0x880] sm:$0x1]
      %v451 = vld [vmem:[%s170 + $0x888] sm:$0x1]
      %v452 = vld [vmem:[%s170 + $0x890] sm:$0x1]
      %v453 = vld [vmem:[%s170 + $0x898] sm:$0x1]
      %v454 = vld [vmem:[%s170 + $0x8a0] sm:$0x1]
      %v455 = vld [vmem:[%s170 + $0x8a8] sm:$0x1]
      %v456 = vld [vmem:[%s170 + $0x8b0] sm:$0x1]
      %v457 = vld [vmem:[%s170 + $0x8b8] sm:$0x1]
      %v458 = vld [vmem:[%s170 + $0x8c0] sm:$0xff]
      %v459 = vld [vmem:[%s170 + $0x8c8] sm:$0xff]
      %v460 = vld [vmem:[%s170 + $0x8d0] sm:$0xff]
      %v461 = vld [vmem:[%s170 + $0x8d8] sm:$0xff]
      %v462 = vld [vmem:[%s170 + $0x8e0] sm:$0xff]
      %v463 = vld [vmem:[%s170 + $0x8e8] sm:$0xff]
      %v464 = vld [vmem:[%s170 + $0x8f0] sm:$0xff]
      %v465 = vld [vmem:[%s170 + $0x8f8] sm:$0xff]
      %v466 = vld [vmem:[%s170 + $0x900] sm:$0xff]
      %v467 = vld [vmem:[%s170 + $0x908] sm:$0xff]
      %v468 = vld [vmem:[%s170 + $0x910] sm:$0xff]
      %v469 = vld [vmem:[%s170 + $0x918] sm:$0xff]
      %v470 = vld [vmem:[%s170 + $0x920] sm:$0xff]
      %v471 = vld [vmem:[%s170 + $0x928] sm:$0xff]
      %v472 = vld [vmem:[%s170 + $0x930] sm:$0xff]
      %v473 = vld [vmem:[%s170 + $0x938] sm:$0xff]
      %v474 = vld [vmem:[%s170 + $0x940] sm:$0xff]
      %v475 = vld [vmem:[%s170 + $0x948] sm:$0xff]
      %v476 = vld [vmem:[%s170 + $0x950] sm:$0xff]
      %v477 = vld [vmem:[%s170 + $0x958] sm:$0xff]
      %v478 = vld [vmem:[%s170 + $0x960] sm:$0xff]
      %v479 = vld [vmem:[%s170 + $0x968] sm:$0xff]
      %v480 = vld [vmem:[%s170 + $0x970] sm:$0xff]
      %v481 = vld [vmem:[%s170 + $0x978] sm:$0xff]
      %v482 = vld [vmem:[%s170 + $0x980] sm:$0xff]
      %v483 = vld [vmem:[%s170 + $0x988] sm:$0xff]
      %v484 = vld [vmem:[%s170 + $0x990] sm:$0xff]
      %v485 = vld [vmem:[%s170 + $0x998] sm:$0xff]
      %v486 = vld [vmem:[%s170 + $0x9a0] sm:$0xff]
      %v487 = vld [vmem:[%s170 + $0x9a8] sm:$0xff]
      %v488 = vld [vmem:[%s170 + $0x9b0] sm:$0xff]
      %v489 = vld [vmem:[%s170 + $0x9b8] sm:$0xff]
      %v490 = vld [vmem:[%s170 + $0x9c0] sm:$0xff]
      %v491 = vld [vmem:[%s170 + $0x9c8] sm:$0xff]
      %v492 = vld [vmem:[%s170 + $0x9d0] sm:$0xff]
      %v493 = vld [vmem:[%s170 + $0x9d8] sm:$0xff]
      %v494 = vld [vmem:[%s170 + $0x9e0] sm:$0xff]
      %v495 = vld [vmem:[%s170 + $0x9e8] sm:$0xff]
      %v496 = vld [vmem:[%s170 + $0x9f0] sm:$0xff]
      %v497 = vld [vmem:[%s170 + $0x9f8] sm:$0xff]
      %v498 = vld [vmem:[%s170 + $0xa00] sm:$0xff]
      %v499 = vld [vmem:[%s170 + $0xa08] sm:$0xff]
      %v500 = vld [vmem:[%s170 + $0xa10] sm:$0xff]
      %v501 = vld [vmem:[%s170 + $0xa18] sm:$0xff]
      %v502 = vld [vmem:[%s170 + $0xa20] sm:$0xff]
      %v503 = vld [vmem:[%s170 + $0xa28] sm:$0xff]
      %v504 = vld [vmem:[%s170 + $0xa30] sm:$0xff]
      %v505 = vld [vmem:[%s170 + $0xa38] sm:$0xff]
      %v506 = vld [vmem:[%s170 + $0xa40] sm:$0x1]
      %v507 = vld [vmem:[%s170 + $0xa48] sm:$0x1]
      %v508 = vld [vmem:[%s170 + $0xa50] sm:$0x1]
      %v509 = vld [vmem:[%s170 + $0xa58] sm:$0x1]
      %v510 = vld [vmem:[%s170 + $0xa60] sm:$0x1]
      %v511 = vld [vmem:[%s170 + $0xa68] sm:$0x1]
      %v512 = vld [vmem:[%s170 + $0xa70] sm:$0x1]
      %v513 = vld [vmem:[%s170 + $0xa78] sm:$0x1]
      %v514 = vld [vmem:[%s170 + $0xa80] sm:$0xff]
      %v515 = vld [vmem:[%s170 + $0xa88] sm:$0xff]
      %v516 = vld [vmem:[%s170 + $0xa90] sm:$0xff]
      %v517 = vld [vmem:[%s170 + $0xa98] sm:$0xff]
      %v518 = vld [vmem:[%s170 + $0xaa0] sm:$0xff]
      %v519 = vld [vmem:[%s170 + $0xaa8] sm:$0xff]
      %v520 = vld [vmem:[%s170 + $0xab0] sm:$0xff]
      %v521 = vld [vmem:[%s170 + $0xab8] sm:$0xff]
      %v522 = vld [vmem:[%s170 + $0xac0] sm:$0xff]
      %v523 = vld [vmem:[%s170 + $0xac8] sm:$0xff]
      %v524 = vld [vmem:[%s170 + $0xad0] sm:$0xff]
      %v525 = vld [vmem:[%s170 + $0xad8] sm:$0xff]
      %v526 = vld [vmem:[%s170 + $0xae0] sm:$0xff]
      %v527 = vld [vmem:[%s170 + $0xae8] sm:$0xff]
      %v528 = vld [vmem:[%s170 + $0xaf0] sm:$0xff]
      %v529 = vld [vmem:[%s170 + $0xaf8] sm:$0xff]
      %v530 = vld [vmem:[%s170 + $0xb00] sm:$0xff]
      %v531 = vld [vmem:[%s170 + $0xb08] sm:$0xff]
      %v532 = vld [vmem:[%s170 + $0xb10] sm:$0xff]
      %v533 = vld [vmem:[%s170 + $0xb18] sm:$0xff]
      %v534 = vld [vmem:[%s170 + $0xb20] sm:$0xff]
      %v535 = vld [vmem:[%s170 + $0xb28] sm:$0xff]
      %v536 = vld [vmem:[%s170 + $0xb30] sm:$0xff]
      %v537 = vld [vmem:[%s170 + $0xb38] sm:$0xff]
      %v538 = vld [vmem:[%s170 + $0xb40] sm:$0xff]
      %v539 = vld [vmem:[%s170 + $0xb48] sm:$0xff]
      %v540 = vld [vmem:[%s170 + $0xb50] sm:$0xff]
      %v541 = vld [vmem:[%s170 + $0xb58] sm:$0xff]
      %v542 = vld [vmem:[%s170 + $0xb60] sm:$0xff]
      %v543 = vld [vmem:[%s170 + $0xb68] sm:$0xff]
      %v544 = vld [vmem:[%s170 + $0xb70] sm:$0xff]
      %v545 = vld [vmem:[%s170 + $0xb78] sm:$0xff]
      %v546 = vld [vmem:[%s170 + $0xb80] sm:$0xff]
      %v547 = vld [vmem:[%s170 + $0xb88] sm:$0xff]
      %v548 = vld [vmem:[%s170 + $0xb90] sm:$0xff]
      %v549 = vld [vmem:[%s170 + $0xb98] sm:$0xff]
      %v550 = vld [vmem:[%s170 + $0xba0] sm:$0xff]
      %v551 = vld [vmem:[%s170 + $0xba8] sm:$0xff]
      %v552 = vld [vmem:[%s170 + $0xbb0] sm:$0xff]
      %v553 = vld [vmem:[%s170 + $0xbb8] sm:$0xff]
      %v554 = vld [vmem:[%s170 + $0xbc0] sm:$0xff]
      %v555 = vld [vmem:[%s170 + $0xbc8] sm:$0xff]
      %v556 = vld [vmem:[%s170 + $0xbd0] sm:$0xff]
      %v557 = vld [vmem:[%s170 + $0xbd8] sm:$0xff]
      %v558 = vld [vmem:[%s170 + $0xbe0] sm:$0xff]
      %v559 = vld [vmem:[%s170 + $0xbe8] sm:$0xff]
      %v560 = vld [vmem:[%s170 + $0xbf0] sm:$0xff]
      %v561 = vld [vmem:[%s170 + $0xbf8] sm:$0xff]
      %v562 = vld [vmem:[%s170 + $0xc00] sm:$0x1]
      %v563 = vld [vmem:[%s170 + $0xc08] sm:$0x1]
      %v564 = vld [vmem:[%s170 + $0xc10] sm:$0x1]
      %v565 = vld [vmem:[%s170 + $0xc18] sm:$0x1]
      %v566 = vld [vmem:[%s170 + $0xc20] sm:$0x1]
      %v567 = vld [vmem:[%s170 + $0xc28] sm:$0x1]
      %v568 = vld [vmem:[%s170 + $0xc30] sm:$0x1]
      %v569 = vld [vmem:[%s170 + $0xc38] sm:$0x1]
      %v570 = vld [vmem:[%s170 + $0xc40] sm:$0xff]
      %v571 = vld [vmem:[%s170 + $0xc48] sm:$0xff]
      %v572 = vld [vmem:[%s170 + $0xc50] sm:$0xff]
      %v573 = vld [vmem:[%s170 + $0xc58] sm:$0xff]
      %v574 = vld [vmem:[%s170 + $0xc60] sm:$0xff]
      %v575 = vld [vmem:[%s170 + $0xc68] sm:$0xff]
      %v576 = vld [vmem:[%s170 + $0xc70] sm:$0xff]
      %v577 = vld [vmem:[%s170 + $0xc78] sm:$0xff]
      %v578 = vld [vmem:[%s170 + $0xc80] sm:$0xff]
      %v579 = vld [vmem:[%s170 + $0xc88] sm:$0xff]
      %v580 = vld [vmem:[%s170 + $0xc90] sm:$0xff]
      %v581 = vld [vmem:[%s170 + $0xc98] sm:$0xff]
      %v582 = vld [vmem:[%s170 + $0xca0] sm:$0xff]
      %v583 = vld [vmem:[%s170 + $0xca8] sm:$0xff]
      %v584 = vld [vmem:[%s170 + $0xcb0] sm:$0xff]
      %v585 = vld [vmem:[%s170 + $0xcb8] sm:$0xff]
      %v586 = vld [vmem:[%s170 + $0xcc0] sm:$0xff]
      %v587 = vld [vmem:[%s170 + $0xcc8] sm:$0xff]
      %v588 = vld [vmem:[%s170 + $0xcd0] sm:$0xff]
      %v589 = vld [vmem:[%s170 + $0xcd8] sm:$0xff]
      %v590 = vld [vmem:[%s170 + $0xce0] sm:$0xff]
      %v591 = vld [vmem:[%s170 + $0xce8] sm:$0xff]
      %v592 = vld [vmem:[%s170 + $0xcf0] sm:$0xff]
      %v593 = vld [vmem:[%s170 + $0xcf8] sm:$0xff]
      %v594 = vld [vmem:[%s170 + $0xd00] sm:$0xff]
      %v595 = vld [vmem:[%s170 + $0xd08] sm:$0xff]
      %v596 = vld [vmem:[%s170 + $0xd10] sm:$0xff]
      %v597 = vld [vmem:[%s170 + $0xd18] sm:$0xff]
      %v598 = vld [vmem:[%s170 + $0xd20] sm:$0xff]
      %v599 = vld [vmem:[%s170 + $0xd28] sm:$0xff]
      %v600 = vld [vmem:[%s170 + $0xd30] sm:$0xff]
      %v601 = vld [vmem:[%s170 + $0xd38] sm:$0xff]
      %v602 = vld [vmem:[%s170 + $0xd40] sm:$0xff]
      %v603 = vld [vmem:[%s170 + $0xd48] sm:$0xff]
      %v604 = vld [vmem:[%s170 + $0xd50] sm:$0xff]
      %v605 = vld [vmem:[%s170 + $0xd58] sm:$0xff]
      %v606 = vld [vmem:[%s170 + $0xd60] sm:$0xff]
      %v607 = vld [vmem:[%s170 + $0xd68] sm:$0xff]
      %v608 = vld [vmem:[%s170 + $0xd70] sm:$0xff]
      %v609 = vld [vmem:[%s170 + $0xd78] sm:$0xff]
      %v610 = vld [vmem:[%s170 + $0xd80] sm:$0xff]
      %v611 = vld [vmem:[%s170 + $0xd88] sm:$0xff]
      %v612 = vld [vmem:[%s170 + $0xd90] sm:$0xff]
      %v613 = vld [vmem:[%s170 + $0xd98] sm:$0xff]
      %v614 = vld [vmem:[%s170 + $0xda0] sm:$0xff]
      %v615 = vld [vmem:[%s170 + $0xda8] sm:$0xff]
      %v616 = vld [vmem:[%s170 + $0xdb0] sm:$0xff]
      %v617 = vld [vmem:[%s170 + $0xdb8] sm:$0xff]
      %v618 = vld [vmem:[%s170 + $0xdc0] sm:$0x1]
      %v619 = vld [vmem:[%s170 + $0xdc8] sm:$0x1]
      %v620 = vld [vmem:[%s170 + $0xdd0] sm:$0x1]
      %v621 = vld [vmem:[%s170 + $0xdd8] sm:$0x1]
      %v622 = vld [vmem:[%s170 + $0xde0] sm:$0x1]
      %v623 = vld [vmem:[%s170 + $0xde8] sm:$0x1]
      %v624 = vld [vmem:[%s170 + $0xdf0] sm:$0x1]
      %v625 = vld [vmem:[%s170 + $0xdf8] sm:$0x1]
      %v626 = vld [vmem:[%s1] sm:$0xff]
      %v627 = vld [vmem:[%s1 + $0x8] sm:$0xff]
      %v628 = vld [vmem:[%s1 + $0x10] sm:$0xff]
      %v629 = vld [vmem:[%s1 + $0x18] sm:$0xff]
      %v630 = vld [vmem:[%s1 + $0x20] sm:$0xff]
      %v631 = vld [vmem:[%s1 + $0x28] sm:$0xff]
      %v632 = vld [vmem:[%s1 + $0x30] sm:$0xff]
      %v633 = vld [vmem:[%s1 + $0x38] sm:$0xff]
      %v634 = vld [vmem:[%s1 + $0x40] sm:$0xff]
      %v635 = vld [vmem:[%s1 + $0x48] sm:$0xff]
      %v636 = vld [vmem:[%s1 + $0x50] sm:$0xff]
      %v637 = vld [vmem:[%s1 + $0x58] sm:$0xff]
      %v638 = vld [vmem:[%s1 + $0x60] sm:$0xff]
      %v639 = vld [vmem:[%s1 + $0x68] sm:$0xff]
      %v640 = vld [vmem:[%s1 + $0x70] sm:$0xff]
      %v641 = vld [vmem:[%s1 + $0x78] sm:$0xff]
      %642 = vmatpush.xpose.msra.mxu0 0.0
      %643 = vmatpush.xpose.msra.mxu0 0.0
      %644 = vmatpush.xpose.msra.mxu0 0.0
      %645 = vmatpush.xpose.msra.mxu0 0.0
      %646 = vmatpush.xpose.msra.mxu0 0.0
      %647 = vmatpush.xpose.msra.mxu0 0.0
      %648 = vmatpush.xpose.msra.mxu0 0.0
      %649 = vmatpush.xpose.msra.mxu0 0.0
      %650 = vmatpush.xpose.msra.mxu0 0.0
      %651 = vmatpush.xpose.msra.mxu0 %v226
      %652 = vmatpush.xpose.msra.mxu0 %v218
      %653 = vmatpush.xpose.msra.mxu0 %v210
      %654 = vmatpush.xpose.msra.mxu0 %v202
      %655 = vmatpush.xpose.msra.mxu0 %v194
      %656 = vmatpush.xpose.msra.mxu0 %v186
      %657 = vmatpush.xpose.msra.mxu0 %v178
      %658 = vmatmul.f32.gmra.mxu0 %v626
      %v659 = vpop.f32.mrf.mxu0
      %v660 = vadd.f32 0.0, %v659
      %661 = vmatmul.f32.gmra.mxu0 %v634
      %v662 = vpop.f32.mrf.mxu0
      %v663 = vadd.f32 0.0, %v662
      %664 = vdwg.mxu0
      %665 = vmatpush.xpose.msra.mxu0 0.0
      %666 = vmatpush.xpose.msra.mxu0 0.0
      %667 = vmatpush.xpose.msra.mxu0 0.0
      %668 = vmatpush.xpose.msra.mxu0 0.0
      %669 = vmatpush.xpose.msra.mxu0 0.0
      %670 = vmatpush.xpose.msra.mxu0 0.0
      %671 = vmatpush.xpose.msra.mxu0 0.0
      %672 = vmatpush.xpose.msra.mxu0 0.0
      %673 = vmatpush.xpose.msra.mxu0 0.0
      %674 = vmatpush.xpose.msra.mxu0 %v227
      %675 = vmatpush.xpose.msra.mxu0 %v219
      %676 = vmatpush.xpose.msra.mxu0 %v211
      %677 = vmatpush.xpose.msra.mxu0 %v203
      %678 = vmatpush.xpose.msra.mxu0 %v195
      %679 = vmatpush.xpose.msra.mxu0 %v187
      %680 = vmatpush.xpose.msra.mxu0 %v179
      %681 = vmatmul.f32.gmra.mxu0 %v627
      %v682 = vpop.f32.mrf.mxu0
      %v683 = vadd.f32 %v660, %v682
      %684 = vmatmul.f32.gmra.mxu0 %v635
      %v685 = vpop.f32.mrf.mxu0
      %v686 = vadd.f32 %v663, %v685
      %687 = vdwg.mxu0
      %688 = vmatpush.xpose.msra.mxu0 0.0
      %689 = vmatpush.xpose.msra.mxu0 0.0
      %690 = vmatpush.xpose.msra.mxu0 0.0
      %691 = vmatpush.xpose.msra.mxu0 0.0
      %692 = vmatpush.xpose.msra.mxu0 0.0
      %693 = vmatpush.xpose.msra.mxu0 0.0
      %694 = vmatpush.xpose.msra.mxu0 0.0
      %695 = vmatpush.xpose.msra.mxu0 0.0
      %696 = vmatpush.xpose.msra.mxu0 0.0
      %697 = vmatpush.xpose.msra.mxu0 %v228
      %698 = vmatpush.xpose.msra.mxu0 %v220
      %699 = vmatpush.xpose.msra.mxu0 %v212
      %700 = vmatpush.xpose.msra.mxu0 %v204
      %701 = vmatpush.xpose.msra.mxu0 %v196
      %702 = vmatpush.xpose.msra.mxu0 %v188
      %703 = vmatpush.xpose.msra.mxu0 %v180
      %704 = vmatmul.f32.gmra.mxu0 %v628
      %v705 = vpop.f32.mrf.mxu0
      %v706 = vadd.f32 %v683, %v705
      %707 = vmatmul.f32.gmra.mxu0 %v636
      %v708 = vpop.f32.mrf.mxu0
      %v709 = vadd.f32 %v686, %v708
      %710 = vdwg.mxu0
      %711 = vmatpush.xpose.msra.mxu0 0.0
      %712 = vmatpush.xpose.msra.mxu0 0.0
      %713 = vmatpush.xpose.msra.mxu0 0.0
      %714 = vmatpush.xpose.msra.mxu0 0.0
      %715 = vmatpush.xpose.msra.mxu0 0.0
      %716 = vmatpush.xpose.msra.mxu0 0.0
      %717 = vmatpush.xpose.msra.mxu0 0.0
      %718 = vmatpush.xpose.msra.mxu0 0.0
      %719 = vmatpush.xpose.msra.mxu0 0.0
      %720 = vmatpush.xpose.msra.mxu0 %v229
      %721 = vmatpush.xpose.msra.mxu0 %v221
      %722 = vmatpush.xpose.msra.mxu0 %v213
      %723 = vmatpush.xpose.msra.mxu0 %v205
      %724 = vmatpush.xpose.msra.mxu0 %v197
      %725 = vmatpush.xpose.msra.mxu0 %v189
      %726 = vmatpush.xpose.msra.mxu0 %v181
      %727 = vmatmul.f32.gmra.mxu0 %v629
      %v728 = vpop.f32.mrf.mxu0
      %v729 = vadd.f32 %v706, %v728
      %730 = vmatmul.f32.gmra.mxu0 %v637
      %v731 = vpop.f32.mrf.mxu0
      %v732 = vadd.f32 %v709, %v731
      %733 = vdwg.mxu0
      %734 = vmatpush.xpose.msra.mxu0 0.0
      %735 = vmatpush.xpose.msra.mxu0 0.0
      %736 = vmatpush.xpose.msra.mxu0 0.0
      %737 = vmatpush.xpose.msra.mxu0 0.0
      %738 = vmatpush.xpose.msra.mxu0 0.0
      %739 = vmatpush.xpose.msra.mxu0 0.0
      %740 = vmatpush.xpose.msra.mxu0 0.0
      %741 = vmatpush.xpose.msra.mxu0 0.0
      %742 = vmatpush.xpose.msra.mxu0 0.0
      %743 = vmatpush.xpose.msra.mxu0 %v230
      %744 = vmatpush.xpose.msra.mxu0 %v222
      %745 = vmatpush.xpose.msra.mxu0 %v214
      %746 = vmatpush.xpose.msra.mxu0 %v206
      %747 = vmatpush.xpose.msra.mxu0 %v198
      %748 = vmatpush.xpose.msra.mxu0 %v190
      %749 = vmatpush.xpose.msra.mxu0 %v182
      %750 = vmatmul.f32.gmra.mxu0 %v630
      %v751 = vpop.f32.mrf.mxu0
      %v752 = vadd.f32 %v729, %v751
      %753 = vmatmul.f32.gmra.mxu0 %v638
      %v754 = vpop.f32.mrf.mxu0
      %v755 = vadd.f32 %v732, %v754
      %756 = vdwg.mxu0
      %757 = vmatpush.xpose.msra.mxu0 0.0
      %758 = vmatpush.xpose.msra.mxu0 0.0
      %759 = vmatpush.xpose.msra.mxu0 0.0
      %760 = vmatpush.xpose.msra.mxu0 0.0
      %761 = vmatpush.xpose.msra.mxu0 0.0
      %762 = vmatpush.xpose.msra.mxu0 0.0
      %763 = vmatpush.xpose.msra.mxu0 0.0
      %764 = vmatpush.xpose.msra.mxu0 0.0
      %765 = vmatpush.xpose.msra.mxu0 0.0
      %766 = vmatpush.xpose.msra.mxu0 %v231
      %767 = vmatpush.xpose.msra.mxu0 %v223
      %768 = vmatpush.xpose.msra.mxu0 %v215
      %769 = vmatpush.xpose.msra.mxu0 %v207
      %770 = vmatpush.xpose.msra.mxu0 %v199
      %771 = vmatpush.xpose.msra.mxu0 %v191
      %772 = vmatpush.xpose.msra.mxu0 %v183
      %773 = vmatmul.f32.gmra.mxu0 %v631
      %v774 = vpop.f32.mrf.mxu0
      %v775 = vadd.f32 %v752, %v774
      %776 = vmatmul.f32.gmra.mxu0 %v639
      %v777 = vpop.f32.mrf.mxu0
      %v778 = vadd.f32 %v755, %v777
      %779 = vdwg.mxu0
      %780 = vmatpush.xpose.msra.mxu0 0.0
      %781 = vmatpush.xpose.msra.mxu0 0.0
      %782 = vmatpush.xpose.msra.mxu0 0.0
      %783 = vmatpush.xpose.msra.mxu0 0.0
      %784 = vmatpush.xpose.msra.mxu0 0.0
      %785 = vmatpush.xpose.msra.mxu0 0.0
      %786 = vmatpush.xpose.msra.mxu0 0.0
      %787 = vmatpush.xpose.msra.mxu0 0.0
      %788 = vmatpush.xpose.msra.mxu0 0.0
      %789 = vmatpush.xpose.msra.mxu0 %v232
      %790 = vmatpush.xpose.msra.mxu0 %v224
      %791 = vmatpush.xpose.msra.mxu0 %v216
      %792 = vmatpush.xpose.msra.mxu0 %v208
      %793 = vmatpush.xpose.msra.mxu0 %v200
      %794 = vmatpush.xpose.msra.mxu0 %v192
      %795 = vmatpush.xpose.msra.mxu0 %v184
      %796 = vmatmul.f32.gmra.mxu0 %v632
      %v797 = vpop.f32.mrf.mxu0
      %v798 = vadd.f32 %v775, %v797
      %799 = vmatmul.f32.gmra.mxu0 %v640
      %v800 = vpop.f32.mrf.mxu0
      %v801 = vadd.f32 %v778, %v800
      %802 = vdwg.mxu0
      %803 = vmatpush.xpose.msra.mxu0 0.0
      %804 = vmatpush.xpose.msra.mxu0 0.0
      %805 = vmatpush.xpose.msra.mxu0 0.0
      %806 = vmatpush.xpose.msra.mxu0 0.0
      %807 = vmatpush.xpose.msra.mxu0 0.0
      %808 = vmatpush.xpose.msra.mxu0 0.0
      %809 = vmatpush.xpose.msra.mxu0 0.0
      %810 = vmatpush.xpose.msra.mxu0 0.0
      %811 = vmatpush.xpose.msra.mxu0 0.0
      %812 = vmatpush.xpose.msra.mxu0 %v233
      %813 = vmatpush.xpose.msra.mxu0 %v225
      %814 = vmatpush.xpose.msra.mxu0 %v217
      %815 = vmatpush.xpose.msra.mxu0 %v209
      %816 = vmatpush.xpose.msra.mxu0 %v201
      %817 = vmatpush.xpose.msra.mxu0 %v193
      %818 = vmatpush.xpose.msra.mxu0 %v185
      %819 = vmatmul.f32.gmra.mxu0 %v633
      %v820 = vpop.f32.mrf.mxu0
      %v821 = vadd.f32 %v798, %v820
      %822 = vmatmul.f32.gmra.mxu0 %v641
      %v823 = vpop.f32.mrf.mxu0
      %v824 = vadd.f32 %v801, %v823
      %825 = vdwg.mxu0
      %826 = vmatpush.xpose.msra.mxu0 0.0
      %827 = vmatpush.xpose.msra.mxu0 0.0
      %828 = vmatpush.xpose.msra.mxu0 0.0
      %829 = vmatpush.xpose.msra.mxu0 0.0
      %830 = vmatpush.xpose.msra.mxu0 0.0
      %831 = vmatpush.xpose.msra.mxu0 0.0
      %832 = vmatpush.xpose.msra.mxu0 0.0
      %833 = vmatpush.xpose.msra.mxu0 0.0
      %834 = vmatpush.xpose.msra.mxu0 0.0
      %835 = vmatpush.xpose.msra.mxu0 %v282
      %836 = vmatpush.xpose.msra.mxu0 %v274
      %837 = vmatpush.xpose.msra.mxu0 %v266
      %838 = vmatpush.xpose.msra.mxu0 %v258
      %839 = vmatpush.xpose.msra.mxu0 %v250
      %840 = vmatpush.xpose.msra.mxu0 %v242
      %841 = vmatpush.xpose.msra.mxu0 %v234
      %842 = vmatmul.f32.gmra.mxu0 %v626
      %v843 = vpop.f32.mrf.mxu0
      %v844 = vadd.f32 0.0, %v843
      %845 = vmatmul.f32.gmra.mxu0 %v634
      %v846 = vpop.f32.mrf.mxu0
      %v847 = vadd.f32 0.0, %v846
      %848 = vdwg.mxu0
      %849 = vmatpush.xpose.msra.mxu0 0.0
      %850 = vmatpush.xpose.msra.mxu0 0.0
      %851 = vmatpush.xpose.msra.mxu0 0.0
      %852 = vmatpush.xpose.msra.mxu0 0.0
      %853 = vmatpush.xpose.msra.mxu0 0.0
      %854 = vmatpush.xpose.msra.mxu0 0.0
      %855 = vmatpush.xpose.msra.mxu0 0.0
      %856 = vmatpush.xpose.msra.mxu0 0.0
      %857 = vmatpush.xpose.msra.mxu0 0.0
      %858 = vmatpush.xpose.msra.mxu0 %v283
      %859 = vmatpush.xpose.msra.mxu0 %v275
      %860 = vmatpush.xpose.msra.mxu0 %v267
      %861 = vmatpush.xpose.msra.mxu0 %v259
      %862 = vmatpush.xpose.msra.mxu0 %v251
      %863 = vmatpush.xpose.msra.mxu0 %v243
      %864 = vmatpush.xpose.msra.mxu0 %v235
      %865 = vmatmul.f32.gmra.mxu0 %v627
      %v866 = vpop.f32.mrf.mxu0
      %v867 = vadd.f32 %v844, %v866
      %868 = vmatmul.f32.gmra.mxu0 %v635
      %v869 = vpop.f32.mrf.mxu0
      %v870 = vadd.f32 %v847, %v869
      %871 = vdwg.mxu0
      %872 = vmatpush.xpose.msra.mxu0 0.0
      %873 = vmatpush.xpose.msra.mxu0 0.0
      %874 = vmatpush.xpose.msra.mxu0 0.0
      %875 = vmatpush.xpose.msra.mxu0 0.0
      %876 = vmatpush.xpose.msra.mxu0 0.0
      %877 = vmatpush.xpose.msra.mxu0 0.0
      %878 = vmatpush.xpose.msra.mxu0 0.0
      %879 = vmatpush.xpose.msra.mxu0 0.0
      %880 = vmatpush.xpose.msra.mxu0 0.0
      %881 = vmatpush.xpose.msra.mxu0 %v284
      %882 = vmatpush.xpose.msra.mxu0 %v276
      %883 = vmatpush.xpose.msra.mxu0 %v268
      %884 = vmatpush.xpose.msra.mxu0 %v260
      %885 = vmatpush.xpose.msra.mxu0 %v252
      %886 = vmatpush.xpose.msra.mxu0 %v244
      %887 = vmatpush.xpose.msra.mxu0 %v236
      %888 = vmatmul.f32.gmra.mxu0 %v628
      %v889 = vpop.f32.mrf.mxu0
      %v890 = vadd.f32 %v867, %v889
      %891 = vmatmul.f32.gmra.mxu0 %v636
      %v892 = vpop.f32.mrf.mxu0
      %v893 = vadd.f32 %v870, %v892
      %894 = vdwg.mxu0
      %895 = vmatpush.xpose.msra.mxu0 0.0
      %896 = vmatpush.xpose.msra.mxu0 0.0
      %897 = vmatpush.xpose.msra.mxu0 0.0
      %898 = vmatpush.xpose.msra.mxu0 0.0
      %899 = vmatpush.xpose.msra.mxu0 0.0
      %900 = vmatpush.xpose.msra.mxu0 0.0
      %901 = vmatpush.xpose.msra.mxu0 0.0
      %902 = vmatpush.xpose.msra.mxu0 0.0
      %903 = vmatpush.xpose.msra.mxu0 0.0
      %904 = vmatpush.xpose.msra.mxu0 %v285
      %905 = vmatpush.xpose.msra.mxu0 %v277
      %906 = vmatpush.xpose.msra.mxu0 %v269
      %907 = vmatpush.xpose.msra.mxu0 %v261
      %908 = vmatpush.xpose.msra.mxu0 %v253
      %909 = vmatpush.xpose.msra.mxu0 %v245
      %910 = vmatpush.xpose.msra.mxu0 %v237
      %911 = vmatmul.f32.gmra.mxu0 %v629
      %v912 = vpop.f32.mrf.mxu0
      %v913 = vadd.f32 %v890, %v912
      %914 = vmatmul.f32.gmra.mxu0 %v637
      %v915 = vpop.f32.mrf.mxu0
      %v916 = vadd.f32 %v893, %v915
      %917 = vdwg.mxu0
      %918 = vmatpush.xpose.msra.mxu0 0.0
      %919 = vmatpush.xpose.msra.mxu0 0.0
      %920 = vmatpush.xpose.msra.mxu0 0.0
      %921 = vmatpush.xpose.msra.mxu0 0.0
      %922 = vmatpush.xpose.msra.mxu0 0.0
      %923 = vmatpush.xpose.msra.mxu0 0.0
      %924 = vmatpush.xpose.msra.mxu0 0.0
      %925 = vmatpush.xpose.msra.mxu0 0.0
      %926 = vmatpush.xpose.msra.mxu0 0.0
      %927 = vmatpush.xpose.msra.mxu0 %v286
      %928 = vmatpush.xpose.msra.mxu0 %v278
      %929 = vmatpush.xpose.msra.mxu0 %v270
      %930 = vmatpush.xpose.msra.mxu0 %v262
      %931 = vmatpush.xpose.msra.mxu0 %v254
      %932 = vmatpush.xpose.msra.mxu0 %v246
      %933 = vmatpush.xpose.msra.mxu0 %v238
      %934 = vmatmul.f32.gmra.mxu0 %v630
      %v935 = vpop.f32.mrf.mxu0
      %v936 = vadd.f32 %v913, %v935
      %937 = vmatmul.f32.gmra.mxu0 %v638
      %v938 = vpop.f32.mrf.mxu0
      %v939 = vadd.f32 %v916, %v938
      %940 = vdwg.mxu0
      %941 = vmatpush.xpose.msra.mxu0 0.0
      %942 = vmatpush.xpose.msra.mxu0 0.0
      %943 = vmatpush.xpose.msra.mxu0 0.0
      %944 = vmatpush.xpose.msra.mxu0 0.0
      %945 = vmatpush.xpose.msra.mxu0 0.0
      %946 = vmatpush.xpose.msra.mxu0 0.0
      %947 = vmatpush.xpose.msra.mxu0 0.0
      %948 = vmatpush.xpose.msra.mxu0 0.0
      %949 = vmatpush.xpose.msra.mxu0 0.0
      %950 = vmatpush.xpose.msra.mxu0 %v287
      %951 = vmatpush.xpose.msra.mxu0 %v279
      %952 = vmatpush.xpose.msra.mxu0 %v271
      %953 = vmatpush.xpose.msra.mxu0 %v263
      %954 = vmatpush.xpose.msra.mxu0 %v255
      %955 = vmatpush.xpose.msra.mxu0 %v247
      %956 = vmatpush.xpose.msra.mxu0 %v239
      %957 = vmatmul.f32.gmra.mxu0 %v631
      %v958 = vpop.f32.mrf.mxu0
      %v959 = vadd.f32 %v936, %v958
      %960 = vmatmul.f32.gmra.mxu0 %v639
      %v961 = vpop.f32.mrf.mxu0
      %v962 = vadd.f32 %v939, %v961
      %963 = vdwg.mxu0
      %964 = vmatpush.xpose.msra.mxu0 0.0
      %965 = vmatpush.xpose.msra.mxu0 0.0
      %966 = vmatpush.xpose.msra.mxu0 0.0
      %967 = vmatpush.xpose.msra.mxu0 0.0
      %968 = vmatpush.xpose.msra.mxu0 0.0
      %969 = vmatpush.xpose.msra.mxu0 0.0
      %970 = vmatpush.xpose.msra.mxu0 0.0
      %971 = vmatpush.xpose.msra.mxu0 0.0
      %972 = vmatpush.xpose.msra.mxu0 0.0
      %973 = vmatpush.xpose.msra.mxu0 %v288
      %974 = vmatpush.xpose.msra.mxu0 %v280
      %975 = vmatpush.xpose.msra.mxu0 %v272
      %976 = vmatpush.xpose.msra.mxu0 %v264
      %977 = vmatpush.xpose.msra.mxu0 %v256
      %978 = vmatpush.xpose.msra.mxu0 %v248
      %979 = vmatpush.xpose.msra.mxu0 %v240
      %980 = vmatmul.f32.gmra.mxu0 %v632
      %v981 = vpop.f32.mrf.mxu0
      %v982 = vadd.f32 %v959, %v981
      %983 = vmatmul.f32.gmra.mxu0 %v640
      %v984 = vpop.f32.mrf.mxu0
      %v985 = vadd.f32 %v962, %v984
      %986 = vdwg.mxu0
      %987 = vmatpush.xpose.msra.mxu0 0.0
      %988 = vmatpush.xpose.msra.mxu0 0.0
      %989 = vmatpush.xpose.msra.mxu0 0.0
      %990 = vmatpush.xpose.msra.mxu0 0.0
      %991 = vmatpush.xpose.msra.mxu0 0.0
      %992 = vmatpush.xpose.msra.mxu0 0.0
      %993 = vmatpush.xpose.msra.mxu0 0.0
      %994 = vmatpush.xpose.msra.mxu0 0.0
      %995 = vmatpush.xpose.msra.mxu0 0.0
      %996 = vmatpush.xpose.msra.mxu0 %v289
      %997 = vmatpush.xpose.msra.mxu0 %v281
      %998 = vmatpush.xpose.msra.mxu0 %v273
      %999 = vmatpush.xpose.msra.mxu0 %v265
      %1000 = vmatpush.xpose.msra.mxu0 %v257
      %1001 = vmatpush.xpose.msra.mxu0 %v249
      %1002 = vmatpush.xpose.msra.mxu0 %v241
      %1003 = vmatmul.f32.gmra.mxu0 %v633
      %v1004 = vpop.f32.mrf.mxu0
      %v1005 = vadd.f32 %v982, %v1004
      %1006 = vmatmul.f32.gmra.mxu0 %v641
      %v1007 = vpop.f32.mrf.mxu0
      %v1008 = vadd.f32 %v985, %v1007
      %1009 = vdwg.mxu0
      %1010 = vmatpush.xpose.msra.mxu0 0.0
      %1011 = vmatpush.xpose.msra.mxu0 0.0
      %1012 = vmatpush.xpose.msra.mxu0 0.0
      %1013 = vmatpush.xpose.msra.mxu0 0.0
      %1014 = vmatpush.xpose.msra.mxu0 0.0
      %1015 = vmatpush.xpose.msra.mxu0 0.0
      %1016 = vmatpush.xpose.msra.mxu0 0.0
      %1017 = vmatpush.xpose.msra.mxu0 0.0
      %1018 = vmatpush.xpose.msra.mxu0 0.0
      %1019 = vmatpush.xpose.msra.mxu0 %v338
      %1020 = vmatpush.xpose.msra.mxu0 %v330
      %1021 = vmatpush.xpose.msra.mxu0 %v322
      %1022 = vmatpush.xpose.msra.mxu0 %v314
      %1023 = vmatpush.xpose.msra.mxu0 %v306
      %1024 = vmatpush.xpose.msra.mxu0 %v298
      %1025 = vmatpush.xpose.msra.mxu0 %v290
      %1026 = vmatmul.f32.gmra.mxu0 %v626
      %v1027 = vpop.f32.mrf.mxu0
      %v1028 = vadd.f32 0.0, %v1027
      %1029 = vmatmul.f32.gmra.mxu0 %v634
      %v1030 = vpop.f32.mrf.mxu0
      %v1031 = vadd.f32 0.0, %v1030
      %1032 = vdwg.mxu0
      %1033 = vmatpush.xpose.msra.mxu0 0.0
      %1034 = vmatpush.xpose.msra.mxu0 0.0
      %1035 = vmatpush.xpose.msra.mxu0 0.0
      %1036 = vmatpush.xpose.msra.mxu0 0.0
      %1037 = vmatpush.xpose.msra.mxu0 0.0
      %1038 = vmatpush.xpose.msra.mxu0 0.0
      %1039 = vmatpush.xpose.msra.mxu0 0.0
      %1040 = vmatpush.xpose.msra.mxu0 0.0
      %1041 = vmatpush.xpose.msra.mxu0 0.0
      %1042 = vmatpush.xpose.msra.mxu0 %v339
      %1043 = vmatpush.xpose.msra.mxu0 %v331
      %1044 = vmatpush.xpose.msra.mxu0 %v323
      %1045 = vmatpush.xpose.msra.mxu0 %v315
      %1046 = vmatpush.xpose.msra.mxu0 %v307
      %1047 = vmatpush.xpose.msra.mxu0 %v299
      %1048 = vmatpush.xpose.msra.mxu0 %v291
      %1049 = vmatmul.f32.gmra.mxu0 %v627
      %v1050 = vpop.f32.mrf.mxu0
      %v1051 = vadd.f32 %v1028, %v1050
      %1052 = vmatmul.f32.gmra.mxu0 %v635
      %v1053 = vpop.f32.mrf.mxu0
      %v1054 = vadd.f32 %v1031, %v1053
      %1055 = vdwg.mxu0
      %1056 = vmatpush.xpose.msra.mxu0 0.0
      %1057 = vmatpush.xpose.msra.mxu0 0.0
      %1058 = vmatpush.xpose.msra.mxu0 0.0
      %1059 = vmatpush.xpose.msra.mxu0 0.0
      %1060 = vmatpush.xpose.msra.mxu0 0.0
      %1061 = vmatpush.xpose.msra.mxu0 0.0
      %1062 = vmatpush.xpose.msra.mxu0 0.0
      %1063 = vmatpush.xpose.msra.mxu0 0.0
      %1064 = vmatpush.xpose.msra.mxu0 0.0
      %1065 = vmatpush.xpose.msra.mxu0 %v340
      %1066 = vmatpush.xpose.msra.mxu0 %v332
      %1067 = vmatpush.xpose.msra.mxu0 %v324
      %1068 = vmatpush.xpose.msra.mxu0 %v316
      %1069 = vmatpush.xpose.msra.mxu0 %v308
      %1070 = vmatpush.xpose.msra.mxu0 %v300
      %1071 = vmatpush.xpose.msra.mxu0 %v292
      %1072 = vmatmul.f32.gmra.mxu0 %v628
      %v1073 = vpop.f32.mrf.mxu0
      %v1074 = vadd.f32 %v1051, %v1073
      %1075 = vmatmul.f32.gmra.mxu0 %v636
      %v1076 = vpop.f32.mrf.mxu0
      %v1077 = vadd.f32 %v1054, %v1076
      %1078 = vdwg.mxu0
      %1079 = vmatpush.xpose.msra.mxu0 0.0
      %1080 = vmatpush.xpose.msra.mxu0 0.0
      %1081 = vmatpush.xpose.msra.mxu0 0.0
      %1082 = vmatpush.xpose.msra.mxu0 0.0
      %1083 = vmatpush.xpose.msra.mxu0 0.0
      %1084 = vmatpush.xpose.msra.mxu0 0.0
      %1085 = vmatpush.xpose.msra.mxu0 0.0
      %1086 = vmatpush.xpose.msra.mxu0 0.0
      %1087 = vmatpush.xpose.msra.mxu0 0.0
      %1088 = vmatpush.xpose.msra.mxu0 %v341
      %1089 = vmatpush.xpose.msra.mxu0 %v333
      %1090 = vmatpush.xpose.msra.mxu0 %v325
      %1091 = vmatpush.xpose.msra.mxu0 %v317
      %1092 = vmatpush.xpose.msra.mxu0 %v309
      %1093 = vmatpush.xpose.msra.mxu0 %v301
      %1094 = vmatpush.xpose.msra.mxu0 %v293
      %1095 = vmatmul.f32.gmra.mxu0 %v629
      %v1096 = vpop.f32.mrf.mxu0
      %v1097 = vadd.f32 %v1074, %v1096
      %1098 = vmatmul.f32.gmra.mxu0 %v637
      %v1099 = vpop.f32.mrf.mxu0
      %v1100 = vadd.f32 %v1077, %v1099
      %1101 = vdwg.mxu0
      %1102 = vmatpush.xpose.msra.mxu0 0.0
      %1103 = vmatpush.xpose.msra.mxu0 0.0
      %1104 = vmatpush.xpose.msra.mxu0 0.0
      %1105 = vmatpush.xpose.msra.mxu0 0.0
      %1106 = vmatpush.xpose.msra.mxu0 0.0
      %1107 = vmatpush.xpose.msra.mxu0 0.0
      %1108 = vmatpush.xpose.msra.mxu0 0.0
      %1109 = vmatpush.xpose.msra.mxu0 0.0
      %1110 = vmatpush.xpose.msra.mxu0 0.0
      %1111 = vmatpush.xpose.msra.mxu0 %v342
      %1112 = vmatpush.xpose.msra.mxu0 %v334
      %1113 = vmatpush.xpose.msra.mxu0 %v326
      %1114 = vmatpush.xpose.msra.mxu0 %v318
      %1115 = vmatpush.xpose.msra.mxu0 %v310
      %1116 = vmatpush.xpose.msra.mxu0 %v302
      %1117 = vmatpush.xpose.msra.mxu0 %v294
      %1118 = vmatmul.f32.gmra.mxu0 %v630
      %v1119 = vpop.f32.mrf.mxu0
      %v1120 = vadd.f32 %v1097, %v1119
      %1121 = vmatmul.f32.gmra.mxu0 %v638
      %v1122 = vpop.f32.mrf.mxu0
      %v1123 = vadd.f32 %v1100, %v1122
      %1124 = vdwg.mxu0
      %1125 = vmatpush.xpose.msra.mxu0 0.0
      %1126 = vmatpush.xpose.msra.mxu0 0.0
      %1127 = vmatpush.xpose.msra.mxu0 0.0
      %1128 = vmatpush.xpose.msra.mxu0 0.0
      %1129 = vmatpush.xpose.msra.mxu0 0.0
      %1130 = vmatpush.xpose.msra.mxu0 0.0
      %1131 = vmatpush.xpose.msra.mxu0 0.0
      %1132 = vmatpush.xpose.msra.mxu0 0.0
      %1133 = vmatpush.xpose.msra.mxu0 0.0
      %1134 = vmatpush.xpose.msra.mxu0 %v343
      %1135 = vmatpush.xpose.msra.mxu0 %v335
      %1136 = vmatpush.xpose.msra.mxu0 %v327
      %1137 = vmatpush.xpose.msra.mxu0 %v319
      %1138 = vmatpush.xpose.msra.mxu0 %v311
      %1139 = vmatpush.xpose.msra.mxu0 %v303
      %1140 = vmatpush.xpose.msra.mxu0 %v295
      %1141 = vmatmul.f32.gmra.mxu0 %v631
      %v1142 = vpop.f32.mrf.mxu0
      %v1143 = vadd.f32 %v1120, %v1142
      %1144 = vmatmul.f32.gmra.mxu0 %v639
      %v1145 = vpop.f32.mrf.mxu0
      %v1146 = vadd.f32 %v1123, %v1145
      %1147 = vdwg.mxu0
      %1148 = vmatpush.xpose.msra.mxu0 0.0
      %1149 = vmatpush.xpose.msra.mxu0 0.0
      %1150 = vmatpush.xpose.msra.mxu0 0.0
      %1151 = vmatpush.xpose.msra.mxu0 0.0
      %1152 = vmatpush.xpose.msra.mxu0 0.0
      %1153 = vmatpush.xpose.msra.mxu0 0.0
      %1154 = vmatpush.xpose.msra.mxu0 0.0
      %1155 = vmatpush.xpose.msra.mxu0 0.0
      %1156 = vmatpush.xpose.msra.mxu0 0.0
      %1157 = vmatpush.xpose.msra.mxu0 %v344
      %1158 = vmatpush.xpose.msra.mxu0 %v336
      %1159 = vmatpush.xpose.msra.mxu0 %v328
      %1160 = vmatpush.xpose.msra.mxu0 %v320
      %1161 = vmatpush.xpose.msra.mxu0 %v312
      %1162 = vmatpush.xpose.msra.mxu0 %v304
      %1163 = vmatpush.xpose.msra.mxu0 %v296
      %1164 = vmatmul.f32.gmra.mxu0 %v632
      %v1165 = vpop.f32.mrf.mxu0
      %v1166 = vadd.f32 %v1143, %v1165
      %1167 = vmatmul.f32.gmra.mxu0 %v640
      %v1168 = vpop.f32.mrf.mxu0
      %v1169 = vadd.f32 %v1146, %v1168
      %1170 = vdwg.mxu0
      %1171 = vmatpush.xpose.msra.mxu0 0.0
      %1172 = vmatpush.xpose.msra.mxu0 0.0
      %1173 = vmatpush.xpose.msra.mxu0 0.0
      %1174 = vmatpush.xpose.msra.mxu0 0.0
      %1175 = vmatpush.xpose.msra.mxu0 0.0
      %1176 = vmatpush.xpose.msra.mxu0 0.0
      %1177 = vmatpush.xpose.msra.mxu0 0.0
      %1178 = vmatpush.xpose.msra.mxu0 0.0
      %1179 = vmatpush.xpose.msra.mxu0 0.0
      %1180 = vmatpush.xpose.msra.mxu0 %v345
      %1181 = vmatpush.xpose.msra.mxu0 %v337
      %1182 = vmatpush.xpose.msra.mxu0 %v329
      %1183 = vmatpush.xpose.msra.mxu0 %v321
      %1184 = vmatpush.xpose.msra.mxu0 %v313
      %1185 = vmatpush.xpose.msra.mxu0 %v305
      %1186 = vmatpush.xpose.msra.mxu0 %v297
      %1187 = vmatmul.f32.gmra.mxu0 %v633
      %v1188 = vpop.f32.mrf.mxu0
      %v1189 = vadd.f32 %v1166, %v1188
      %1190 = vmatmul.f32.gmra.mxu0 %v641
      %v1191 = vpop.f32.mrf.mxu0
      %v1192 = vadd.f32 %v1169, %v1191
      %1193 = vdwg.mxu0
      %1194 = vmatpush.xpose.msra.mxu0 0.0
      %1195 = vmatpush.xpose.msra.mxu0 0.0
      %1196 = vmatpush.xpose.msra.mxu0 0.0
      %1197 = vmatpush.xpose.msra.mxu0 0.0
      %1198 = vmatpush.xpose.msra.mxu0 0.0
      %1199 = vmatpush.xpose.msra.mxu0 0.0
      %1200 = vmatpush.xpose.msra.mxu0 0.0
      %1201 = vmatpush.xpose.msra.mxu0 0.0
      %1202 = vmatpush.xpose.msra.mxu0 0.0
      %1203 = vmatpush.xpose.msra.mxu0 %v394
      %1204 = vmatpush.xpose.msra.mxu0 %v386
      %1205 = vmatpush.xpose.msra.mxu0 %v378
      %1206 = vmatpush.xpose.msra.mxu0 %v370
      %1207 = vmatpush.xpose.msra.mxu0 %v362
      %1208 = vmatpush.xpose.msra.mxu0 %v354
      %1209 = vmatpush.xpose.msra.mxu0 %v346
      %1210 = vmatmul.f32.gmra.mxu0 %v626
      %v1211 = vpop.f32.mrf.mxu0
      %v1212 = vadd.f32 0.0, %v1211
      %1213 = vmatmul.f32.gmra.mxu0 %v634
      %v1214 = vpop.f32.mrf.mxu0
      %v1215 = vadd.f32 0.0, %v1214
      %1216 = vdwg.mxu0
      %1217 = vmatpush.xpose.msra.mxu0 0.0
      %1218 = vmatpush.xpose.msra.mxu0 0.0
      %1219 = vmatpush.xpose.msra.mxu0 0.0
      %1220 = vmatpush.xpose.msra.mxu0 0.0
      %1221 = vmatpush.xpose.msra.mxu0 0.0
      %1222 = vmatpush.xpose.msra.mxu0 0.0
      %1223 = vmatpush.xpose.msra.mxu0 0.0
      %1224 = vmatpush.xpose.msra.mxu0 0.0
      %1225 = vmatpush.xpose.msra.mxu0 0.0
      %1226 = vmatpush.xpose.msra.mxu0 %v395
      %1227 = vmatpush.xpose.msra.mxu0 %v387
      %1228 = vmatpush.xpose.msra.mxu0 %v379
      %1229 = vmatpush.xpose.msra.mxu0 %v371
      %1230 = vmatpush.xpose.msra.mxu0 %v363
      %1231 = vmatpush.xpose.msra.mxu0 %v355
      %1232 = vmatpush.xpose.msra.mxu0 %v347
      %1233 = vmatmul.f32.gmra.mxu0 %v627
      %v1234 = vpop.f32.mrf.mxu0
      %v1235 = vadd.f32 %v1212, %v1234
      %1236 = vmatmul.f32.gmra.mxu0 %v635
      %v1237 = vpop.f32.mrf.mxu0
      %v1238 = vadd.f32 %v1215, %v1237
      %1239 = vdwg.mxu0
      %1240 = vmatpush.xpose.msra.mxu0 0.0
      %1241 = vmatpush.xpose.msra.mxu0 0.0
      %1242 = vmatpush.xpose.msra.mxu0 0.0
      %1243 = vmatpush.xpose.msra.mxu0 0.0
      %1244 = vmatpush.xpose.msra.mxu0 0.0
      %1245 = vmatpush.xpose.msra.mxu0 0.0
      %1246 = vmatpush.xpose.msra.mxu0 0.0
      %1247 = vmatpush.xpose.msra.mxu0 0.0
      %1248 = vmatpush.xpose.msra.mxu0 0.0
      %1249 = vmatpush.xpose.msra.mxu0 %v396
      %1250 = vmatpush.xpose.msra.mxu0 %v388
      %1251 = vmatpush.xpose.msra.mxu0 %v380
      %1252 = vmatpush.xpose.msra.mxu0 %v372
      %1253 = vmatpush.xpose.msra.mxu0 %v364
      %1254 = vmatpush.xpose.msra.mxu0 %v356
      %1255 = vmatpush.xpose.msra.mxu0 %v348
      %1256 = vmatmul.f32.gmra.mxu0 %v628
      %v1257 = vpop.f32.mrf.mxu0
      %v1258 = vadd.f32 %v1235, %v1257
      %1259 = vmatmul.f32.gmra.mxu0 %v636
      %v1260 = vpop.f32.mrf.mxu0
      %v1261 = vadd.f32 %v1238, %v1260
      %1262 = vdwg.mxu0
      %1263 = vmatpush.xpose.msra.mxu0 0.0
      %1264 = vmatpush.xpose.msra.mxu0 0.0
      %1265 = vmatpush.xpose.msra.mxu0 0.0
      %1266 = vmatpush.xpose.msra.mxu0 0.0
      %1267 = vmatpush.xpose.msra.mxu0 0.0
      %1268 = vmatpush.xpose.msra.mxu0 0.0
      %1269 = vmatpush.xpose.msra.mxu0 0.0
      %1270 = vmatpush.xpose.msra.mxu0 0.0
      %1271 = vmatpush.xpose.msra.mxu0 0.0
      %1272 = vmatpush.xpose.msra.mxu0 %v397
      %1273 = vmatpush.xpose.msra.mxu0 %v389
      %1274 = vmatpush.xpose.msra.mxu0 %v381
      %1275 = vmatpush.xpose.msra.mxu0 %v373
      %1276 = vmatpush.xpose.msra.mxu0 %v365
      %1277 = vmatpush.xpose.msra.mxu0 %v357
      %1278 = vmatpush.xpose.msra.mxu0 %v349
      %1279 = vmatmul.f32.gmra.mxu0 %v629
      %v1280 = vpop.f32.mrf.mxu0
      %v1281 = vadd.f32 %v1258, %v1280
      %1282 = vmatmul.f32.gmra.mxu0 %v637
      %v1283 = vpop.f32.mrf.mxu0
      %v1284 = vadd.f32 %v1261, %v1283
      %1285 = vdwg.mxu0
      %1286 = vmatpush.xpose.msra.mxu0 0.0
      %1287 = vmatpush.xpose.msra.mxu0 0.0
      %1288 = vmatpush.xpose.msra.mxu0 0.0
      %1289 = vmatpush.xpose.msra.mxu0 0.0
      %1290 = vmatpush.xpose.msra.mxu0 0.0
      %1291 = vmatpush.xpose.msra.mxu0 0.0
      %1292 = vmatpush.xpose.msra.mxu0 0.0
      %1293 = vmatpush.xpose.msra.mxu0 0.0
      %1294 = vmatpush.xpose.msra.mxu0 0.0
      %1295 = vmatpush.xpose.msra.mxu0 %v398
      %1296 = vmatpush.xpose.msra.mxu0 %v390
      %1297 = vmatpush.xpose.msra.mxu0 %v382
      %1298 = vmatpush.xpose.msra.mxu0 %v374
      %1299 = vmatpush.xpose.msra.mxu0 %v366
      %1300 = vmatpush.xpose.msra.mxu0 %v358
      %1301 = vmatpush.xpose.msra.mxu0 %v350
      %1302 = vmatmul.f32.gmra.mxu0 %v630
      %v1303 = vpop.f32.mrf.mxu0
      %v1304 = vadd.f32 %v1281, %v1303
      %1305 = vmatmul.f32.gmra.mxu0 %v638
      %v1306 = vpop.f32.mrf.mxu0
      %v1307 = vadd.f32 %v1284, %v1306
      %1308 = vdwg.mxu0
      %1309 = vmatpush.xpose.msra.mxu0 0.0
      %1310 = vmatpush.xpose.msra.mxu0 0.0
      %1311 = vmatpush.xpose.msra.mxu0 0.0
      %1312 = vmatpush.xpose.msra.mxu0 0.0
      %1313 = vmatpush.xpose.msra.mxu0 0.0
      %1314 = vmatpush.xpose.msra.mxu0 0.0
      %1315 = vmatpush.xpose.msra.mxu0 0.0
      %1316 = vmatpush.xpose.msra.mxu0 0.0
      %1317 = vmatpush.xpose.msra.mxu0 0.0
      %1318 = vmatpush.xpose.msra.mxu0 %v399
      %1319 = vmatpush.xpose.msra.mxu0 %v391
      %1320 = vmatpush.xpose.msra.mxu0 %v383
      %1321 = vmatpush.xpose.msra.mxu0 %v375
      %1322 = vmatpush.xpose.msra.mxu0 %v367
      %1323 = vmatpush.xpose.msra.mxu0 %v359
      %1324 = vmatpush.xpose.msra.mxu0 %v351
      %1325 = vmatmul.f32.gmra.mxu0 %v631
      %v1326 = vpop.f32.mrf.mxu0
      %v1327 = vadd.f32 %v1304, %v1326
      %1328 = vmatmul.f32.gmra.mxu0 %v639
      %v1329 = vpop.f32.mrf.mxu0
      %v1330 = vadd.f32 %v1307, %v1329
      %1331 = vdwg.mxu0
      %1332 = vmatpush.xpose.msra.mxu0 0.0
      %1333 = vmatpush.xpose.msra.mxu0 0.0
      %1334 = vmatpush.xpose.msra.mxu0 0.0
      %1335 = vmatpush.xpose.msra.mxu0 0.0
      %1336 = vmatpush.xpose.msra.mxu0 0.0
      %1337 = vmatpush.xpose.msra.mxu0 0.0
      %1338 = vmatpush.xpose.msra.mxu0 0.0
      %1339 = vmatpush.xpose.msra.mxu0 0.0
      %1340 = vmatpush.xpose.msra.mxu0 0.0
      %1341 = vmatpush.xpose.msra.mxu0 %v400
      %1342 = vmatpush.xpose.msra.mxu0 %v392
      %1343 = vmatpush.xpose.msra.mxu0 %v384
      %1344 = vmatpush.xpose.msra.mxu0 %v376
      %1345 = vmatpush.xpose.msra.mxu0 %v368
      %1346 = vmatpush.xpose.msra.mxu0 %v360
      %1347 = vmatpush.xpose.msra.mxu0 %v352
      %1348 = vmatmul.f32.gmra.mxu0 %v632
      %v1349 = vpop.f32.mrf.mxu0
      %v1350 = vadd.f32 %v1327, %v1349
      %1351 = vmatmul.f32.gmra.mxu0 %v640
      %v1352 = vpop.f32.mrf.mxu0
      %v1353 = vadd.f32 %v1330, %v1352
      %1354 = vdwg.mxu0
      %1355 = vmatpush.xpose.msra.mxu0 0.0
      %1356 = vmatpush.xpose.msra.mxu0 0.0
      %1357 = vmatpush.xpose.msra.mxu0 0.0
      %1358 = vmatpush.xpose.msra.mxu0 0.0
      %1359 = vmatpush.xpose.msra.mxu0 0.0
      %1360 = vmatpush.xpose.msra.mxu0 0.0
      %1361 = vmatpush.xpose.msra.mxu0 0.0
      %1362 = vmatpush.xpose.msra.mxu0 0.0
      %1363 = vmatpush.xpose.msra.mxu0 0.0
      %1364 = vmatpush.xpose.msra.mxu0 %v401
      %1365 = vmatpush.xpose.msra.mxu0 %v393
      %1366 = vmatpush.xpose.msra.mxu0 %v385
      %1367 = vmatpush.xpose.msra.mxu0 %v377
      %1368 = vmatpush.xpose.msra.mxu0 %v369
      %1369 = vmatpush.xpose.msra.mxu0 %v361
      %1370 = vmatpush.xpose.msra.mxu0 %v353
      %1371 = vmatmul.f32.gmra.mxu0 %v633
      %v1372 = vpop.f32.mrf.mxu0
      %v1373 = vadd.f32 %v1350, %v1372
      %1374 = vmatmul.f32.gmra.mxu0 %v641
      %v1375 = vpop.f32.mrf.mxu0
      %v1376 = vadd.f32 %v1353, %v1375
      %1377 = vdwg.mxu0
      %1378 = vmatpush.xpose.msra.mxu0 0.0
      %1379 = vmatpush.xpose.msra.mxu0 0.0
      %1380 = vmatpush.xpose.msra.mxu0 0.0
      %1381 = vmatpush.xpose.msra.mxu0 0.0
      %1382 = vmatpush.xpose.msra.mxu0 0.0
      %1383 = vmatpush.xpose.msra.mxu0 0.0
      %1384 = vmatpush.xpose.msra.mxu0 0.0
      %1385 = vmatpush.xpose.msra.mxu0 0.0
      %1386 = vmatpush.xpose.msra.mxu0 0.0
      %1387 = vmatpush.xpose.msra.mxu0 %v450
      %1388 = vmatpush.xpose.msra.mxu0 %v442
      %1389 = vmatpush.xpose.msra.mxu0 %v434
      %1390 = vmatpush.xpose.msra.mxu0 %v426
      %1391 = vmatpush.xpose.msra.mxu0 %v418
      %1392 = vmatpush.xpose.msra.mxu0 %v410
      %1393 = vmatpush.xpose.msra.mxu0 %v402
      %1394 = vmatmul.f32.gmra.mxu0 %v626
      %v1395 = vpop.f32.mrf.mxu0
      %v1396 = vadd.f32 0.0, %v1395
      %1397 = vmatmul.f32.gmra.mxu0 %v634
      %v1398 = vpop.f32.mrf.mxu0
      %v1399 = vadd.f32 0.0, %v1398
      %1400 = vdwg.mxu0
      %1401 = vmatpush.xpose.msra.mxu0 0.0
      %1402 = vmatpush.xpose.msra.mxu0 0.0
      %1403 = vmatpush.xpose.msra.mxu0 0.0
      %1404 = vmatpush.xpose.msra.mxu0 0.0
      %1405 = vmatpush.xpose.msra.mxu0 0.0
      %1406 = vmatpush.xpose.msra.mxu0 0.0
      %1407 = vmatpush.xpose.msra.mxu0 0.0
      %1408 = vmatpush.xpose.msra.mxu0 0.0
      %1409 = vmatpush.xpose.msra.mxu0 0.0
      %1410 = vmatpush.xpose.msra.mxu0 %v451
      %1411 = vmatpush.xpose.msra.mxu0 %v443
      %1412 = vmatpush.xpose.msra.mxu0 %v435
      %1413 = vmatpush.xpose.msra.mxu0 %v427
      %1414 = vmatpush.xpose.msra.mxu0 %v419
      %1415 = vmatpush.xpose.msra.mxu0 %v411
      %1416 = vmatpush.xpose.msra.mxu0 %v403
      %1417 = vmatmul.f32.gmra.mxu0 %v627
      %v1418 = vpop.f32.mrf.mxu0
      %v1419 = vadd.f32 %v1396, %v1418
      %1420 = vmatmul.f32.gmra.mxu0 %v635
      %v1421 = vpop.f32.mrf.mxu0
      %v1422 = vadd.f32 %v1399, %v1421
      %1423 = vdwg.mxu0
      %1424 = vmatpush.xpose.msra.mxu0 0.0
      %1425 = vmatpush.xpose.msra.mxu0 0.0
      %1426 = vmatpush.xpose.msra.mxu0 0.0
      %1427 = vmatpush.xpose.msra.mxu0 0.0
      %1428 = vmatpush.xpose.msra.mxu0 0.0
      %1429 = vmatpush.xpose.msra.mxu0 0.0
      %1430 = vmatpush.xpose.msra.mxu0 0.0
      %1431 = vmatpush.xpose.msra.mxu0 0.0
      %1432 = vmatpush.xpose.msra.mxu0 0.0
      %1433 = vmatpush.xpose.msra.mxu0 %v452
      %1434 = vmatpush.xpose.msra.mxu0 %v444
      %1435 = vmatpush.xpose.msra.mxu0 %v436
      %1436 = vmatpush.xpose.msra.mxu0 %v428
      %1437 = vmatpush.xpose.msra.mxu0 %v420
      %1438 = vmatpush.xpose.msra.mxu0 %v412
      %1439 = vmatpush.xpose.msra.mxu0 %v404
      %1440 = vmatmul.f32.gmra.mxu0 %v628
      %v1441 = vpop.f32.mrf.mxu0
      %v1442 = vadd.f32 %v1419, %v1441
      %1443 = vmatmul.f32.gmra.mxu0 %v636
      %v1444 = vpop.f32.mrf.mxu0
      %v1445 = vadd.f32 %v1422, %v1444
      %1446 = vdwg.mxu0
      %1447 = vmatpush.xpose.msra.mxu0 0.0
      %1448 = vmatpush.xpose.msra.mxu0 0.0
      %1449 = vmatpush.xpose.msra.mxu0 0.0
      %1450 = vmatpush.xpose.msra.mxu0 0.0
      %1451 = vmatpush.xpose.msra.mxu0 0.0
      %1452 = vmatpush.xpose.msra.mxu0 0.0
      %1453 = vmatpush.xpose.msra.mxu0 0.0
      %1454 = vmatpush.xpose.msra.mxu0 0.0
      %1455 = vmatpush.xpose.msra.mxu0 0.0
      %1456 = vmatpush.xpose.msra.mxu0 %v453
      %1457 = vmatpush.xpose.msra.mxu0 %v445
      %1458 = vmatpush.xpose.msra.mxu0 %v437
      %1459 = vmatpush.xpose.msra.mxu0 %v429
      %1460 = vmatpush.xpose.msra.mxu0 %v421
      %1461 = vmatpush.xpose.msra.mxu0 %v413
      %1462 = vmatpush.xpose.msra.mxu0 %v405
      %1463 = vmatmul.f32.gmra.mxu0 %v629
      %v1464 = vpop.f32.mrf.mxu0
      %v1465 = vadd.f32 %v1442, %v1464
      %1466 = vmatmul.f32.gmra.mxu0 %v637
      %v1467 = vpop.f32.mrf.mxu0
      %v1468 = vadd.f32 %v1445, %v1467
      %1469 = vdwg.mxu0
      %1470 = vmatpush.xpose.msra.mxu0 0.0
      %1471 = vmatpush.xpose.msra.mxu0 0.0
      %1472 = vmatpush.xpose.msra.mxu0 0.0
      %1473 = vmatpush.xpose.msra.mxu0 0.0
      %1474 = vmatpush.xpose.msra.mxu0 0.0
      %1475 = vmatpush.xpose.msra.mxu0 0.0
      %1476 = vmatpush.xpose.msra.mxu0 0.0
      %1477 = vmatpush.xpose.msra.mxu0 0.0
      %1478 = vmatpush.xpose.msra.mxu0 0.0
      %1479 = vmatpush.xpose.msra.mxu0 %v454
      %1480 = vmatpush.xpose.msra.mxu0 %v446
      %1481 = vmatpush.xpose.msra.mxu0 %v438
      %1482 = vmatpush.xpose.msra.mxu0 %v430
      %1483 = vmatpush.xpose.msra.mxu0 %v422
      %1484 = vmatpush.xpose.msra.mxu0 %v414
      %1485 = vmatpush.xpose.msra.mxu0 %v406
      %1486 = vmatmul.f32.gmra.mxu0 %v630
      %v1487 = vpop.f32.mrf.mxu0
      %v1488 = vadd.f32 %v1465, %v1487
      %1489 = vmatmul.f32.gmra.mxu0 %v638
      %v1490 = vpop.f32.mrf.mxu0
      %v1491 = vadd.f32 %v1468, %v1490
      %1492 = vdwg.mxu0
      %1493 = vmatpush.xpose.msra.mxu0 0.0
      %1494 = vmatpush.xpose.msra.mxu0 0.0
      %1495 = vmatpush.xpose.msra.mxu0 0.0
      %1496 = vmatpush.xpose.msra.mxu0 0.0
      %1497 = vmatpush.xpose.msra.mxu0 0.0
      %1498 = vmatpush.xpose.msra.mxu0 0.0
      %1499 = vmatpush.xpose.msra.mxu0 0.0
      %1500 = vmatpush.xpose.msra.mxu0 0.0
      %1501 = vmatpush.xpose.msra.mxu0 0.0
      %1502 = vmatpush.xpose.msra.mxu0 %v455
      %1503 = vmatpush.xpose.msra.mxu0 %v447
      %1504 = vmatpush.xpose.msra.mxu0 %v439
      %1505 = vmatpush.xpose.msra.mxu0 %v431
      %1506 = vmatpush.xpose.msra.mxu0 %v423
      %1507 = vmatpush.xpose.msra.mxu0 %v415
      %1508 = vmatpush.xpose.msra.mxu0 %v407
      %1509 = vmatmul.f32.gmra.mxu0 %v631
      %v1510 = vpop.f32.mrf.mxu0
      %v1511 = vadd.f32 %v1488, %v1510
      %1512 = vmatmul.f32.gmra.mxu0 %v639
      %v1513 = vpop.f32.mrf.mxu0
      %v1514 = vadd.f32 %v1491, %v1513
      %1515 = vdwg.mxu0
      %1516 = vmatpush.xpose.msra.mxu0 0.0
      %1517 = vmatpush.xpose.msra.mxu0 0.0
      %1518 = vmatpush.xpose.msra.mxu0 0.0
      %1519 = vmatpush.xpose.msra.mxu0 0.0
      %1520 = vmatpush.xpose.msra.mxu0 0.0
      %1521 = vmatpush.xpose.msra.mxu0 0.0
      %1522 = vmatpush.xpose.msra.mxu0 0.0
      %1523 = vmatpush.xpose.msra.mxu0 0.0
      %1524 = vmatpush.xpose.msra.mxu0 0.0
      %1525 = vmatpush.xpose.msra.mxu0 %v456
      %1526 = vmatpush.xpose.msra.mxu0 %v448
      %1527 = vmatpush.xpose.msra.mxu0 %v440
      %1528 = vmatpush.xpose.msra.mxu0 %v432
      %1529 = vmatpush.xpose.msra.mxu0 %v424
      %1530 = vmatpush.xpose.msra.mxu0 %v416
      %1531 = vmatpush.xpose.msra.mxu0 %v408
      %1532 = vmatmul.f32.gmra.mxu0 %v632
      %v1533 = vpop.f32.mrf.mxu0
      %v1534 = vadd.f32 %v1511, %v1533
      %1535 = vmatmul.f32.gmra.mxu0 %v640
      %v1536 = vpop.f32.mrf.mxu0
      %v1537 = vadd.f32 %v1514, %v1536
      %1538 = vdwg.mxu0
      %1539 = vmatpush.xpose.msra.mxu0 0.0
      %1540 = vmatpush.xpose.msra.mxu0 0.0
      %1541 = vmatpush.xpose.msra.mxu0 0.0
      %1542 = vmatpush.xpose.msra.mxu0 0.0
      %1543 = vmatpush.xpose.msra.mxu0 0.0
      %1544 = vmatpush.xpose.msra.mxu0 0.0
      %1545 = vmatpush.xpose.msra.mxu0 0.0
      %1546 = vmatpush.xpose.msra.mxu0 0.0
      %1547 = vmatpush.xpose.msra.mxu0 0.0
      %1548 = vmatpush.xpose.msra.mxu0 %v457
      %1549 = vmatpush.xpose.msra.mxu0 %v449
      %1550 = vmatpush.xpose.msra.mxu0 %v441
      %1551 = vmatpush.xpose.msra.mxu0 %v433
      %1552 = vmatpush.xpose.msra.mxu0 %v425
      %1553 = vmatpush.xpose.msra.mxu0 %v417
      %1554 = vmatpush.xpose.msra.mxu0 %v409
      %1555 = vmatmul.f32.gmra.mxu0 %v633
      %v1556 = vpop.f32.mrf.mxu0
      %v1557 = vadd.f32 %v1534, %v1556
      %1558 = vmatmul.f32.gmra.mxu0 %v641
      %v1559 = vpop.f32.mrf.mxu0
      %v1560 = vadd.f32 %v1537, %v1559
      %1561 = vdwg.mxu0
      %1562 = vmatpush.xpose.msra.mxu0 0.0
      %1563 = vmatpush.xpose.msra.mxu0 0.0
      %1564 = vmatpush.xpose.msra.mxu0 0.0
      %1565 = vmatpush.xpose.msra.mxu0 0.0
      %1566 = vmatpush.xpose.msra.mxu0 0.0
      %1567 = vmatpush.xpose.msra.mxu0 0.0
      %1568 = vmatpush.xpose.msra.mxu0 0.0
      %1569 = vmatpush.xpose.msra.mxu0 0.0
      %1570 = vmatpush.xpose.msra.mxu0 0.0
      %1571 = vmatpush.xpose.msra.mxu0 %v506
      %1572 = vmatpush.xpose.msra.mxu0 %v498
      %1573 = vmatpush.xpose.msra.mxu0 %v490
      %1574 = vmatpush.xpose.msra.mxu0 %v482
      %1575 = vmatpush.xpose.msra.mxu0 %v474
      %1576 = vmatpush.xpose.msra.mxu0 %v466
      %1577 = vmatpush.xpose.msra.mxu0 %v458
      %1578 = vmatmul.f32.gmra.mxu0 %v626
      %v1579 = vpop.f32.mrf.mxu0
      %v1580 = vadd.f32 0.0, %v1579
      %1581 = vmatmul.f32.gmra.mxu0 %v634
      %v1582 = vpop.f32.mrf.mxu0
      %v1583 = vadd.f32 0.0, %v1582
      %1584 = vdwg.mxu0
      %1585 = vmatpush.xpose.msra.mxu0 0.0
      %1586 = vmatpush.xpose.msra.mxu0 0.0
      %1587 = vmatpush.xpose.msra.mxu0 0.0
      %1588 = vmatpush.xpose.msra.mxu0 0.0
      %1589 = vmatpush.xpose.msra.mxu0 0.0
      %1590 = vmatpush.xpose.msra.mxu0 0.0
      %1591 = vmatpush.xpose.msra.mxu0 0.0
      %1592 = vmatpush.xpose.msra.mxu0 0.0
      %1593 = vmatpush.xpose.msra.mxu0 0.0
      %1594 = vmatpush.xpose.msra.mxu0 %v507
      %1595 = vmatpush.xpose.msra.mxu0 %v499
      %1596 = vmatpush.xpose.msra.mxu0 %v491
      %1597 = vmatpush.xpose.msra.mxu0 %v483
      %1598 = vmatpush.xpose.msra.mxu0 %v475
      %1599 = vmatpush.xpose.msra.mxu0 %v467
      %1600 = vmatpush.xpose.msra.mxu0 %v459
      %1601 = vmatmul.f32.gmra.mxu0 %v627
      %v1602 = vpop.f32.mrf.mxu0
      %v1603 = vadd.f32 %v1580, %v1602
      %1604 = vmatmul.f32.gmra.mxu0 %v635
      %v1605 = vpop.f32.mrf.mxu0
      %v1606 = vadd.f32 %v1583, %v1605
      %1607 = vdwg.mxu0
      %1608 = vmatpush.xpose.msra.mxu0 0.0
      %1609 = vmatpush.xpose.msra.mxu0 0.0
      %1610 = vmatpush.xpose.msra.mxu0 0.0
      %1611 = vmatpush.xpose.msra.mxu0 0.0
      %1612 = vmatpush.xpose.msra.mxu0 0.0
      %1613 = vmatpush.xpose.msra.mxu0 0.0
      %1614 = vmatpush.xpose.msra.mxu0 0.0
      %1615 = vmatpush.xpose.msra.mxu0 0.0
      %1616 = vmatpush.xpose.msra.mxu0 0.0
      %1617 = vmatpush.xpose.msra.mxu0 %v508
      %1618 = vmatpush.xpose.msra.mxu0 %v500
      %1619 = vmatpush.xpose.msra.mxu0 %v492
      %1620 = vmatpush.xpose.msra.mxu0 %v484
      %1621 = vmatpush.xpose.msra.mxu0 %v476
      %1622 = vmatpush.xpose.msra.mxu0 %v468
      %1623 = vmatpush.xpose.msra.mxu0 %v460
      %1624 = vmatmul.f32.gmra.mxu0 %v628
      %v1625 = vpop.f32.mrf.mxu0
      %v1626 = vadd.f32 %v1603, %v1625
      %1627 = vmatmul.f32.gmra.mxu0 %v636
      %v1628 = vpop.f32.mrf.mxu0
      %v1629 = vadd.f32 %v1606, %v1628
      %1630 = vdwg.mxu0
      %1631 = vmatpush.xpose.msra.mxu0 0.0
      %1632 = vmatpush.xpose.msra.mxu0 0.0
      %1633 = vmatpush.xpose.msra.mxu0 0.0
      %1634 = vmatpush.xpose.msra.mxu0 0.0
      %1635 = vmatpush.xpose.msra.mxu0 0.0
      %1636 = vmatpush.xpose.msra.mxu0 0.0
      %1637 = vmatpush.xpose.msra.mxu0 0.0
      %1638 = vmatpush.xpose.msra.mxu0 0.0
      %1639 = vmatpush.xpose.msra.mxu0 0.0
      %1640 = vmatpush.xpose.msra.mxu0 %v509
      %1641 = vmatpush.xpose.msra.mxu0 %v501
      %1642 = vmatpush.xpose.msra.mxu0 %v493
      %1643 = vmatpush.xpose.msra.mxu0 %v485
      %1644 = vmatpush.xpose.msra.mxu0 %v477
      %1645 = vmatpush.xpose.msra.mxu0 %v469
      %1646 = vmatpush.xpose.msra.mxu0 %v461
      %1647 = vmatmul.f32.gmra.mxu0 %v629
      %v1648 = vpop.f32.mrf.mxu0
      %v1649 = vadd.f32 %v1626, %v1648
      %1650 = vmatmul.f32.gmra.mxu0 %v637
      %v1651 = vpop.f32.mrf.mxu0
      %v1652 = vadd.f32 %v1629, %v1651
      %1653 = vdwg.mxu0
      %1654 = vmatpush.xpose.msra.mxu0 0.0
      %1655 = vmatpush.xpose.msra.mxu0 0.0
      %1656 = vmatpush.xpose.msra.mxu0 0.0
      %1657 = vmatpush.xpose.msra.mxu0 0.0
      %1658 = vmatpush.xpose.msra.mxu0 0.0
      %1659 = vmatpush.xpose.msra.mxu0 0.0
      %1660 = vmatpush.xpose.msra.mxu0 0.0
      %1661 = vmatpush.xpose.msra.mxu0 0.0
      %1662 = vmatpush.xpose.msra.mxu0 0.0
      %1663 = vmatpush.xpose.msra.mxu0 %v510
      %1664 = vmatpush.xpose.msra.mxu0 %v502
      %1665 = vmatpush.xpose.msra.mxu0 %v494
      %1666 = vmatpush.xpose.msra.mxu0 %v486
      %1667 = vmatpush.xpose.msra.mxu0 %v478
      %1668 = vmatpush.xpose.msra.mxu0 %v470
      %1669 = vmatpush.xpose.msra.mxu0 %v462
      %1670 = vmatmul.f32.gmra.mxu0 %v630
      %v1671 = vpop.f32.mrf.mxu0
      %v1672 = vadd.f32 %v1649, %v1671
      %1673 = vmatmul.f32.gmra.mxu0 %v638
      %v1674 = vpop.f32.mrf.mxu0
      %v1675 = vadd.f32 %v1652, %v1674
      %1676 = vdwg.mxu0
      %1677 = vmatpush.xpose.msra.mxu0 0.0
      %1678 = vmatpush.xpose.msra.mxu0 0.0
      %1679 = vmatpush.xpose.msra.mxu0 0.0
      %1680 = vmatpush.xpose.msra.mxu0 0.0
      %1681 = vmatpush.xpose.msra.mxu0 0.0
      %1682 = vmatpush.xpose.msra.mxu0 0.0
      %1683 = vmatpush.xpose.msra.mxu0 0.0
      %1684 = vmatpush.xpose.msra.mxu0 0.0
      %1685 = vmatpush.xpose.msra.mxu0 0.0
      %1686 = vmatpush.xpose.msra.mxu0 %v511
      %1687 = vmatpush.xpose.msra.mxu0 %v503
      %1688 = vmatpush.xpose.msra.mxu0 %v495
      %1689 = vmatpush.xpose.msra.mxu0 %v487
      %1690 = vmatpush.xpose.msra.mxu0 %v479
      %1691 = vmatpush.xpose.msra.mxu0 %v471
      %1692 = vmatpush.xpose.msra.mxu0 %v463
      %1693 = vmatmul.f32.gmra.mxu0 %v631
      %v1694 = vpop.f32.mrf.mxu0
      %v1695 = vadd.f32 %v1672, %v1694
      %1696 = vmatmul.f32.gmra.mxu0 %v639
      %v1697 = vpop.f32.mrf.mxu0
      %v1698 = vadd.f32 %v1675, %v1697
      %1699 = vdwg.mxu0
      %1700 = vmatpush.xpose.msra.mxu0 0.0
      %1701 = vmatpush.xpose.msra.mxu0 0.0
      %1702 = vmatpush.xpose.msra.mxu0 0.0
      %1703 = vmatpush.xpose.msra.mxu0 0.0
      %1704 = vmatpush.xpose.msra.mxu0 0.0
      %1705 = vmatpush.xpose.msra.mxu0 0.0
      %1706 = vmatpush.xpose.msra.mxu0 0.0
      %1707 = vmatpush.xpose.msra.mxu0 0.0
      %1708 = vmatpush.xpose.msra.mxu0 0.0
      %1709 = vmatpush.xpose.msra.mxu0 %v512
      %1710 = vmatpush.xpose.msra.mxu0 %v504
      %1711 = vmatpush.xpose.msra.mxu0 %v496
      %1712 = vmatpush.xpose.msra.mxu0 %v488
      %1713 = vmatpush.xpose.msra.mxu0 %v480
      %1714 = vmatpush.xpose.msra.mxu0 %v472
      %1715 = vmatpush.xpose.msra.mxu0 %v464
      %1716 = vmatmul.f32.gmra.mxu0 %v632
      %v1717 = vpop.f32.mrf.mxu0
      %v1718 = vadd.f32 %v1695, %v1717
      %1719 = vmatmul.f32.gmra.mxu0 %v640
      %v1720 = vpop.f32.mrf.mxu0
      %v1721 = vadd.f32 %v1698, %v1720
      %1722 = vdwg.mxu0
      %1723 = vmatpush.xpose.msra.mxu0 0.0
      %1724 = vmatpush.xpose.msra.mxu0 0.0
      %1725 = vmatpush.xpose.msra.mxu0 0.0
      %1726 = vmatpush.xpose.msra.mxu0 0.0
      %1727 = vmatpush.xpose.msra.mxu0 0.0
      %1728 = vmatpush.xpose.msra.mxu0 0.0
      %1729 = vmatpush.xpose.msra.mxu0 0.0
      %1730 = vmatpush.xpose.msra.mxu0 0.0
      %1731 = vmatpush.xpose.msra.mxu0 0.0
      %1732 = vmatpush.xpose.msra.mxu0 %v513
      %1733 = vmatpush.xpose.msra.mxu0 %v505
      %1734 = vmatpush.xpose.msra.mxu0 %v497
      %1735 = vmatpush.xpose.msra.mxu0 %v489
      %1736 = vmatpush.xpose.msra.mxu0 %v481
      %1737 = vmatpush.xpose.msra.mxu0 %v473
      %1738 = vmatpush.xpose.msra.mxu0 %v465
      %1739 = vmatmul.f32.gmra.mxu0 %v633
      %v1740 = vpop.f32.mrf.mxu0
      %v1741 = vadd.f32 %v1718, %v1740
      %1742 = vmatmul.f32.gmra.mxu0 %v641
      %v1743 = vpop.f32.mrf.mxu0
      %v1744 = vadd.f32 %v1721, %v1743
      %1745 = vdwg.mxu0
      %1746 = vmatpush.xpose.msra.mxu0 0.0
      %1747 = vmatpush.xpose.msra.mxu0 0.0
      %1748 = vmatpush.xpose.msra.mxu0 0.0
      %1749 = vmatpush.xpose.msra.mxu0 0.0
      %1750 = vmatpush.xpose.msra.mxu0 0.0
      %1751 = vmatpush.xpose.msra.mxu0 0.0
      %1752 = vmatpush.xpose.msra.mxu0 0.0
      %1753 = vmatpush.xpose.msra.mxu0 0.0
      %1754 = vmatpush.xpose.msra.mxu0 0.0
      %1755 = vmatpush.xpose.msra.mxu0 %v562
      %1756 = vmatpush.xpose.msra.mxu0 %v554
      %1757 = vmatpush.xpose.msra.mxu0 %v546
      %1758 = vmatpush.xpose.msra.mxu0 %v538
      %1759 = vmatpush.xpose.msra.mxu0 %v530
      %1760 = vmatpush.xpose.msra.mxu0 %v522
      %1761 = vmatpush.xpose.msra.mxu0 %v514
      %1762 = vmatmul.f32.gmra.mxu0 %v626
      %v1763 = vpop.f32.mrf.mxu0
      %v1764 = vadd.f32 0.0, %v1763
      %1765 = vmatmul.f32.gmra.mxu0 %v634
      %v1766 = vpop.f32.mrf.mxu0
      %v1767 = vadd.f32 0.0, %v1766
      %1768 = vdwg.mxu0
      %1769 = vmatpush.xpose.msra.mxu0 0.0
      %1770 = vmatpush.xpose.msra.mxu0 0.0
      %1771 = vmatpush.xpose.msra.mxu0 0.0
      %1772 = vmatpush.xpose.msra.mxu0 0.0
      %1773 = vmatpush.xpose.msra.mxu0 0.0
      %1774 = vmatpush.xpose.msra.mxu0 0.0
      %1775 = vmatpush.xpose.msra.mxu0 0.0
      %1776 = vmatpush.xpose.msra.mxu0 0.0
      %1777 = vmatpush.xpose.msra.mxu0 0.0
      %1778 = vmatpush.xpose.msra.mxu0 %v563
      %1779 = vmatpush.xpose.msra.mxu0 %v555
      %1780 = vmatpush.xpose.msra.mxu0 %v547
      %1781 = vmatpush.xpose.msra.mxu0 %v539
      %1782 = vmatpush.xpose.msra.mxu0 %v531
      %1783 = vmatpush.xpose.msra.mxu0 %v523
      %1784 = vmatpush.xpose.msra.mxu0 %v515
      %1785 = vmatmul.f32.gmra.mxu0 %v627
      %v1786 = vpop.f32.mrf.mxu0
      %v1787 = vadd.f32 %v1764, %v1786
      %1788 = vmatmul.f32.gmra.mxu0 %v635
      %v1789 = vpop.f32.mrf.mxu0
      %v1790 = vadd.f32 %v1767, %v1789
      %1791 = vdwg.mxu0
      %1792 = vmatpush.xpose.msra.mxu0 0.0
      %1793 = vmatpush.xpose.msra.mxu0 0.0
      %1794 = vmatpush.xpose.msra.mxu0 0.0
      %1795 = vmatpush.xpose.msra.mxu0 0.0
      %1796 = vmatpush.xpose.msra.mxu0 0.0
      %1797 = vmatpush.xpose.msra.mxu0 0.0
      %1798 = vmatpush.xpose.msra.mxu0 0.0
      %1799 = vmatpush.xpose.msra.mxu0 0.0
      %1800 = vmatpush.xpose.msra.mxu0 0.0
      %1801 = vmatpush.xpose.msra.mxu0 %v564
      %1802 = vmatpush.xpose.msra.mxu0 %v556
      %1803 = vmatpush.xpose.msra.mxu0 %v548
      %1804 = vmatpush.xpose.msra.mxu0 %v540
      %1805 = vmatpush.xpose.msra.mxu0 %v532
      %1806 = vmatpush.xpose.msra.mxu0 %v524
      %1807 = vmatpush.xpose.msra.mxu0 %v516
      %1808 = vmatmul.f32.gmra.mxu0 %v628
      %v1809 = vpop.f32.mrf.mxu0
      %v1810 = vadd.f32 %v1787, %v1809
      %1811 = vmatmul.f32.gmra.mxu0 %v636
      %v1812 = vpop.f32.mrf.mxu0
      %v1813 = vadd.f32 %v1790, %v1812
      %1814 = vdwg.mxu0
      %1815 = vmatpush.xpose.msra.mxu0 0.0
      %1816 = vmatpush.xpose.msra.mxu0 0.0
      %1817 = vmatpush.xpose.msra.mxu0 0.0
      %1818 = vmatpush.xpose.msra.mxu0 0.0
      %1819 = vmatpush.xpose.msra.mxu0 0.0
      %1820 = vmatpush.xpose.msra.mxu0 0.0
      %1821 = vmatpush.xpose.msra.mxu0 0.0
      %1822 = vmatpush.xpose.msra.mxu0 0.0
      %1823 = vmatpush.xpose.msra.mxu0 0.0
      %1824 = vmatpush.xpose.msra.mxu0 %v565
      %1825 = vmatpush.xpose.msra.mxu0 %v557
      %1826 = vmatpush.xpose.msra.mxu0 %v549
      %1827 = vmatpush.xpose.msra.mxu0 %v541
      %1828 = vmatpush.xpose.msra.mxu0 %v533
      %1829 = vmatpush.xpose.msra.mxu0 %v525
      %1830 = vmatpush.xpose.msra.mxu0 %v517
      %1831 = vmatmul.f32.gmra.mxu0 %v629
      %v1832 = vpop.f32.mrf.mxu0
      %v1833 = vadd.f32 %v1810, %v1832
      %1834 = vmatmul.f32.gmra.mxu0 %v637
      %v1835 = vpop.f32.mrf.mxu0
      %v1836 = vadd.f32 %v1813, %v1835
      %1837 = vdwg.mxu0
      %1838 = vmatpush.xpose.msra.mxu0 0.0
      %1839 = vmatpush.xpose.msra.mxu0 0.0
      %1840 = vmatpush.xpose.msra.mxu0 0.0
      %1841 = vmatpush.xpose.msra.mxu0 0.0
      %1842 = vmatpush.xpose.msra.mxu0 0.0
      %1843 = vmatpush.xpose.msra.mxu0 0.0
      %1844 = vmatpush.xpose.msra.mxu0 0.0
      %1845 = vmatpush.xpose.msra.mxu0 0.0
      %1846 = vmatpush.xpose.msra.mxu0 0.0
      %1847 = vmatpush.xpose.msra.mxu0 %v566
      %1848 = vmatpush.xpose.msra.mxu0 %v558
      %1849 = vmatpush.xpose.msra.mxu0 %v550
      %1850 = vmatpush.xpose.msra.mxu0 %v542
      %1851 = vmatpush.xpose.msra.mxu0 %v534
      %1852 = vmatpush.xpose.msra.mxu0 %v526
      %1853 = vmatpush.xpose.msra.mxu0 %v518
      %1854 = vmatmul.f32.gmra.mxu0 %v630
      %v1855 = vpop.f32.mrf.mxu0
      %v1856 = vadd.f32 %v1833, %v1855
      %1857 = vmatmul.f32.gmra.mxu0 %v638
      %v1858 = vpop.f32.mrf.mxu0
      %v1859 = vadd.f32 %v1836, %v1858
      %1860 = vdwg.mxu0
      %1861 = vmatpush.xpose.msra.mxu0 0.0
      %1862 = vmatpush.xpose.msra.mxu0 0.0
      %1863 = vmatpush.xpose.msra.mxu0 0.0
      %1864 = vmatpush.xpose.msra.mxu0 0.0
      %1865 = vmatpush.xpose.msra.mxu0 0.0
      %1866 = vmatpush.xpose.msra.mxu0 0.0
      %1867 = vmatpush.xpose.msra.mxu0 0.0
      %1868 = vmatpush.xpose.msra.mxu0 0.0
      %1869 = vmatpush.xpose.msra.mxu0 0.0
      %1870 = vmatpush.xpose.msra.mxu0 %v567
      %1871 = vmatpush.xpose.msra.mxu0 %v559
      %1872 = vmatpush.xpose.msra.mxu0 %v551
      %1873 = vmatpush.xpose.msra.mxu0 %v543
      %1874 = vmatpush.xpose.msra.mxu0 %v535
      %1875 = vmatpush.xpose.msra.mxu0 %v527
      %1876 = vmatpush.xpose.msra.mxu0 %v519
      %1877 = vmatmul.f32.gmra.mxu0 %v631
      %v1878 = vpop.f32.mrf.mxu0
      %v1879 = vadd.f32 %v1856, %v1878
      %1880 = vmatmul.f32.gmra.mxu0 %v639
      %v1881 = vpop.f32.mrf.mxu0
      %v1882 = vadd.f32 %v1859, %v1881
      %1883 = vdwg.mxu0
      %1884 = vmatpush.xpose.msra.mxu0 0.0
      %1885 = vmatpush.xpose.msra.mxu0 0.0
      %1886 = vmatpush.xpose.msra.mxu0 0.0
      %1887 = vmatpush.xpose.msra.mxu0 0.0
      %1888 = vmatpush.xpose.msra.mxu0 0.0
      %1889 = vmatpush.xpose.msra.mxu0 0.0
      %1890 = vmatpush.xpose.msra.mxu0 0.0
      %1891 = vmatpush.xpose.msra.mxu0 0.0
      %1892 = vmatpush.xpose.msra.mxu0 0.0
      %1893 = vmatpush.xpose.msra.mxu0 %v568
      %1894 = vmatpush.xpose.msra.mxu0 %v560
      %1895 = vmatpush.xpose.msra.mxu0 %v552
      %1896 = vmatpush.xpose.msra.mxu0 %v544
      %1897 = vmatpush.xpose.msra.mxu0 %v536
      %1898 = vmatpush.xpose.msra.mxu0 %v528
      %1899 = vmatpush.xpose.msra.mxu0 %v520
      %1900 = vmatmul.f32.gmra.mxu0 %v632
      %v1901 = vpop.f32.mrf.mxu0
      %v1902 = vadd.f32 %v1879, %v1901
      %1903 = vmatmul.f32.gmra.mxu0 %v640
      %v1904 = vpop.f32.mrf.mxu0
      %v1905 = vadd.f32 %v1882, %v1904
      %1906 = vdwg.mxu0
      %1907 = vmatpush.xpose.msra.mxu0 0.0
      %1908 = vmatpush.xpose.msra.mxu0 0.0
      %1909 = vmatpush.xpose.msra.mxu0 0.0
      %1910 = vmatpush.xpose.msra.mxu0 0.0
      %1911 = vmatpush.xpose.msra.mxu0 0.0
      %1912 = vmatpush.xpose.msra.mxu0 0.0
      %1913 = vmatpush.xpose.msra.mxu0 0.0
      %1914 = vmatpush.xpose.msra.mxu0 0.0
      %1915 = vmatpush.xpose.msra.mxu0 0.0
      %1916 = vmatpush.xpose.msra.mxu0 %v569
      %1917 = vmatpush.xpose.msra.mxu0 %v561
      %1918 = vmatpush.xpose.msra.mxu0 %v553
      %1919 = vmatpush.xpose.msra.mxu0 %v545
      %1920 = vmatpush.xpose.msra.mxu0 %v537
      %1921 = vmatpush.xpose.msra.mxu0 %v529
      %1922 = vmatpush.xpose.msra.mxu0 %v521
      %1923 = vmatmul.f32.gmra.mxu0 %v633
      %v1924 = vpop.f32.mrf.mxu0
      %v1925 = vadd.f32 %v1902, %v1924
      %1926 = vmatmul.f32.gmra.mxu0 %v641
      %v1927 = vpop.f32.mrf.mxu0
      %v1928 = vadd.f32 %v1905, %v1927
      %1929 = vdwg.mxu0
      %1930 = vmatpush.xpose.msra.mxu0 0.0
      %1931 = vmatpush.xpose.msra.mxu0 0.0
      %1932 = vmatpush.xpose.msra.mxu0 0.0
      %1933 = vmatpush.xpose.msra.mxu0 0.0
      %1934 = vmatpush.xpose.msra.mxu0 0.0
      %1935 = vmatpush.xpose.msra.mxu0 0.0
      %1936 = vmatpush.xpose.msra.mxu0 0.0
      %1937 = vmatpush.xpose.msra.mxu0 0.0
      %1938 = vmatpush.xpose.msra.mxu0 0.0
      %1939 = vmatpush.xpose.msra.mxu0 %v618
      %1940 = vmatpush.xpose.msra.mxu0 %v610
      %1941 = vmatpush.xpose.msra.mxu0 %v602
      %1942 = vmatpush.xpose.msra.mxu0 %v594
      %1943 = vmatpush.xpose.msra.mxu0 %v586
      %1944 = vmatpush.xpose.msra.mxu0 %v578
      %1945 = vmatpush.xpose.msra.mxu0 %v570
      %1946 = vmatmul.f32.gmra.mxu0 %v626
      %v1947 = vpop.f32.mrf.mxu0
      %v1948 = vadd.f32 0.0, %v1947
      %1949 = vmatmul.f32.gmra.mxu0 %v634
      %v1950 = vpop.f32.mrf.mxu0
      %v1951 = vadd.f32 0.0, %v1950
      %1952 = vdwg.mxu0
      %1953 = vmatpush.xpose.msra.mxu0 0.0
      %1954 = vmatpush.xpose.msra.mxu0 0.0
      %1955 = vmatpush.xpose.msra.mxu0 0.0
      %1956 = vmatpush.xpose.msra.mxu0 0.0
      %1957 = vmatpush.xpose.msra.mxu0 0.0
      %1958 = vmatpush.xpose.msra.mxu0 0.0
      %1959 = vmatpush.xpose.msra.mxu0 0.0
      %1960 = vmatpush.xpose.msra.mxu0 0.0
      %1961 = vmatpush.xpose.msra.mxu0 0.0
      %1962 = vmatpush.xpose.msra.mxu0 %v619
      %1963 = vmatpush.xpose.msra.mxu0 %v611
      %1964 = vmatpush.xpose.msra.mxu0 %v603
      %1965 = vmatpush.xpose.msra.mxu0 %v595
      %1966 = vmatpush.xpose.msra.mxu0 %v587
      %1967 = vmatpush.xpose.msra.mxu0 %v579
      %1968 = vmatpush.xpose.msra.mxu0 %v571
      %1969 = vmatmul.f32.gmra.mxu0 %v627
      %v1970 = vpop.f32.mrf.mxu0
      %v1971 = vadd.f32 %v1948, %v1970
      %1972 = vmatmul.f32.gmra.mxu0 %v635
      %v1973 = vpop.f32.mrf.mxu0
      %v1974 = vadd.f32 %v1951, %v1973
      %1975 = vdwg.mxu0
      %1976 = vmatpush.xpose.msra.mxu0 0.0
      %1977 = vmatpush.xpose.msra.mxu0 0.0
      %1978 = vmatpush.xpose.msra.mxu0 0.0
      %1979 = vmatpush.xpose.msra.mxu0 0.0
      %1980 = vmatpush.xpose.msra.mxu0 0.0
      %1981 = vmatpush.xpose.msra.mxu0 0.0
      %1982 = vmatpush.xpose.msra.mxu0 0.0
      %1983 = vmatpush.xpose.msra.mxu0 0.0
      %1984 = vmatpush.xpose.msra.mxu0 0.0
      %1985 = vmatpush.xpose.msra.mxu0 %v620
      %1986 = vmatpush.xpose.msra.mxu0 %v612
      %1987 = vmatpush.xpose.msra.mxu0 %v604
      %1988 = vmatpush.xpose.msra.mxu0 %v596
      %1989 = vmatpush.xpose.msra.mxu0 %v588
      %1990 = vmatpush.xpose.msra.mxu0 %v580
      %1991 = vmatpush.xpose.msra.mxu0 %v572
      %1992 = vmatmul.f32.gmra.mxu0 %v628
      %v1993 = vpop.f32.mrf.mxu0
      %v1994 = vadd.f32 %v1971, %v1993
      %1995 = vmatmul.f32.gmra.mxu0 %v636
      %v1996 = vpop.f32.mrf.mxu0
      %v1997 = vadd.f32 %v1974, %v1996
      %1998 = vdwg.mxu0
      %1999 = vmatpush.xpose.msra.mxu0 0.0
      %2000 = vmatpush.xpose.msra.mxu0 0.0
      %2001 = vmatpush.xpose.msra.mxu0 0.0
      %2002 = vmatpush.xpose.msra.mxu0 0.0
      %2003 = vmatpush.xpose.msra.mxu0 0.0
      %2004 = vmatpush.xpose.msra.mxu0 0.0
      %2005 = vmatpush.xpose.msra.mxu0 0.0
      %2006 = vmatpush.xpose.msra.mxu0 0.0
      %2007 = vmatpush.xpose.msra.mxu0 0.0
      %2008 = vmatpush.xpose.msra.mxu0 %v621
      %2009 = vmatpush.xpose.msra.mxu0 %v613
      %2010 = vmatpush.xpose.msra.mxu0 %v605
      %2011 = vmatpush.xpose.msra.mxu0 %v597
      %2012 = vmatpush.xpose.msra.mxu0 %v589
      %2013 = vmatpush.xpose.msra.mxu0 %v581
      %2014 = vmatpush.xpose.msra.mxu0 %v573
      %2015 = vmatmul.f32.gmra.mxu0 %v629
      %v2016 = vpop.f32.mrf.mxu0
      %v2017 = vadd.f32 %v1994, %v2016
      %2018 = vmatmul.f32.gmra.mxu0 %v637
      %v2019 = vpop.f32.mrf.mxu0
      %v2020 = vadd.f32 %v1997, %v2019
      %2021 = vdwg.mxu0
      %2022 = vmatpush.xpose.msra.mxu0 0.0
      %2023 = vmatpush.xpose.msra.mxu0 0.0
      %2024 = vmatpush.xpose.msra.mxu0 0.0
      %2025 = vmatpush.xpose.msra.mxu0 0.0
      %2026 = vmatpush.xpose.msra.mxu0 0.0
      %2027 = vmatpush.xpose.msra.mxu0 0.0
      %2028 = vmatpush.xpose.msra.mxu0 0.0
      %2029 = vmatpush.xpose.msra.mxu0 0.0
      %2030 = vmatpush.xpose.msra.mxu0 0.0
      %2031 = vmatpush.xpose.msra.mxu0 %v622
      %2032 = vmatpush.xpose.msra.mxu0 %v614
      %2033 = vmatpush.xpose.msra.mxu0 %v606
      %2034 = vmatpush.xpose.msra.mxu0 %v598
      %2035 = vmatpush.xpose.msra.mxu0 %v590
      %2036 = vmatpush.xpose.msra.mxu0 %v582
      %2037 = vmatpush.xpose.msra.mxu0 %v574
      %2038 = vmatmul.f32.gmra.mxu0 %v630
      %v2039 = vpop.f32.mrf.mxu0
      %v2040 = vadd.f32 %v2017, %v2039
      %2041 = vmatmul.f32.gmra.mxu0 %v638
      %v2042 = vpop.f32.mrf.mxu0
      %v2043 = vadd.f32 %v2020, %v2042
      %2044 = vdwg.mxu0
      %2045 = vmatpush.xpose.msra.mxu0 0.0
      %2046 = vmatpush.xpose.msra.mxu0 0.0
      %2047 = vmatpush.xpose.msra.mxu0 0.0
      %2048 = vmatpush.xpose.msra.mxu0 0.0
      %2049 = vmatpush.xpose.msra.mxu0 0.0
      %2050 = vmatpush.xpose.msra.mxu0 0.0
      %2051 = vmatpush.xpose.msra.mxu0 0.0
      %2052 = vmatpush.xpose.msra.mxu0 0.0
      %2053 = vmatpush.xpose.msra.mxu0 0.0
      %2054 = vmatpush.xpose.msra.mxu0 %v623
      %2055 = vmatpush.xpose.msra.mxu0 %v615
      %2056 = vmatpush.xpose.msra.mxu0 %v607
      %2057 = vmatpush.xpose.msra.mxu0 %v599
      %2058 = vmatpush.xpose.msra.mxu0 %v591
      %2059 = vmatpush.xpose.msra.mxu0 %v583
      %2060 = vmatpush.xpose.msra.mxu0 %v575
      %2061 = vmatmul.f32.gmra.mxu0 %v631
      %v2062 = vpop.f32.mrf.mxu0
      %v2063 = vadd.f32 %v2040, %v2062
      %2064 = vmatmul.f32.gmra.mxu0 %v639
      %v2065 = vpop.f32.mrf.mxu0
      %v2066 = vadd.f32 %v2043, %v2065
      %2067 = vdwg.mxu0
      %2068 = vmatpush.xpose.msra.mxu0 0.0
      %2069 = vmatpush.xpose.msra.mxu0 0.0
      %2070 = vmatpush.xpose.msra.mxu0 0.0
      %2071 = vmatpush.xpose.msra.mxu0 0.0
      %2072 = vmatpush.xpose.msra.mxu0 0.0
      %2073 = vmatpush.xpose.msra.mxu0 0.0
      %2074 = vmatpush.xpose.msra.mxu0 0.0
      %2075 = vmatpush.xpose.msra.mxu0 0.0
      %2076 = vmatpush.xpose.msra.mxu0 0.0
      %2077 = vmatpush.xpose.msra.mxu0 %v624
      %2078 = vmatpush.xpose.msra.mxu0 %v616
      %2079 = vmatpush.xpose.msra.mxu0 %v608
      %2080 = vmatpush.xpose.msra.mxu0 %v600
      %2081 = vmatpush.xpose.msra.mxu0 %v592
      %2082 = vmatpush.xpose.msra.mxu0 %v584
      %2083 = vmatpush.xpose.msra.mxu0 %v576
      %2084 = vmatmul.f32.gmra.mxu0 %v632
      %v2085 = vpop.f32.mrf.mxu0
      %v2086 = vadd.f32 %v2063, %v2085
      %2087 = vmatmul.f32.gmra.mxu0 %v640
      %v2088 = vpop.f32.mrf.mxu0
      %v2089 = vadd.f32 %v2066, %v2088
      %2090 = vdwg.mxu0
      %2091 = vmatpush.xpose.msra.mxu0 0.0
      %2092 = vmatpush.xpose.msra.mxu0 0.0
      %2093 = vmatpush.xpose.msra.mxu0 0.0
      %2094 = vmatpush.xpose.msra.mxu0 0.0
      %2095 = vmatpush.xpose.msra.mxu0 0.0
      %2096 = vmatpush.xpose.msra.mxu0 0.0
      %2097 = vmatpush.xpose.msra.mxu0 0.0
      %2098 = vmatpush.xpose.msra.mxu0 0.0
      %2099 = vmatpush.xpose.msra.mxu0 0.0
      %2100 = vmatpush.xpose.msra.mxu0 %v625
      %2101 = vmatpush.xpose.msra.mxu0 %v617
      %2102 = vmatpush.xpose.msra.mxu0 %v609
      %2103 = vmatpush.xpose.msra.mxu0 %v601
      %2104 = vmatpush.xpose.msra.mxu0 %v593
      %2105 = vmatpush.xpose.msra.mxu0 %v585
      %2106 = vmatpush.xpose.msra.mxu0 %v577
      %2107 = vmatmul.f32.gmra.mxu0 %v633
      %v2108 = vpop.f32.mrf.mxu0
      %v2109 = vadd.f32 %v2086, %v2108
      %2110 = vmatmul.f32.gmra.mxu0 %v641
      %v2111 = vpop.f32.mrf.mxu0
      %v2112 = vadd.f32 %v2089, %v2111
      %2113 = vdwg.mxu0
      %v2114 = vadd.f32 %v821, 0.0
      %v2115 = vadd.f32 %v1005, 0.0
      %v2116 = vadd.f32 %v1189, 0.0
      %v2117 = vadd.f32 %v1373, 0.0
      %v2118 = vadd.f32 %v1557, 0.0
      %v2119 = vadd.f32 %v1741, 0.0
      %v2120 = vadd.f32 %v1925, 0.0
      %v2121 = vadd.f32 %v2109, 0.0
      %v2130 = vrot.slane %v821, 1
      %v2131 = vrot.slane %v1005, 1
      %v2132 = vrot.slane %v1189, 1
      %v2133 = vrot.slane %v1373, 1
      %v2134 = vrot.slane %v1557, 1
      %v2135 = vrot.slane %v1741, 1
      %v2136 = vrot.slane %v1925, 1
      %v2137 = vrot.slane %v2109, 1
      %2138 = vrot.lane.b32.xlu0 %v2130, 127
      %v2139 = vpop.permute.xlu0 %2138
      %2140 = vrot.lane.b32.xlu0 %v2131, 127
      %v2141 = vpop.permute.xlu0 %2140
      %2142 = vrot.lane.b32.xlu0 %v2132, 127
      %v2143 = vpop.permute.xlu0 %2142
      %2144 = vrot.lane.b32.xlu0 %v2133, 127
      %v2145 = vpop.permute.xlu0 %2144
      %2146 = vrot.lane.b32.xlu0 %v2134, 127
      %v2147 = vpop.permute.xlu0 %2146
      %2148 = vrot.lane.b32.xlu0 %v2135, 127
      %v2149 = vpop.permute.xlu0 %2148
      %2150 = vrot.lane.b32.xlu0 %v2136, 127
      %v2151 = vpop.permute.xlu0 %2150
      %2152 = vrot.lane.b32.xlu0 %v2137, 127
      %v2153 = vpop.permute.xlu0 %2152
      %v2162 = vadd.f32 %v2114, %v2139
      %v2163 = vadd.f32 %v2115, %v2141
      %v2164 = vadd.f32 %v2116, %v2143
      %v2165 = vadd.f32 %v2117, %v2145
      %v2166 = vadd.f32 %v2118, %v2147
      %v2167 = vadd.f32 %v2119, %v2149
      %v2168 = vadd.f32 %v2120, %v2151
      %v2169 = vadd.f32 %v2121, %v2153
      %v2170 = vrot.slane %v821, 2
      %v2171 = vrot.slane %v1005, 2
      %v2172 = vrot.slane %v1189, 2
      %v2173 = vrot.slane %v1373, 2
      %v2174 = vrot.slane %v1557, 2
      %v2175 = vrot.slane %v1741, 2
      %v2176 = vrot.slane %v1925, 2
      %v2177 = vrot.slane %v2109, 2
      %2178 = vrot.lane.b32.xlu0 %v2170, 126
      %v2179 = vpop.permute.xlu0 %2178
      %2180 = vrot.lane.b32.xlu0 %v2171, 126
      %v2181 = vpop.permute.xlu0 %2180
      %2182 = vrot.lane.b32.xlu0 %v2172, 126
      %v2183 = vpop.permute.xlu0 %2182
      %2184 = vrot.lane.b32.xlu0 %v2173, 126
      %v2185 = vpop.permute.xlu0 %2184
      %2186 = vrot.lane.b32.xlu0 %v2174, 126
      %v2187 = vpop.permute.xlu0 %2186
      %2188 = vrot.lane.b32.xlu0 %v2175, 126
      %v2189 = vpop.permute.xlu0 %2188
      %2190 = vrot.lane.b32.xlu0 %v2176, 126
      %v2191 = vpop.permute.xlu0 %2190
      %2192 = vrot.lane.b32.xlu0 %v2177, 126
      %v2193 = vpop.permute.xlu0 %2192
      %v2202 = vadd.f32 %v2162, %v2179
      %v2203 = vadd.f32 %v2163, %v2181
      %v2204 = vadd.f32 %v2164, %v2183
      %v2205 = vadd.f32 %v2165, %v2185
      %v2206 = vadd.f32 %v2166, %v2187
      %v2207 = vadd.f32 %v2167, %v2189
      %v2208 = vadd.f32 %v2168, %v2191
      %v2209 = vadd.f32 %v2169, %v2193
      %v2210 = vrot.slane %v821, 3
      %v2211 = vrot.slane %v1005, 3
      %v2212 = vrot.slane %v1189, 3
      %v2213 = vrot.slane %v1373, 3
      %v2214 = vrot.slane %v1557, 3
      %v2215 = vrot.slane %v1741, 3
      %v2216 = vrot.slane %v1925, 3
      %v2217 = vrot.slane %v2109, 3
      %2218 = vrot.lane.b32.xlu0 %v2210, 125
      %v2219 = vpop.permute.xlu0 %2218
      %2220 = vrot.lane.b32.xlu0 %v2211, 125
      %v2221 = vpop.permute.xlu0 %2220
      %2222 = vrot.lane.b32.xlu0 %v2212, 125
      %v2223 = vpop.permute.xlu0 %2222
      %2224 = vrot.lane.b32.xlu0 %v2213, 125
      %v2225 = vpop.permute.xlu0 %2224
      %2226 = vrot.lane.b32.xlu0 %v2214, 125
      %v2227 = vpop.permute.xlu0 %2226
      %2228 = vrot.lane.b32.xlu0 %v2215, 125
      %v2229 = vpop.permute.xlu0 %2228
      %2230 = vrot.lane.b32.xlu0 %v2216, 125
      %v2231 = vpop.permute.xlu0 %2230
      %2232 = vrot.lane.b32.xlu0 %v2217, 125
      %v2233 = vpop.permute.xlu0 %2232
      %v2242 = vadd.f32 %v2202, %v2219
      %v2243 = vadd.f32 %v2203, %v2221
      %v2244 = vadd.f32 %v2204, %v2223
      %v2245 = vadd.f32 %v2205, %v2225
      %v2246 = vadd.f32 %v2206, %v2227
      %v2247 = vadd.f32 %v2207, %v2229
      %v2248 = vadd.f32 %v2208, %v2231
      %v2249 = vadd.f32 %v2209, %v2233
      %v2250 = vrot.slane %v821, 4
      %v2251 = vrot.slane %v1005, 4
      %v2252 = vrot.slane %v1189, 4
      %v2253 = vrot.slane %v1373, 4
      %v2254 = vrot.slane %v1557, 4
      %v2255 = vrot.slane %v1741, 4
      %v2256 = vrot.slane %v1925, 4
      %v2257 = vrot.slane %v2109, 4
      %2258 = vrot.lane.b32.xlu0 %v2250, 121
      %v2259 = vpop.permute.xlu0 %2258
      %2260 = vrot.lane.b32.xlu0 %v2251, 121
      %v2261 = vpop.permute.xlu0 %2260
      %2262 = vrot.lane.b32.xlu0 %v2252, 121
      %v2263 = vpop.permute.xlu0 %2262
      %2264 = vrot.lane.b32.xlu0 %v2253, 121
      %v2265 = vpop.permute.xlu0 %2264
      %2266 = vrot.lane.b32.xlu0 %v2254, 121
      %v2267 = vpop.permute.xlu0 %2266
      %2268 = vrot.lane.b32.xlu0 %v2255, 121
      %v2269 = vpop.permute.xlu0 %2268
      %2270 = vrot.lane.b32.xlu0 %v2256, 121
      %v2271 = vpop.permute.xlu0 %2270
      %2272 = vrot.lane.b32.xlu0 %v2257, 121
      %v2273 = vpop.permute.xlu0 %2272
      %v2282 = vadd.f32 %v2242, %v2259
      %v2283 = vadd.f32 %v2243, %v2261
      %v2284 = vadd.f32 %v2244, %v2263
      %v2285 = vadd.f32 %v2245, %v2265
      %v2286 = vadd.f32 %v2246, %v2267
      %v2287 = vadd.f32 %v2247, %v2269
      %v2288 = vadd.f32 %v2248, %v2271
      %v2289 = vadd.f32 %v2249, %v2273
      %v2290 = vrot.slane %v821, 5
      %v2291 = vrot.slane %v1005, 5
      %v2292 = vrot.slane %v1189, 5
      %v2293 = vrot.slane %v1373, 5
      %v2294 = vrot.slane %v1557, 5
      %v2295 = vrot.slane %v1741, 5
      %v2296 = vrot.slane %v1925, 5
      %v2297 = vrot.slane %v2109, 5
      %2298 = vrot.lane.b32.xlu0 %v2290, 120
      %v2299 = vpop.permute.xlu0 %2298
      %2300 = vrot.lane.b32.xlu0 %v2291, 120
      %v2301 = vpop.permute.xlu0 %2300
      %2302 = vrot.lane.b32.xlu0 %v2292, 120
      %v2303 = vpop.permute.xlu0 %2302
      %2304 = vrot.lane.b32.xlu0 %v2293, 120
      %v2305 = vpop.permute.xlu0 %2304
      %2306 = vrot.lane.b32.xlu0 %v2294, 120
      %v2307 = vpop.permute.xlu0 %2306
      %2308 = vrot.lane.b32.xlu0 %v2295, 120
      %v2309 = vpop.permute.xlu0 %2308
      %2310 = vrot.lane.b32.xlu0 %v2296, 120
      %v2311 = vpop.permute.xlu0 %2310
      %2312 = vrot.lane.b32.xlu0 %v2297, 120
      %v2313 = vpop.permute.xlu0 %2312
      %v2322 = vadd.f32 %v2282, %v2299
      %v2323 = vadd.f32 %v2283, %v2301
      %v2324 = vadd.f32 %v2284, %v2303
      %v2325 = vadd.f32 %v2285, %v2305
      %v2326 = vadd.f32 %v2286, %v2307
      %v2327 = vadd.f32 %v2287, %v2309
      %v2328 = vadd.f32 %v2288, %v2311
      %v2329 = vadd.f32 %v2289, %v2313
      %v2330 = vrot.slane %v821, 6
      %v2331 = vrot.slane %v1005, 6
      %v2332 = vrot.slane %v1189, 6
      %v2333 = vrot.slane %v1373, 6
      %v2334 = vrot.slane %v1557, 6
      %v2335 = vrot.slane %v1741, 6
      %v2336 = vrot.slane %v1925, 6
      %v2337 = vrot.slane %v2109, 6
      %2338 = vrot.lane.b32.xlu0 %v2330, 119
      %v2339 = vpop.permute.xlu0 %2338
      %2340 = vrot.lane.b32.xlu0 %v2331, 119
      %v2341 = vpop.permute.xlu0 %2340
      %2342 = vrot.lane.b32.xlu0 %v2332, 119
      %v2343 = vpop.permute.xlu0 %2342
      %2344 = vrot.lane.b32.xlu0 %v2333, 119
      %v2345 = vpop.permute.xlu0 %2344
      %2346 = vrot.lane.b32.xlu0 %v2334, 119
      %v2347 = vpop.permute.xlu0 %2346
      %2348 = vrot.lane.b32.xlu0 %v2335, 119
      %v2349 = vpop.permute.xlu0 %2348
      %2350 = vrot.lane.b32.xlu0 %v2336, 119
      %v2351 = vpop.permute.xlu0 %2350
      %2352 = vrot.lane.b32.xlu0 %v2337, 119
      %v2353 = vpop.permute.xlu0 %2352
      %v2362 = vadd.f32 %v2322, %v2339
      %v2363 = vadd.f32 %v2323, %v2341
      %v2364 = vadd.f32 %v2324, %v2343
      %v2365 = vadd.f32 %v2325, %v2345
      %v2366 = vadd.f32 %v2326, %v2347
      %v2367 = vadd.f32 %v2327, %v2349
      %v2368 = vadd.f32 %v2328, %v2351
      %v2369 = vadd.f32 %v2329, %v2353
      %v2370 = vrot.slane %v821, 7
      %v2371 = vrot.slane %v1005, 7
      %v2372 = vrot.slane %v1189, 7
      %v2373 = vrot.slane %v1373, 7
      %v2374 = vrot.slane %v1557, 7
      %v2375 = vrot.slane %v1741, 7
      %v2376 = vrot.slane %v1925, 7
      %v2377 = vrot.slane %v2109, 7
      %2378 = vrot.lane.b32.xlu0 %v2370, 118
      %v2379 = vpop.permute.xlu0 %2378
      %2380 = vrot.lane.b32.xlu0 %v2371, 118
      %v2381 = vpop.permute.xlu0 %2380
      %2382 = vrot.lane.b32.xlu0 %v2372, 118
      %v2383 = vpop.permute.xlu0 %2382
      %2384 = vrot.lane.b32.xlu0 %v2373, 118
      %v2385 = vpop.permute.xlu0 %2384
      %2386 = vrot.lane.b32.xlu0 %v2374, 118
      %v2387 = vpop.permute.xlu0 %2386
      %2388 = vrot.lane.b32.xlu0 %v2375, 118
      %v2389 = vpop.permute.xlu0 %2388
      %2390 = vrot.lane.b32.xlu0 %v2376, 118
      %v2391 = vpop.permute.xlu0 %2390
      %2392 = vrot.lane.b32.xlu0 %v2377, 118
      %v2393 = vpop.permute.xlu0 %2392
      %v2402 = vadd.f32 %v2362, %v2379
      %v2403 = vadd.f32 %v2363, %v2381
      %v2404 = vadd.f32 %v2364, %v2383
      %v2405 = vadd.f32 %v2365, %v2385
      %v2406 = vadd.f32 %v2366, %v2387
      %v2407 = vadd.f32 %v2367, %v2389
      %v2408 = vadd.f32 %v2368, %v2391
      %v2409 = vadd.f32 %v2369, %v2393
      %2418 = vrot.lane.b32.xlu0 %v824, 114
      %v2419 = vpop.permute.xlu0 %2418
      %2420 = vrot.lane.b32.xlu0 %v1008, 114
      %v2421 = vpop.permute.xlu0 %2420
      %2422 = vrot.lane.b32.xlu0 %v1192, 114
      %v2423 = vpop.permute.xlu0 %2422
      %2424 = vrot.lane.b32.xlu0 %v1376, 114
      %v2425 = vpop.permute.xlu0 %2424
      %2426 = vrot.lane.b32.xlu0 %v1560, 114
      %v2427 = vpop.permute.xlu0 %2426
      %2428 = vrot.lane.b32.xlu0 %v1744, 114
      %v2429 = vpop.permute.xlu0 %2428
      %2430 = vrot.lane.b32.xlu0 %v1928, 114
      %v2431 = vpop.permute.xlu0 %2430
      %2432 = vrot.lane.b32.xlu0 %v2112, 114
      %v2433 = vpop.permute.xlu0 %2432
      %v2442 = vadd.f32 %v2402, %v2419
      %v2443 = vadd.f32 %v2403, %v2421
      %v2444 = vadd.f32 %v2404, %v2423
      %v2445 = vadd.f32 %v2405, %v2425
      %v2446 = vadd.f32 %v2406, %v2427
      %v2447 = vadd.f32 %v2407, %v2429
      %v2448 = vadd.f32 %v2408, %v2431
      %v2449 = vadd.f32 %v2409, %v2433
      %v2450 = vrot.slane %v824, 1
      %v2451 = vrot.slane %v1008, 1
      %v2452 = vrot.slane %v1192, 1
      %v2453 = vrot.slane %v1376, 1
      %v2454 = vrot.slane %v1560, 1
      %v2455 = vrot.slane %v1744, 1
      %v2456 = vrot.slane %v1928, 1
      %v2457 = vrot.slane %v2112, 1
      %2458 = vrot.lane.b32.xlu0 %v2450, 113
      %v2459 = vpop.permute.xlu0 %2458
      %2460 = vrot.lane.b32.xlu0 %v2451, 113
      %v2461 = vpop.permute.xlu0 %2460
      %2462 = vrot.lane.b32.xlu0 %v2452, 113
      %v2463 = vpop.permute.xlu0 %2462
      %2464 = vrot.lane.b32.xlu0 %v2453, 113
      %v2465 = vpop.permute.xlu0 %2464
      %2466 = vrot.lane.b32.xlu0 %v2454, 113
      %v2467 = vpop.permute.xlu0 %2466
      %2468 = vrot.lane.b32.xlu0 %v2455, 113
      %v2469 = vpop.permute.xlu0 %2468
      %2470 = vrot.lane.b32.xlu0 %v2456, 113
      %v2471 = vpop.permute.xlu0 %2470
      %2472 = vrot.lane.b32.xlu0 %v2457, 113
      %v2473 = vpop.permute.xlu0 %2472
      %v2482 = vadd.f32 %v2442, %v2459
      %v2483 = vadd.f32 %v2443, %v2461
      %v2484 = vadd.f32 %v2444, %v2463
      %v2485 = vadd.f32 %v2445, %v2465
      %v2486 = vadd.f32 %v2446, %v2467
      %v2487 = vadd.f32 %v2447, %v2469
      %v2488 = vadd.f32 %v2448, %v2471
      %v2489 = vadd.f32 %v2449, %v2473
      %v2490 = vrot.slane %v824, 2
      %v2491 = vrot.slane %v1008, 2
      %v2492 = vrot.slane %v1192, 2
      %v2493 = vrot.slane %v1376, 2
      %v2494 = vrot.slane %v1560, 2
      %v2495 = vrot.slane %v1744, 2
      %v2496 = vrot.slane %v1928, 2
      %v2497 = vrot.slane %v2112, 2
      %2498 = vrot.lane.b32.xlu0 %v2490, 112
      %v2499 = vpop.permute.xlu0 %2498
      %2500 = vrot.lane.b32.xlu0 %v2491, 112
      %v2501 = vpop.permute.xlu0 %2500
      %2502 = vrot.lane.b32.xlu0 %v2492, 112
      %v2503 = vpop.permute.xlu0 %2502
      %2504 = vrot.lane.b32.xlu0 %v2493, 112
      %v2505 = vpop.permute.xlu0 %2504
      %2506 = vrot.lane.b32.xlu0 %v2494, 112
      %v2507 = vpop.permute.xlu0 %2506
      %2508 = vrot.lane.b32.xlu0 %v2495, 112
      %v2509 = vpop.permute.xlu0 %2508
      %2510 = vrot.lane.b32.xlu0 %v2496, 112
      %v2511 = vpop.permute.xlu0 %2510
      %2512 = vrot.lane.b32.xlu0 %v2497, 112
      %v2513 = vpop.permute.xlu0 %2512
      %v2522 = vadd.f32 %v2482, %v2499
      %v2523 = vadd.f32 %v2483, %v2501
      %v2524 = vadd.f32 %v2484, %v2503
      %v2525 = vadd.f32 %v2485, %v2505
      %v2526 = vadd.f32 %v2486, %v2507
      %v2527 = vadd.f32 %v2487, %v2509
      %v2528 = vadd.f32 %v2488, %v2511
      %v2529 = vadd.f32 %v2489, %v2513
      %v2530 = vrot.slane %v824, 3
      %v2531 = vrot.slane %v1008, 3
      %v2532 = vrot.slane %v1192, 3
      %v2533 = vrot.slane %v1376, 3
      %v2534 = vrot.slane %v1560, 3
      %v2535 = vrot.slane %v1744, 3
      %v2536 = vrot.slane %v1928, 3
      %v2537 = vrot.slane %v2112, 3
      %2538 = vrot.lane.b32.xlu0 %v2530, 111
      %v2539 = vpop.permute.xlu0 %2538
      %2540 = vrot.lane.b32.xlu0 %v2531, 111
      %v2541 = vpop.permute.xlu0 %2540
      %2542 = vrot.lane.b32.xlu0 %v2532, 111
      %v2543 = vpop.permute.xlu0 %2542
      %2544 = vrot.lane.b32.xlu0 %v2533, 111
      %v2545 = vpop.permute.xlu0 %2544
      %2546 = vrot.lane.b32.xlu0 %v2534, 111
      %v2547 = vpop.permute.xlu0 %2546
      %2548 = vrot.lane.b32.xlu0 %v2535, 111
      %v2549 = vpop.permute.xlu0 %2548
      %2550 = vrot.lane.b32.xlu0 %v2536, 111
      %v2551 = vpop.permute.xlu0 %2550
      %2552 = vrot.lane.b32.xlu0 %v2537, 111
      %v2553 = vpop.permute.xlu0 %2552
      %v2562 = vadd.f32 %v2522, %v2539
      %v2563 = vadd.f32 %v2523, %v2541
      %v2564 = vadd.f32 %v2524, %v2543
      %v2565 = vadd.f32 %v2525, %v2545
      %v2566 = vadd.f32 %v2526, %v2547
      %v2567 = vadd.f32 %v2527, %v2549
      %v2568 = vadd.f32 %v2528, %v2551
      %v2569 = vadd.f32 %v2529, %v2553
      %v2570 = vrot.slane %v824, 4
      %v2571 = vrot.slane %v1008, 4
      %v2572 = vrot.slane %v1192, 4
      %v2573 = vrot.slane %v1376, 4
      %v2574 = vrot.slane %v1560, 4
      %v2575 = vrot.slane %v1744, 4
      %v2576 = vrot.slane %v1928, 4
      %v2577 = vrot.slane %v2112, 4
      %2578 = vrot.lane.b32.xlu0 %v2570, 107
      %v2579 = vpop.permute.xlu0 %2578
      %2580 = vrot.lane.b32.xlu0 %v2571, 107
      %v2581 = vpop.permute.xlu0 %2580
      %2582 = vrot.lane.b32.xlu0 %v2572, 107
      %v2583 = vpop.permute.xlu0 %2582
      %2584 = vrot.lane.b32.xlu0 %v2573, 107
      %v2585 = vpop.permute.xlu0 %2584
      %2586 = vrot.lane.b32.xlu0 %v2574, 107
      %v2587 = vpop.permute.xlu0 %2586
      %2588 = vrot.lane.b32.xlu0 %v2575, 107
      %v2589 = vpop.permute.xlu0 %2588
      %2590 = vrot.lane.b32.xlu0 %v2576, 107
      %v2591 = vpop.permute.xlu0 %2590
      %2592 = vrot.lane.b32.xlu0 %v2577, 107
      %v2593 = vpop.permute.xlu0 %2592
      %v2602 = vadd.f32 %v2562, %v2579
      %v2603 = vadd.f32 %v2563, %v2581
      %v2604 = vadd.f32 %v2564, %v2583
      %v2605 = vadd.f32 %v2565, %v2585
      %v2606 = vadd.f32 %v2566, %v2587
      %v2607 = vadd.f32 %v2567, %v2589
      %v2608 = vadd.f32 %v2568, %v2591
      %v2609 = vadd.f32 %v2569, %v2593
      %v2610 = vrot.slane %v824, 5
      %v2611 = vrot.slane %v1008, 5
      %v2612 = vrot.slane %v1192, 5
      %v2613 = vrot.slane %v1376, 5
      %v2614 = vrot.slane %v1560, 5
      %v2615 = vrot.slane %v1744, 5
      %v2616 = vrot.slane %v1928, 5
      %v2617 = vrot.slane %v2112, 5
      %2618 = vrot.lane.b32.xlu0 %v2610, 106
      %v2619 = vpop.permute.xlu0 %2618
      %2620 = vrot.lane.b32.xlu0 %v2611, 106
      %v2621 = vpop.permute.xlu0 %2620
      %2622 = vrot.lane.b32.xlu0 %v2612, 106
      %v2623 = vpop.permute.xlu0 %2622
      %2624 = vrot.lane.b32.xlu0 %v2613, 106
      %v2625 = vpop.permute.xlu0 %2624
      %2626 = vrot.lane.b32.xlu0 %v2614, 106
      %v2627 = vpop.permute.xlu0 %2626
      %2628 = vrot.lane.b32.xlu0 %v2615, 106
      %v2629 = vpop.permute.xlu0 %2628
      %2630 = vrot.lane.b32.xlu0 %v2616, 106
      %v2631 = vpop.permute.xlu0 %2630
      %2632 = vrot.lane.b32.xlu0 %v2617, 106
      %v2633 = vpop.permute.xlu0 %2632
      %v2642 = vadd.f32 %v2602, %v2619
      %v2643 = vadd.f32 %v2603, %v2621
      %v2644 = vadd.f32 %v2604, %v2623
      %v2645 = vadd.f32 %v2605, %v2625
      %v2646 = vadd.f32 %v2606, %v2627
      %v2647 = vadd.f32 %v2607, %v2629
      %v2648 = vadd.f32 %v2608, %v2631
      %v2649 = vadd.f32 %v2609, %v2633
      %v2650 = vrot.slane %v824, 6
      %v2651 = vrot.slane %v1008, 6
      %v2652 = vrot.slane %v1192, 6
      %v2653 = vrot.slane %v1376, 6
      %v2654 = vrot.slane %v1560, 6
      %v2655 = vrot.slane %v1744, 6
      %v2656 = vrot.slane %v1928, 6
      %v2657 = vrot.slane %v2112, 6
      %2658 = vrot.lane.b32.xlu0 %v2650, 105
      %v2659 = vpop.permute.xlu0 %2658
      %2660 = vrot.lane.b32.xlu0 %v2651, 105
      %v2661 = vpop.permute.xlu0 %2660
      %2662 = vrot.lane.b32.xlu0 %v2652, 105
      %v2663 = vpop.permute.xlu0 %2662
      %2664 = vrot.lane.b32.xlu0 %v2653, 105
      %v2665 = vpop.permute.xlu0 %2664
      %2666 = vrot.lane.b32.xlu0 %v2654, 105
      %v2667 = vpop.permute.xlu0 %2666
      %2668 = vrot.lane.b32.xlu0 %v2655, 105
      %v2669 = vpop.permute.xlu0 %2668
      %2670 = vrot.lane.b32.xlu0 %v2656, 105
      %v2671 = vpop.permute.xlu0 %2670
      %2672 = vrot.lane.b32.xlu0 %v2657, 105
      %v2673 = vpop.permute.xlu0 %2672
      %v2682 = vadd.f32 %v2642, %v2659
      %v2683 = vadd.f32 %v2643, %v2661
      %v2684 = vadd.f32 %v2644, %v2663
      %v2685 = vadd.f32 %v2645, %v2665
      %v2686 = vadd.f32 %v2646, %v2667
      %v2687 = vadd.f32 %v2647, %v2669
      %v2688 = vadd.f32 %v2648, %v2671
      %v2689 = vadd.f32 %v2649, %v2673
      %v2690 = vrot.slane %v824, 7
      %v2691 = vrot.slane %v1008, 7
      %v2692 = vrot.slane %v1192, 7
      %v2693 = vrot.slane %v1376, 7
      %v2694 = vrot.slane %v1560, 7
      %v2695 = vrot.slane %v1744, 7
      %v2696 = vrot.slane %v1928, 7
      %v2697 = vrot.slane %v2112, 7
      %2698 = vrot.lane.b32.xlu0 %v2690, 104
      %v2699 = vpop.permute.xlu0 %2698
      %2700 = vrot.lane.b32.xlu0 %v2691, 104
      %v2701 = vpop.permute.xlu0 %2700
      %2702 = vrot.lane.b32.xlu0 %v2692, 104
      %v2703 = vpop.permute.xlu0 %2702
      %2704 = vrot.lane.b32.xlu0 %v2693, 104
      %v2705 = vpop.permute.xlu0 %2704
      %2706 = vrot.lane.b32.xlu0 %v2694, 104
      %v2707 = vpop.permute.xlu0 %2706
      %2708 = vrot.lane.b32.xlu0 %v2695, 104
      %v2709 = vpop.permute.xlu0 %2708
      %2710 = vrot.lane.b32.xlu0 %v2696, 104
      %v2711 = vpop.permute.xlu0 %2710
      %2712 = vrot.lane.b32.xlu0 %v2697, 104
      %v2713 = vpop.permute.xlu0 %2712
      %v2722 = vadd.f32 %v2682, %v2699
      %v2723 = vadd.f32 %v2683, %v2701
      %v2724 = vadd.f32 %v2684, %v2703
      %v2725 = vadd.f32 %v2685, %v2705
      %v2726 = vadd.f32 %v2686, %v2707
      %v2727 = vadd.f32 %v2687, %v2709
      %v2728 = vadd.f32 %v2688, %v2711
      %v2729 = vadd.f32 %v2689, %v2713
      %v2738 = vrot.slane %v2722, 7
      %v2739 = vrot.slane %v2723, 7
      %v2740 = vrot.slane %v2724, 7
      %v2741 = vrot.slane %v2725, 7
      %v2742 = vrot.slane %v2726, 7
      %v2743 = vrot.slane %v2727, 7
      %v2744 = vrot.slane %v2728, 7
      %v2745 = vrot.slane %v2729, 7
      %2746 = vrot.lane.b32.xlu0 %v2738, 121
      %v2747 = vpop.permute.xlu0 %2746
      %2748 = vrot.lane.b32.xlu0 %v2739, 121
      %v2749 = vpop.permute.xlu0 %2748
      %2750 = vrot.lane.b32.xlu0 %v2740, 121
      %v2751 = vpop.permute.xlu0 %2750
      %2752 = vrot.lane.b32.xlu0 %v2741, 121
      %v2753 = vpop.permute.xlu0 %2752
      %2754 = vrot.lane.b32.xlu0 %v2742, 121
      %v2755 = vpop.permute.xlu0 %2754
      %2756 = vrot.lane.b32.xlu0 %v2743, 121
      %v2757 = vpop.permute.xlu0 %2756
      %2758 = vrot.lane.b32.xlu0 %v2744, 121
      %v2759 = vpop.permute.xlu0 %2758
      %2760 = vrot.lane.b32.xlu0 %v2745, 121
      %v2761 = vpop.permute.xlu0 %2760
      %v2770 = vrot.slane %v2722, 6
      %v2771 = vrot.slane %v2723, 6
      %v2772 = vrot.slane %v2724, 6
      %v2773 = vrot.slane %v2725, 6
      %v2774 = vrot.slane %v2726, 6
      %v2775 = vrot.slane %v2727, 6
      %v2776 = vrot.slane %v2728, 6
      %v2777 = vrot.slane %v2729, 6
      %2778 = vrot.lane.b32.xlu0 %v2770, 114
      %v2779 = vpop.permute.xlu0 %2778
      %2780 = vrot.lane.b32.xlu0 %v2771, 114
      %v2781 = vpop.permute.xlu0 %2780
      %2782 = vrot.lane.b32.xlu0 %v2772, 114
      %v2783 = vpop.permute.xlu0 %2782
      %2784 = vrot.lane.b32.xlu0 %v2773, 114
      %v2785 = vpop.permute.xlu0 %2784
      %2786 = vrot.lane.b32.xlu0 %v2774, 114
      %v2787 = vpop.permute.xlu0 %2786
      %2788 = vrot.lane.b32.xlu0 %v2775, 114
      %v2789 = vpop.permute.xlu0 %2788
      %2790 = vrot.lane.b32.xlu0 %v2776, 114
      %v2791 = vpop.permute.xlu0 %2790
      %2792 = vrot.lane.b32.xlu0 %v2777, 114
      %v2793 = vpop.permute.xlu0 %2792
      %v2802 = vrot.slane %v2722, 5
      %v2803 = vrot.slane %v2723, 5
      %v2804 = vrot.slane %v2724, 5
      %v2805 = vrot.slane %v2725, 5
      %v2806 = vrot.slane %v2726, 5
      %v2807 = vrot.slane %v2727, 5
      %v2808 = vrot.slane %v2728, 5
      %v2809 = vrot.slane %v2729, 5
      %2810 = vrot.lane.b32.xlu0 %v2802, 107
      %v2811 = vpop.permute.xlu0 %2810
      %2812 = vrot.lane.b32.xlu0 %v2803, 107
      %v2813 = vpop.permute.xlu0 %2812
      %2814 = vrot.lane.b32.xlu0 %v2804, 107
      %v2815 = vpop.permute.xlu0 %2814
      %2816 = vrot.lane.b32.xlu0 %v2805, 107
      %v2817 = vpop.permute.xlu0 %2816
      %2818 = vrot.lane.b32.xlu0 %v2806, 107
      %v2819 = vpop.permute.xlu0 %2818
      %2820 = vrot.lane.b32.xlu0 %v2807, 107
      %v2821 = vpop.permute.xlu0 %2820
      %2822 = vrot.lane.b32.xlu0 %v2808, 107
      %v2823 = vpop.permute.xlu0 %2822
      %2824 = vrot.lane.b32.xlu0 %v2809, 107
      %v2825 = vpop.permute.xlu0 %2824
      %vm2834 = vcmask 1040384
      %v2835 = vsel %vm2834, %v2722, %v2747
      %v2836 = vsel %vm2834, %v2723, %v2749
      %v2837 = vsel %vm2834, %v2724, %v2751
      %v2838 = vsel %vm2834, %v2725, %v2753
      %v2839 = vsel %vm2834, %v2726, %v2755
      %v2840 = vsel %vm2834, %v2727, %v2757
      %v2841 = vsel %vm2834, %v2728, %v2759
      %v2842 = vsel %vm2834, %v2729, %v2761
      %vm2843 = vcmask 1041408
      %v2844 = vsel %vm2843, %v2835, %v2779
      %v2845 = vsel %vm2843, %v2836, %v2781
      %v2846 = vsel %vm2843, %v2837, %v2783
      %v2847 = vsel %vm2843, %v2838, %v2785
      %v2848 = vsel %vm2843, %v2839, %v2787
      %v2849 = vsel %vm2843, %v2840, %v2789
      %v2850 = vsel %vm2843, %v2841, %v2791
      %v2851 = vsel %vm2843, %v2842, %v2793
      %vm2852 = vcmask 1042432
      %v2853 = vsel %vm2852, %v2844, %v2811
      %v2854 = vsel %vm2852, %v2845, %v2813
      %v2855 = vsel %vm2852, %v2846, %v2815
      %v2856 = vsel %vm2852, %v2847, %v2817
      %v2857 = vsel %vm2852, %v2848, %v2819
      %v2858 = vsel %vm2852, %v2849, %v2821
      %v2859 = vsel %vm2852, %v2850, %v2823
      %v2860 = vsel %vm2852, %v2851, %v2825
      %s2861 = sld [smem:[#allocation2]]
      %v2862 = vstv %s2861
      %v2863 = vadd.f32 %v2853, %v2862
      %v2864 = vadd.f32 %v2854, %v2862
      %v2865 = vadd.f32 %v2855, %v2862
      %v2866 = vadd.f32 %v2856, %v2862
      %v2867 = vadd.f32 %v2857, %v2862
      %v2868 = vadd.f32 %v2858, %v2862
      %v2869 = vadd.f32 %v2859, %v2862
      %v2870 = vadd.f32 %v2860, %v2862
      %v2871 = vxor.u32 %v2863, 2147483648
      %v2872 = vxor.u32 %v2864, 2147483648
      %v2873 = vxor.u32 %v2865, 2147483648
      %v2874 = vxor.u32 %v2866, 2147483648
      %v2875 = vxor.u32 %v2867, 2147483648
      %v2876 = vxor.u32 %v2868, 2147483648
      %v2877 = vxor.u32 %v2869, 2147483648
      %v2878 = vxor.u32 %v2870, 2147483648
      %v2879 = vmul.f32 %v2871, 1.442695
      %v2880 = vpow.pop %v2879
      %v2881 = vmul.f32 %v2872, 1.442695
      %v2882 = vpow.pop %v2881
      %v2883 = vmul.f32 %v2873, 1.442695
      %v2884 = vpow.pop %v2883
      %v2885 = vmul.f32 %v2874, 1.442695
      %v2886 = vpow.pop %v2885
      %v2887 = vmul.f32 %v2875, 1.442695
      %v2888 = vpow.pop %v2887
      %v2889 = vmul.f32 %v2876, 1.442695
      %v2890 = vpow.pop %v2889
      %v2891 = vmul.f32 %v2877, 1.442695
      %v2892 = vpow.pop %v2891
      %v2893 = vmul.f32 %v2878, 1.442695
      %v2894 = vpow.pop %v2893
      %v2895 = vadd.f32 %v2880, 1.0
      %v2896 = vadd.f32 %v2882, 1.0
      %v2897 = vadd.f32 %v2884, 1.0
      %v2898 = vadd.f32 %v2886, 1.0
      %v2899 = vadd.f32 %v2888, 1.0
      %v2900 = vadd.f32 %v2890, 1.0
      %v2901 = vadd.f32 %v2892, 1.0
      %v2902 = vadd.f32 %v2894, 1.0
      %v2903 = vrcp.pop %v2895
      %v2904 = vmul.f32 %v2895, %v2903
      %v2905 = vsub.f32 1.0, %v2904
      %v2906 = vmul.f32 %v2903, %v2905
      %v2907 = vadd.f32 %v2903, %v2906
      %vm2908 = vweird.f32 %v2895
      %vm2909 = vweird.f32 %v2903
      %vm2910 = vmor %vm2908, %vm2909
      %v2911 = vsel %vm2910, %v2903, %v2907
      %v2912 = vand.u32 2147483647, %v2895
      %vm2913 = vcmp.eq.f32.partialorder %v2912, 8.507059e+37
      %v2914 = vand.u32 %v2895, 2147483648
      %v2915 = vor.u32 1.1754944e-38, %v2914
      %v2916 = vsel %vm2913, %v2915, %v2911
      %v2917 = vmul.f32 1.0, %v2916
      %v2918 = vrcp.pop %v2896
      %v2919 = vmul.f32 %v2896, %v2918
      %v2920 = vsub.f32 1.0, %v2919
      %v2921 = vmul.f32 %v2918, %v2920
      %v2922 = vadd.f32 %v2918, %v2921
      %vm2923 = vweird.f32 %v2896
      %vm2924 = vweird.f32 %v2918
      %vm2925 = vmor %vm2923, %vm2924
      %v2926 = vsel %vm2925, %v2918, %v2922
      %v2927 = vand.u32 2147483647, %v2896
      %vm2928 = vcmp.eq.f32.partialorder %v2927, 8.507059e+37
      %v2929 = vand.u32 %v2896, 2147483648
      %v2930 = vor.u32 1.1754944e-38, %v2929
      %v2931 = vsel %vm2928, %v2930, %v2926
      %v2932 = vmul.f32 1.0, %v2931
      %v2933 = vrcp.pop %v2897
      %v2934 = vmul.f32 %v2897, %v2933
      %v2935 = vsub.f32 1.0, %v2934
      %v2936 = vmul.f32 %v2933, %v2935
      %v2937 = vadd.f32 %v2933, %v2936
      %vm2938 = vweird.f32 %v2897
      %vm2939 = vweird.f32 %v2933
      %vm2940 = vmor %vm2938, %vm2939
      %v2941 = vsel %vm2940, %v2933, %v2937
      %v2942 = vand.u32 2147483647, %v2897
      %vm2943 = vcmp.eq.f32.partialorder %v2942, 8.507059e+37
      %v2944 = vand.u32 %v2897, 2147483648
      %v2945 = vor.u32 1.1754944e-38, %v2944
      %v2946 = vsel %vm2943, %v2945, %v2941
      %v2947 = vmul.f32 1.0, %v2946
      %v2948 = vrcp.pop %v2898
      %v2949 = vmul.f32 %v2898, %v2948
      %v2950 = vsub.f32 1.0, %v2949
      %v2951 = vmul.f32 %v2948, %v2950
      %v2952 = vadd.f32 %v2948, %v2951
      %vm2953 = vweird.f32 %v2898
      %vm2954 = vweird.f32 %v2948
      %vm2955 = vmor %vm2953, %vm2954
      %v2956 = vsel %vm2955, %v2948, %v2952
      %v2957 = vand.u32 2147483647, %v2898
      %vm2958 = vcmp.eq.f32.partialorder %v2957, 8.507059e+37
      %v2959 = vand.u32 %v2898, 2147483648
      %v2960 = vor.u32 1.1754944e-38, %v2959
      %v2961 = vsel %vm2958, %v2960, %v2956
      %v2962 = vmul.f32 1.0, %v2961
      %v2963 = vrcp.pop %v2899
      %v2964 = vmul.f32 %v2899, %v2963
      %v2965 = vsub.f32 1.0, %v2964
      %v2966 = vmul.f32 %v2963, %v2965
      %v2967 = vadd.f32 %v2963, %v2966
      %vm2968 = vweird.f32 %v2899
      %vm2969 = vweird.f32 %v2963
      %vm2970 = vmor %vm2968, %vm2969
      %v2971 = vsel %vm2970, %v2963, %v2967
      %v2972 = vand.u32 2147483647, %v2899
      %vm2973 = vcmp.eq.f32.partialorder %v2972, 8.507059e+37
      %v2974 = vand.u32 %v2899, 2147483648
      %v2975 = vor.u32 1.1754944e-38, %v2974
      %v2976 = vsel %vm2973, %v2975, %v2971
      %v2977 = vmul.f32 1.0, %v2976
      %v2978 = vrcp.pop %v2900
      %v2979 = vmul.f32 %v2900, %v2978
      %v2980 = vsub.f32 1.0, %v2979
      %v2981 = vmul.f32 %v2978, %v2980
      %v2982 = vadd.f32 %v2978, %v2981
      %vm2983 = vweird.f32 %v2900
      %vm2984 = vweird.f32 %v2978
      %vm2985 = vmor %vm2983, %vm2984
      %v2986 = vsel %vm2985, %v2978, %v2982
      %v2987 = vand.u32 2147483647, %v2900
      %vm2988 = vcmp.eq.f32.partialorder %v2987, 8.507059e+37
      %v2989 = vand.u32 %v2900, 2147483648
      %v2990 = vor.u32 1.1754944e-38, %v2989
      %v2991 = vsel %vm2988, %v2990, %v2986
      %v2992 = vmul.f32 1.0, %v2991
      %v2993 = vrcp.pop %v2901
      %v2994 = vmul.f32 %v2901, %v2993
      %v2995 = vsub.f32 1.0, %v2994
      %v2996 = vmul.f32 %v2993, %v2995
      %v2997 = vadd.f32 %v2993, %v2996
      %vm2998 = vweird.f32 %v2901
      %vm2999 = vweird.f32 %v2993
      %vm3000 = vmor %vm2998, %vm2999
      %v3001 = vsel %vm3000, %v2993, %v2997
      %v3002 = vand.u32 2147483647, %v2901
      %vm3003 = vcmp.eq.f32.partialorder %v3002, 8.507059e+37
      %v3004 = vand.u32 %v2901, 2147483648
      %v3005 = vor.u32 1.1754944e-38, %v3004
      %v3006 = vsel %vm3003, %v3005, %v3001
      %v3007 = vmul.f32 1.0, %v3006
      %v3008 = vrcp.pop %v2902
      %v3009 = vmul.f32 %v2902, %v3008
      %v3010 = vsub.f32 1.0, %v3009
      %v3011 = vmul.f32 %v3008, %v3010
      %v3012 = vadd.f32 %v3008, %v3011
      %vm3013 = vweird.f32 %v2902
      %vm3014 = vweird.f32 %v3008
      %vm3015 = vmor %vm3013, %vm3014
      %v3016 = vsel %vm3015, %v3008, %v3012
      %v3017 = vand.u32 2147483647, %v2902
      %vm3018 = vcmp.eq.f32.partialorder %v3017, 8.507059e+37
      %v3019 = vand.u32 %v2902, 2147483648
      %v3020 = vor.u32 1.1754944e-38, %v3019
      %v3021 = vsel %vm3018, %v3020, %v3016
      %v3022 = vmul.f32 1.0, %v3021
      %vm3023 = vcmask 27648
      %3024 = vst.msk [vmem:[%s176] sm:$0xf] %vm3023, %v2917
      %3025 = vst.msk [vmem:[%s176 + $0x4] sm:$0xf] %vm3023, %v2932
      %3026 = vst.msk [vmem:[%s176 + $0x8] sm:$0xf] %vm3023, %v2947
      %3027 = vst.msk [vmem:[%s176 + $0xc] sm:$0xf] %vm3023, %v2962
      %3028 = vst.msk [vmem:[%s176 + $0x10] sm:$0xf] %vm3023, %v2977
      %3029 = vst.msk [vmem:[%s176 + $0x14] sm:$0xf] %vm3023, %v2992
      %3030 = vst.msk [vmem:[%s176 + $0x18] sm:$0xf] %vm3023, %v3007
      %3031 = vst.msk [vmem:[%s176 + $0x1c] sm:$0xf] %vm3023, %v3022
      %s3032 = smul.u32 8, %s15
      %p3033 = scmp.lt.s32.totalorder %s3032, 15
      %s3034 = scalar_select %p3033, %s3032, 15
      %s3035 = smul.addr %s3034, 4
      %s3036 = scalar_lea.vmem %s3, %s3035
      // Predicated region
      $region33: #{discriminator_forward.1} parent=31 // pred_check
        %p3037 = pneg %p101
      $region34: #{discriminator_forward.1} parent=31 // pred_check_branch
        %3039 = sbr.rel (%p3037) target = $region36
      $region35: #{discriminator_forward.1} parent=31 // pred_region
        %s3040 = smul.u32 8, %s15
      $region36: #{discriminator_forward.1} parent=31 // pred_fallthru
        _
    $region32: #{discriminator_forward.1} parent=5 // pred_fallthru
      _
    %p3041 = scmp.le.s32.totalorder 2, %s10
    // Predicated region
    $region37: #{discriminator_forward.1} parent=5 // pred_check
      %p3042 = pneg %p3041
    $region38: #{discriminator_forward.1} parent=5 // pred_check_branch
      %3044 = sbr.rel (%p3042) target = $region40
    $region39: #{discriminator_forward.1} parent=5 // pred_region
      %s3045 = ssub.s32 %s10, 2
      // Predicated region
      $region41: #{discriminator_forward.1} parent=39 // pred_check
        %p3046 = pneg %p107
      $region42: #{discriminator_forward.1} parent=39 // pred_check_branch
        %3048 = sbr.rel (%p3046) target = $region44
      $region43: #{discriminator_forward.1} parent=39 // pred_region
        %s3049 = smul.u32 8, %s16
        %p3050 = scmp.lt.s32.totalorder %s3049, 15
        %s3051 = scalar_select %p3050, %s3049, 15
        %s3052 = smul.addr %s3051, 4
        %s3053 = scalar_lea.vmem %s3, %s3052
      $region44: #{discriminator_forward.1} parent=39 // pred_fallthru
        _
    $region40: #{discriminator_forward.1} parent=5 // pred_fallthru
      _
  $region6: #{discriminator_forward.1} parent=0 // loop_footer
    %s14 = sadd.s32 1, %s10
  $region7: #{discriminator_forward.1} parent=0 // loop_footer_branch
    %9 = sbr.rel target = $region3
  $region8: #{discriminator_forward.1} parent=0 // loop_exit
    _

</llo_original>
